<compile_context>
chip_gen: v7x
topology: tpu7x:2x2x1
jax: 0.10.0
libtpu: 0.0.40
codegen_flags: <defaults>
</compile_context>

<pallas_src>
import functools

import numpy as np

import jax
import jax.numpy as jnp
from jax.experimental import pallas as pl
from jax.experimental.pallas import tpu as pltpu

EPS_BN = 1e-5
LANE = 128
_VMEM = pl.BlockSpec(memory_space=pltpu.MemorySpace.VMEM)


# ------------------------------ Pallas kernel --------------------------------

def cnn3d_fused_kernel(pstd_ref, pord_ref, w1_ref, g1_ref, b1_ref,
                       w2_ref, g2_ref, b2_ref,
                       fw1_ref, fb1_ref, fw2_ref, fb2_ref, fw3_ref, fb3_ref,
                       logits_ref, corr_ref,
                       *, n_batch, dhw, c1_real, c2_real, kvol2):
    """Whole CNN3D forward in one kernel.

    pstd: (R1, K1P)        bf16 conv1 im2col patches, rows in (n,d,h,w) order (BN1 stats)
    pord: (kvol2*R2, K1P)  bf16 same patches, rows pre-ordered for conv2's im2col
    w1:   (K1P, 128) bf16; w2: (kvol2, c1_real, 128) bf16
    fw1:  (dhw*128, 128) f32 (rows pre-permuted to the kernel's (s, c) flatten order)
    """
    r1 = pstd_ref.shape[0]
    r2 = n_batch * dhw

    # ---- conv1 (im2col matmuls, bf16 -> f32 acc); one shared weight, two row orders ----
    y1 = jnp.dot(pstd_ref[...], w1_ref[...], preferred_element_type=jnp.float32)
    y1o = jnp.dot(pord_ref[...], w1_ref[...], preferred_element_type=jnp.float32)

    # ---- BatchNorm1 (batch stats, biased var, two-pass) + ReLU --------------------------
    mean1 = jnp.sum(y1, axis=0, keepdims=True) * (1.0 / r1)
    dev1 = y1 - mean1
    var1 = jnp.sum(dev1 * dev1, axis=0, keepdims=True) * (1.0 / r1)
    scale1 = jax.lax.rsqrt(var1 + EPS_BN) * g1_ref[...]
    shift1 = b1_ref[...] - mean1 * scale1
    x1 = jnp.maximum(y1o * scale1 + shift1, 0.0)
    # TODO(synk): Dropout3d -> identity (eval semantics).

    # ---- conv2: kvol2 accumulated offset matmuls (16 contiguous, sublane-aligned rows
    #      per kernel offset; only the c1_real real input channels, no zero-K inflation) ---
    x1s = x1[:, :c1_real].astype(jnp.bfloat16)
    acc = jnp.zeros((r2, w2_ref.shape[2]), jnp.float32)
    for j in range(kvol2):
        acc = acc + jnp.dot(x1s[j * r2:(j + 1) * r2, :], w2_ref[j],
                            preferred_element_type=jnp.float32)

    # ---- BatchNorm2 (batch stats, two-pass) + ReLU --------------------------------------
    mean2 = jnp.sum(acc, axis=0, keepdims=True) * (1.0 / r2)
    dev2 = acc - mean2
    var2 = jnp.sum(dev2 * dev2, axis=0, keepdims=True) * (1.0 / r2)
    y2 = jnp.maximum(dev2 * (jax.lax.rsqrt(var2 + EPS_BN) * g2_ref[...]) + b2_ref[...], 0.0)
    # TODO(synk): second Dropout3d -> identity (eval semantics).

    # ---- torch.var_mean over all REAL elements; correlation = (x - mean) / var ----------
    # Padded output channels are exactly zero, so full-tile sums equal sums over real cols.
    n_el = r2 * c2_real
    mu = jnp.sum(y2) * (1.0 / n_el)
    diff = y2 - mu
    col = jax.lax.broadcasted_iota(jnp.int32, y2.shape, 1)
    masked = jnp.where(col < c2_real, diff, 0.0)
    var_all = jnp.sum(masked * masked) * (1.0 / (n_el - 1))   # unbiased (torch default)
    corr_ref[...] = diff * (1.0 / var_all)    # lane-dense (r2,128) store; slice real cols outside

    # ---- flatten + fc1 (single K = dhw*128 contraction) + fc2 + fc3 ---------------------
    y2_3d = y2.reshape(n_batch, dhw, y2.shape[1])          # free leading-dim split (dhw == 8)
    lhs = jnp.concatenate([y2_3d[:, s, :] for s in range(dhw)], axis=1)   # (n_batch, dhw*128)
    h = jnp.maximum(jnp.dot(lhs, fw1_ref[...], preferred_element_type=jnp.float32)
                    + fb1_ref[...], 0.0)
    h = jnp.maximum(jnp.dot(h, fw2_ref[...], preferred_element_type=jnp.float32)
                    + fb2_ref[...], 0.0)
    # TODO(synk): F.dropout before fc3 -> identity (eval semantics).
    logits_ref[...] = (jnp.dot(h, fw3_ref[...], preferred_element_type=jnp.float32)
                       + fb3_ref[...])


def cnn3d_fused(pstd, pord, params, *, n_batch, dhw, c1_real, c2_real, kvol2):
    kernel = functools.partial(cnn3d_fused_kernel, n_batch=n_batch, dhw=dhw,
                               c1_real=c1_real, c2_real=c2_real, kvol2=kvol2)
    return pl.pallas_call(
        kernel,
        out_shape=(jax.ShapeDtypeStruct((n_batch, params["fw3"].shape[1]), jnp.float32),
                   jax.ShapeDtypeStruct((n_batch * dhw, params["w2m"].shape[2]), jnp.float32)),
        in_specs=[_VMEM] * 14,
        out_specs=(_VMEM, _VMEM),
    )(pstd, pord, params["w1m"], params["g1"], params["be1"],
      params["w2m"], params["g2"], params["be2"],
      params["fw1"], params["fb1"], params["fw2"], params["fb2"],
      params["fw3"], params["fb3"])


# -------------------------------- JAX glue -----------------------------------

def conv3d_output_size(img_size, padding, kernel_size, stride):
    return tuple(
        (img_size[i] + 2 * padding[i] - (kernel_size[i] - 1) - 1) // stride[i] + 1
        for i in range(3))


def im2col3d(x_cl, ksize, stride):
    """x_cl: (N, D, H, W, C) channels-last -> (N*Do*Ho*Wo, kd*kh*kw*C), cols (dz,dy,dx,c)."""
    n, d, h, w, c = x_cl.shape
    kd, kh, kw = ksize
    sd, sh, sw = stride
    do = (d - kd) // sd + 1
    ho = (h - kh) // sh + 1
    wo = (w - kw) // sw + 1
    cols = []
    for dz in range(kd):
        for dy in range(kh):
            for dx in range(kw):
                cols.append(x_cl[:, dz:dz + sd * do:sd,
                                 dy:dy + sh * ho:sh,
                                 dx:dx + sw * wo:sw, :])
    p = jnp.stack(cols, axis=4)                              # (N,Do,Ho,Wo,kvol,C)
    return p.reshape(n * do * ho * wo, kd * kh * kw * c), (do, ho, wo)


def conv2_patch_order(n_batch, c1_shape, c2_shape, k2, s2):
    """Row permutation mapping conv2-im2col order -> conv1-output (n,d,h,w) row order."""
    d1, h1, w1 = c1_shape
    d2, h2, w2 = c2_shape
    kd, kh, kw = k2
    sd, sh, sw = s2
    perm = []
    for dz in range(kd):
        for dy in range(kh):
            for dx in range(kw):
                for n in range(n_batch):
                    for do in range(d2):
                        for ho in range(h2):
                            for wo in range(w2):
                                dd, hh, ww = do * sd + dz, ho * sh + dy, wo * sw + dx
                                perm.append(((n * d1 + dd) * h1 + hh) * w1 + ww)
    return np.asarray(perm, np.int32)


def cnn3d_forward(x_ncdhw, params, cfg):
    n = x_ncdhw.shape[0]
    x = jnp.transpose(x_ncdhw, (0, 2, 3, 4, 1)).astype(jnp.bfloat16)   # channels-last bf16

    # conv1 im2col on the host (accepted at toy size; see TODO at top)
    p1, _ = im2col3d(x, cfg["k1"], cfg["s1"])                          # (432, 125) bf16
    p1 = jnp.pad(p1, ((0, 0), (0, params["w1m"].shape[0] - p1.shape[1])))   # -> (432, 128)
    # same patches reordered to conv2's im2col row order (single constant-index gather)
    pord = jnp.take(p1, cfg["perm"], axis=0)

    logits_pad, corr_rows = cnn3d_fused(
        p1, pord, params, n_batch=n, dhw=cfg["dhw"],
        c1_real=cfg["c1"], c2_real=cfg["c2"], kvol2=cfg["kvol2"])

    logits = logits_pad[:, :cfg["num_classes"]]
    d2o, h2o, w2o = cfg["c2_out"]
    corr = corr_rows[:, :cfg["c2"]].reshape(n, d2o, h2o, w2o, cfg["c2"])
    corr = jnp.transpose(corr, (0, 4, 1, 2, 3))                        # torch NCDHW layout
    return logits, corr


# ---------------------------------- main --------------------------------------

if __name__ == "__main__":
    # small shapes consistent with the module
    N, CH_IN = 2, 1
    T_DIM, IMG_X, IMG_Y = 16, 16, 16
    CH1, CH2 = 32, 48
    K1, K2 = (5, 5, 5), (3, 3, 3)
    S1, S2 = (2, 2, 2), (2, 2, 2)
    PD = (0, 0, 0)
    FC_H1, FC_H2, NUM_CLASSES = 32, 32, 16
    C1P = C2P = H1P = H2P = CLSP = LANE                                # 128-lane padded widths

    c1_out = conv3d_output_size((T_DIM, IMG_X, IMG_Y), PD, K1, S1)     # (6, 6, 6)
    c2_out = conv3d_output_size(c1_out, PD, K2, S2)                    # (2, 2, 2)
    kvol1 = K1[0] * K1[1] * K1[2]                                      # 125
    kvol2 = K2[0] * K2[1] * K2[2]                                      # 27
    k1_pad = ((kvol1 * CH_IN + LANE - 1) // LANE) * LANE               # 125 -> 128
    dhw = c2_out[0] * c2_out[1] * c2_out[2]                            # 8
    fc1_in = CH2 * dhw                                                 # 384

    key = jax.random.PRNGKey(0)
    ks = jax.random.split(key, 10)
    x_in = jax.random.normal(ks[0], (N, CH_IN, T_DIM, IMG_X, IMG_Y), jnp.float32)

    # torch-layout synthetic parameters.  Conv biases omitted: with batch-stat BN directly
    # after each conv the bias is exactly cancelled by the mean subtraction.
    w1 = 0.1 * jax.random.normal(ks[1], (CH1, CH_IN) + K1, jnp.float32)
    w2 = 0.1 * jax.random.normal(ks[2], (CH2, CH1) + K2, jnp.float32)
    fw1 = 0.05 * jax.random.normal(ks[3], (FC_H1, fc1_in), jnp.float32)   # torch (out, in)
    fb1 = 0.05 * jax.random.normal(ks[4], (FC_H1,), jnp.float32)
    fw2 = 0.05 * jax.random.normal(ks[5], (FC_H2, FC_H1), jnp.float32)
    fb2 = 0.05 * jax.random.normal(ks[6], (FC_H2,), jnp.float32)
    fw3 = 0.05 * jax.random.normal(ks[7], (NUM_CLASSES, FC_H2), jnp.float32)
    fb3 = jnp.zeros((NUM_CLASSES,), jnp.float32)

    # ---- one-time weight repacking -------------------------------------------------------
    # conv1: (Cout,Cin,kd,kh,kw) -> rows in (dz,dy,dx,cin) order; pad K 125->128, Cout 32->128
    w1m = jnp.transpose(w1, (2, 3, 4, 1, 0)).reshape(kvol1 * CH_IN, CH1)
    w1m = jnp.pad(w1m, ((0, k1_pad - kvol1 * CH_IN), (0, C1P - CH1))).astype(jnp.bfloat16)
    # conv2: per-offset (Cin=32, Cout padded to 128); no zero Cin padding in K
    w2m = jnp.transpose(w2, (2, 3, 4, 1, 0)).reshape(kvol2, CH1, CH2)
    w2m = jnp.pad(w2m, ((0, 0), (0, 0), (0, C2P - CH2))).astype(jnp.bfloat16)
    # BatchNorm affine params (torch init: gamma=1, beta=0), padded to 128 lanes
    g1 = jnp.ones((1, C1P), jnp.float32)
    be1 = jnp.zeros((1, C1P), jnp.float32)
    g2 = jnp.ones((1, C2P), jnp.float32)
    be2 = jnp.zeros((1, C2P), jnp.float32)
    # fc1: permute rows from torch's (c,d,h,w) flatten order to the kernel's (s=d*4+h*2+w, c)
    # order and flatten to (dhw*128, 128) so fc1 is ONE K=1024 matmul in-kernel.
    d2o, h2o, w2o = c2_out
    fw1_k = fw1.reshape(FC_H1, CH2, d2o, h2o, w2o)
    fw1_k = jnp.transpose(fw1_k, (2, 3, 4, 1, 0)).reshape(dhw, CH2, FC_H1)
    fw1_k = jnp.pad(fw1_k, ((0, 0), (0, C2P - CH2), (0, H1P - FC_H1)))
    fw1_k = fw1_k.reshape(dhw * C2P, H1P)                              # row = s*128 + c
    fb1_k = jnp.pad(fb1, (0, H1P - FC_H1)).reshape(1, H1P)
    fw2_k = jnp.pad(fw2.T, ((0, H1P - FC_H1), (0, H2P - FC_H2)))
    fb2_k = jnp.pad(fb2, (0, H2P - FC_H2)).reshape(1, H2P)
    fw3_k = jnp.pad(fw3.T, ((0, H2P - FC_H2), (0, CLSP - NUM_CLASSES)))
    fb3_k = jnp.pad(fb3, (0, CLSP - NUM_CLASSES)).reshape(1, CLSP)

    params = dict(w1m=w1m, g1=g1, be1=be1, w2m=w2m, g2=g2, be2=be2,
                  fw1=fw1_k, fb1=fb1_k, fw2=fw2_k, fb2=fb2_k, fw3=fw3_k, fb3=fb3_k)
    cfg = dict(k1=K1, s1=S1, dhw=dhw, c1=CH1, c2=CH2, kvol2=kvol2,
               num_classes=NUM_CLASSES, c2_out=c2_out,
               perm=conv2_patch_order(N, c1_out, c2_out, K2, S2))

    fwd = jax.jit(lambda xx: cnn3d_forward(xx, params, cfg))
    logits, corr = fwd(x_in)
    jax.block_until_ready((logits, corr))

    assert logits.shape == (N, NUM_CLASSES)
    assert corr.shape == (N, CH2) + c2_out
    assert bool(jnp.isfinite(logits).all()) and bool(jnp.isfinite(corr).all())
    print("KERNEL_OK")
</pallas_src>

<mosaic_0001>
module attributes {stable_mosaic.version = 11 : i64} {
  func.func @cnn3d_fused_kernel(%arg0: memref<432x128xbf16, #tpu.memory_space<vmem>>, %arg1: memref<432x128xbf16, #tpu.memory_space<vmem>>, %arg2: memref<128x128xbf16, #tpu.memory_space<vmem>>, %arg3: memref<1x128xf32, #tpu.memory_space<vmem>>, %arg4: memref<1x128xf32, #tpu.memory_space<vmem>>, %arg5: memref<27x32x128xbf16, #tpu.memory_space<vmem>>, %arg6: memref<1x128xf32, #tpu.memory_space<vmem>>, %arg7: memref<1x128xf32, #tpu.memory_space<vmem>>, %arg8: memref<1024x128xf32, #tpu.memory_space<vmem>>, %arg9: memref<1x128xf32, #tpu.memory_space<vmem>>, %arg10: memref<128x128xf32, #tpu.memory_space<vmem>>, %arg11: memref<1x128xf32, #tpu.memory_space<vmem>>, %arg12: memref<128x128xf32, #tpu.memory_space<vmem>>, %arg13: memref<1x128xf32, #tpu.memory_space<vmem>>, %arg14: memref<2x128xf32, #tpu.memory_space<vmem>>, %arg15: memref<16x128xf32, #tpu.memory_space<vmem>>) attributes {dimension_semantics = [], scalar_prefetch = 0 : i64, scratch_operands = 0 : i64, tpu.core_type = #tpu.core_type<tc>} {
    %c0 = arith.constant 0 : index
    %c0_0 = arith.constant 0 : index
    %0 = vector.load %arg0[%c0, %c0_0] : memref<432x128xbf16, #tpu.memory_space<vmem>>, vector<432x128xbf16>
    %c0_1 = arith.constant 0 : index
    %c0_2 = arith.constant 0 : index
    %1 = vector.load %arg2[%c0_1, %c0_2] : memref<128x128xbf16, #tpu.memory_space<vmem>>, vector<128x128xbf16>
    %cst = arith.constant dense<0.000000e+00> : vector<432x128xf32>
    %2 = tpu.matmul %0, %1, %cst {dimension_numbers = #tpu.dot_dimension_numbers<[1], [0], [0], [1], [0, 0, 1, 1], [], []>} : vector<432x128xbf16>, vector<128x128xbf16>, vector<432x128xf32> -> vector<432x128xf32>
    %c0_3 = arith.constant 0 : index
    %c0_4 = arith.constant 0 : index
    %3 = vector.load %arg1[%c0_3, %c0_4] : memref<432x128xbf16, #tpu.memory_space<vmem>>, vector<432x128xbf16>
    %c0_5 = arith.constant 0 : index
    %c0_6 = arith.constant 0 : index
    %4 = vector.load %arg2[%c0_5, %c0_6] : memref<128x128xbf16, #tpu.memory_space<vmem>>, vector<128x128xbf16>
    %cst_7 = arith.constant dense<0.000000e+00> : vector<432x128xf32>
    %5 = tpu.matmul %3, %4, %cst_7 {dimension_numbers = #tpu.dot_dimension_numbers<[1], [0], [0], [1], [0, 0, 1, 1], [], []>} : vector<432x128xbf16>, vector<128x128xbf16>, vector<432x128xf32> -> vector<432x128xf32>
    %cst_8 = arith.constant dense<0.000000e+00> : vector<128xf32>
    %6 = vector.multi_reduction <add>, %2, %cst_8 [0] : vector<432x128xf32> to vector<128xf32>
    %7 = vector.shape_cast %6 : vector<128xf32> to vector<1x128xf32>
    %cst_9 = arith.constant 0.00231481483 : f32
    %8 = vector.broadcast %cst_9 : f32 to vector<1x128xf32>
    %9 = arith.mulf %7, %8 : vector<1x128xf32>
    %10 = vector.broadcast %9 : vector<1x128xf32> to vector<432x128xf32>
    %11 = arith.subf %2, %10 : vector<432x128xf32>
    %12 = arith.mulf %11, %11 : vector<432x128xf32>
    %cst_10 = arith.constant dense<0.000000e+00> : vector<128xf32>
    %13 = vector.multi_reduction <add>, %12, %cst_10 [0] : vector<432x128xf32> to vector<128xf32>
    %14 = vector.shape_cast %13 : vector<128xf32> to vector<1x128xf32>
    %cst_11 = arith.constant 0.00231481483 : f32
    %15 = vector.broadcast %cst_11 : f32 to vector<1x128xf32>
    %16 = arith.mulf %14, %15 : vector<1x128xf32>
    %cst_12 = arith.constant 9.99999974E-6 : f32
    %17 = vector.broadcast %cst_12 : f32 to vector<1x128xf32>
    %18 = arith.addf %16, %17 : vector<1x128xf32>
    %19 = math.rsqrt %18 : vector<1x128xf32>
    %c0_13 = arith.constant 0 : index
    %c0_14 = arith.constant 0 : index
    %20 = vector.load %arg3[%c0_13, %c0_14] : memref<1x128xf32, #tpu.memory_space<vmem>>, vector<1x128xf32>
    %21 = arith.mulf %19, %20 : vector<1x128xf32>
    %c0_15 = arith.constant 0 : index
    %c0_16 = arith.constant 0 : index
    %22 = vector.load %arg4[%c0_15, %c0_16] : memref<1x128xf32, #tpu.memory_space<vmem>>, vector<1x128xf32>
    %23 = arith.mulf %9, %21 : vector<1x128xf32>
    %24 = arith.subf %22, %23 : vector<1x128xf32>
    %25 = vector.broadcast %21 : vector<1x128xf32> to vector<432x128xf32>
    %26 = arith.mulf %5, %25 : vector<432x128xf32>
    %27 = vector.broadcast %24 : vector<1x128xf32> to vector<432x128xf32>
    %28 = arith.addf %26, %27 : vector<432x128xf32>
    %cst_17 = arith.constant 0.000000e+00 : f32
    %29 = vector.broadcast %cst_17 : f32 to vector<432x128xf32>
    %30 = arith.maximumf %28, %29 : vector<432x128xf32>
    %31 = vector.extract_strided_slice %30 {offsets = [0, 0], sizes = [432, 32], strides = [1, 1]} : vector<432x128xf32> to vector<432x32xf32>
    %32 = arith.truncf %31 : vector<432x32xf32> to vector<432x32xbf16>
    %cst_18 = arith.constant 0.000000e+00 : f32
    %33 = vector.broadcast %cst_18 : f32 to vector<16x128xf32>
    %34 = vector.extract_strided_slice %32 {offsets = [0, 0], sizes = [16, 32], strides = [1, 1]} : vector<432x32xbf16> to vector<16x32xbf16>
    %c0_19 = arith.constant 0 : index
    %c0_20 = arith.constant 0 : index
    %c0_21 = arith.constant 0 : index
    %35 = vector.load %arg5[%c0_19, %c0_20, %c0_21] : memref<27x32x128xbf16, #tpu.memory_space<vmem>>, vector<1x32x128xbf16>
    %36 = vector.shape_cast %35 : vector<1x32x128xbf16> to vector<32x128xbf16>
    %cst_22 = arith.constant dense<0.000000e+00> : vector<16x128xf32>
    %37 = tpu.matmul %34, %36, %cst_22 {dimension_numbers = #tpu.dot_dimension_numbers<[1], [0], [0], [1], [0, 0, 1, 1], [], []>} : vector<16x32xbf16>, vector<32x128xbf16>, vector<16x128xf32> -> vector<16x128xf32>
    %38 = arith.addf %33, %37 : vector<16x128xf32>
    %39 = vector.extract_strided_slice %32 {offsets = [16, 0], sizes = [16, 32], strides = [1, 1]} : vector<432x32xbf16> to vector<16x32xbf16>
    %c1 = arith.constant 1 : index
    %c0_23 = arith.constant 0 : index
    %c0_24 = arith.constant 0 : index
    %40 = vector.load %arg5[%c1, %c0_23, %c0_24] : memref<27x32x128xbf16, #tpu.memory_space<vmem>>, vector<1x32x128xbf16>
    %41 = vector.shape_cast %40 : vector<1x32x128xbf16> to vector<32x128xbf16>
    %cst_25 = arith.constant dense<0.000000e+00> : vector<16x128xf32>
    %42 = tpu.matmul %39, %41, %cst_25 {dimension_numbers = #tpu.dot_dimension_numbers<[1], [0], [0], [1], [0, 0, 1, 1], [], []>} : vector<16x32xbf16>, vector<32x128xbf16>, vector<16x128xf32> -> vector<16x128xf32>
    %43 = arith.addf %38, %42 : vector<16x128xf32>
    %44 = vector.extract_strided_slice %32 {offsets = [32, 0], sizes = [16, 32], strides = [1, 1]} : vector<432x32xbf16> to vector<16x32xbf16>
    %c2 = arith.constant 2 : index
    %c0_26 = arith.constant 0 : index
    %c0_27 = arith.constant 0 : index
    %45 = vector.load %arg5[%c2, %c0_26, %c0_27] : memref<27x32x128xbf16, #tpu.memory_space<vmem>>, vector<1x32x128xbf16>
    %46 = vector.shape_cast %45 : vector<1x32x128xbf16> to vector<32x128xbf16>
    %cst_28 = arith.constant dense<0.000000e+00> : vector<16x128xf32>
    %47 = tpu.matmul %44, %46, %cst_28 {dimension_numbers = #tpu.dot_dimension_numbers<[1], [0], [0], [1], [0, 0, 1, 1], [], []>} : vector<16x32xbf16>, vector<32x128xbf16>, vector<16x128xf32> -> vector<16x128xf32>
    %48 = arith.addf %43, %47 : vector<16x128xf32>
    %49 = vector.extract_strided_slice %32 {offsets = [48, 0], sizes = [16, 32], strides = [1, 1]} : vector<432x32xbf16> to vector<16x32xbf16>
    %c3 = arith.constant 3 : index
    %c0_29 = arith.constant 0 : index
    %c0_30 = arith.constant 0 : index
    %50 = vector.load %arg5[%c3, %c0_29, %c0_30] : memref<27x32x128xbf16, #tpu.memory_space<vmem>>, vector<1x32x128xbf16>
    %51 = vector.shape_cast %50 : vector<1x32x128xbf16> to vector<32x128xbf16>
    %cst_31 = arith.constant dense<0.000000e+00> : vector<16x128xf32>
    %52 = tpu.matmul %49, %51, %cst_31 {dimension_numbers = #tpu.dot_dimension_numbers<[1], [0], [0], [1], [0, 0, 1, 1], [], []>} : vector<16x32xbf16>, vector<32x128xbf16>, vector<16x128xf32> -> vector<16x128xf32>
    %53 = arith.addf %48, %52 : vector<16x128xf32>
    %54 = vector.extract_strided_slice %32 {offsets = [64, 0], sizes = [16, 32], strides = [1, 1]} : vector<432x32xbf16> to vector<16x32xbf16>
    %c4 = arith.constant 4 : index
    %c0_32 = arith.constant 0 : index
    %c0_33 = arith.constant 0 : index
    %55 = vector.load %arg5[%c4, %c0_32, %c0_33] : memref<27x32x128xbf16, #tpu.memory_space<vmem>>, vector<1x32x128xbf16>
    %56 = vector.shape_cast %55 : vector<1x32x128xbf16> to vector<32x128xbf16>
    %cst_34 = arith.constant dense<0.000000e+00> : vector<16x128xf32>
    %57 = tpu.matmul %54, %56, %cst_34 {dimension_numbers = #tpu.dot_dimension_numbers<[1], [0], [0], [1], [0, 0, 1, 1], [], []>} : vector<16x32xbf16>, vector<32x128xbf16>, vector<16x128xf32> -> vector<16x128xf32>
    %58 = arith.addf %53, %57 : vector<16x128xf32>
    %59 = vector.extract_strided_slice %32 {offsets = [80, 0], sizes = [16, 32], strides = [1, 1]} : vector<432x32xbf16> to vector<16x32xbf16>
    %c5 = arith.constant 5 : index
    %c0_35 = arith.constant 0 : index
    %c0_36 = arith.constant 0 : index
    %60 = vector.load %arg5[%c5, %c0_35, %c0_36] : memref<27x32x128xbf16, #tpu.memory_space<vmem>>, vector<1x32x128xbf16>
    %61 = vector.shape_cast %60 : vector<1x32x128xbf16> to vector<32x128xbf16>
    %cst_37 = arith.constant dense<0.000000e+00> : vector<16x128xf32>
    %62 = tpu.matmul %59, %61, %cst_37 {dimension_numbers = #tpu.dot_dimension_numbers<[1], [0], [0], [1], [0, 0, 1, 1], [], []>} : vector<16x32xbf16>, vector<32x128xbf16>, vector<16x128xf32> -> vector<16x128xf32>
    %63 = arith.addf %58, %62 : vector<16x128xf32>
    %64 = vector.extract_strided_slice %32 {offsets = [96, 0], sizes = [16, 32], strides = [1, 1]} : vector<432x32xbf16> to vector<16x32xbf16>
    %c6 = arith.constant 6 : index
    %c0_38 = arith.constant 0 : index
    %c0_39 = arith.constant 0 : index
    %65 = vector.load %arg5[%c6, %c0_38, %c0_39] : memref<27x32x128xbf16, #tpu.memory_space<vmem>>, vector<1x32x128xbf16>
    %66 = vector.shape_cast %65 : vector<1x32x128xbf16> to vector<32x128xbf16>
    %cst_40 = arith.constant dense<0.000000e+00> : vector<16x128xf32>
    %67 = tpu.matmul %64, %66, %cst_40 {dimension_numbers = #tpu.dot_dimension_numbers<[1], [0], [0], [1], [0, 0, 1, 1], [], []>} : vector<16x32xbf16>, vector<32x128xbf16>, vector<16x128xf32> -> vector<16x128xf32>
    %68 = arith.addf %63, %67 : vector<16x128xf32>
    %69 = vector.extract_strided_slice %32 {offsets = [112, 0], sizes = [16, 32], strides = [1, 1]} : vector<432x32xbf16> to vector<16x32xbf16>
    %c7 = arith.constant 7 : index
    %c0_41 = arith.constant 0 : index
    %c0_42 = arith.constant 0 : index
    %70 = vector.load %arg5[%c7, %c0_41, %c0_42] : memref<27x32x128xbf16, #tpu.memory_space<vmem>>, vector<1x32x128xbf16>
    %71 = vector.shape_cast %70 : vector<1x32x128xbf16> to vector<32x128xbf16>
    %cst_43 = arith.constant dense<0.000000e+00> : vector<16x128xf32>
    %72 = tpu.matmul %69, %71, %cst_43 {dimension_numbers = #tpu.dot_dimension_numbers<[1], [0], [0], [1], [0, 0, 1, 1], [], []>} : vector<16x32xbf16>, vector<32x128xbf16>, vector<16x128xf32> -> vector<16x128xf32>
    %73 = arith.addf %68, %72 : vector<16x128xf32>
    %74 = vector.extract_strided_slice %32 {offsets = [128, 0], sizes = [16, 32], strides = [1, 1]} : vector<432x32xbf16> to vector<16x32xbf16>
    %c8 = arith.constant 8 : index
    %c0_44 = arith.constant 0 : index
    %c0_45 = arith.constant 0 : index
    %75 = vector.load %arg5[%c8, %c0_44, %c0_45] : memref<27x32x128xbf16, #tpu.memory_space<vmem>>, vector<1x32x128xbf16>
    %76 = vector.shape_cast %75 : vector<1x32x128xbf16> to vector<32x128xbf16>
    %cst_46 = arith.constant dense<0.000000e+00> : vector<16x128xf32>
    %77 = tpu.matmul %74, %76, %cst_46 {dimension_numbers = #tpu.dot_dimension_numbers<[1], [0], [0], [1], [0, 0, 1, 1], [], []>} : vector<16x32xbf16>, vector<32x128xbf16>, vector<16x128xf32> -> vector<16x128xf32>
    %78 = arith.addf %73, %77 : vector<16x128xf32>
    %79 = vector.extract_strided_slice %32 {offsets = [144, 0], sizes = [16, 32], strides = [1, 1]} : vector<432x32xbf16> to vector<16x32xbf16>
    %c9 = arith.constant 9 : index
    %c0_47 = arith.constant 0 : index
    %c0_48 = arith.constant 0 : index
    %80 = vector.load %arg5[%c9, %c0_47, %c0_48] : memref<27x32x128xbf16, #tpu.memory_space<vmem>>, vector<1x32x128xbf16>
    %81 = vector.shape_cast %80 : vector<1x32x128xbf16> to vector<32x128xbf16>
    %cst_49 = arith.constant dense<0.000000e+00> : vector<16x128xf32>
    %82 = tpu.matmul %79, %81, %cst_49 {dimension_numbers = #tpu.dot_dimension_numbers<[1], [0], [0], [1], [0, 0, 1, 1], [], []>} : vector<16x32xbf16>, vector<32x128xbf16>, vector<16x128xf32> -> vector<16x128xf32>
    %83 = arith.addf %78, %82 : vector<16x128xf32>
    %84 = vector.extract_strided_slice %32 {offsets = [160, 0], sizes = [16, 32], strides = [1, 1]} : vector<432x32xbf16> to vector<16x32xbf16>
    %c10 = arith.constant 10 : index
    %c0_50 = arith.constant 0 : index
    %c0_51 = arith.constant 0 : index
    %85 = vector.load %arg5[%c10, %c0_50, %c0_51] : memref<27x32x128xbf16, #tpu.memory_space<vmem>>, vector<1x32x128xbf16>
    %86 = vector.shape_cast %85 : vector<1x32x128xbf16> to vector<32x128xbf16>
    %cst_52 = arith.constant dense<0.000000e+00> : vector<16x128xf32>
    %87 = tpu.matmul %84, %86, %cst_52 {dimension_numbers = #tpu.dot_dimension_numbers<[1], [0], [0], [1], [0, 0, 1, 1], [], []>} : vector<16x32xbf16>, vector<32x128xbf16>, vector<16x128xf32> -> vector<16x128xf32>
    %88 = arith.addf %83, %87 : vector<16x128xf32>
    %89 = vector.extract_strided_slice %32 {offsets = [176, 0], sizes = [16, 32], strides = [1, 1]} : vector<432x32xbf16> to vector<16x32xbf16>
    %c11 = arith.constant 11 : index
    %c0_53 = arith.constant 0 : index
    %c0_54 = arith.constant 0 : index
    %90 = vector.load %arg5[%c11, %c0_53, %c0_54] : memref<27x32x128xbf16, #tpu.memory_space<vmem>>, vector<1x32x128xbf16>
    %91 = vector.shape_cast %90 : vector<1x32x128xbf16> to vector<32x128xbf16>
    %cst_55 = arith.constant dense<0.000000e+00> : vector<16x128xf32>
    %92 = tpu.matmul %89, %91, %cst_55 {dimension_numbers = #tpu.dot_dimension_numbers<[1], [0], [0], [1], [0, 0, 1, 1], [], []>} : vector<16x32xbf16>, vector<32x128xbf16>, vector<16x128xf32> -> vector<16x128xf32>
    %93 = arith.addf %88, %92 : vector<16x128xf32>
    %94 = vector.extract_strided_slice %32 {offsets = [192, 0], sizes = [16, 32], strides = [1, 1]} : vector<432x32xbf16> to vector<16x32xbf16>
    %c12 = arith.constant 12 : index
    %c0_56 = arith.constant 0 : index
    %c0_57 = arith.constant 0 : index
    %95 = vector.load %arg5[%c12, %c0_56, %c0_57] : memref<27x32x128xbf16, #tpu.memory_space<vmem>>, vector<1x32x128xbf16>
    %96 = vector.shape_cast %95 : vector<1x32x128xbf16> to vector<32x128xbf16>
    %cst_58 = arith.constant dense<0.000000e+00> : vector<16x128xf32>
    %97 = tpu.matmul %94, %96, %cst_58 {dimension_numbers = #tpu.dot_dimension_numbers<[1], [0], [0], [1], [0, 0, 1, 1], [], []>} : vector<16x32xbf16>, vector<32x128xbf16>, vector<16x128xf32> -> vector<16x128xf32>
    %98 = arith.addf %93, %97 : vector<16x128xf32>
    %99 = vector.extract_strided_slice %32 {offsets = [208, 0], sizes = [16, 32], strides = [1, 1]} : vector<432x32xbf16> to vector<16x32xbf16>
    %c13 = arith.constant 13 : index
    %c0_59 = arith.constant 0 : index
    %c0_60 = arith.constant 0 : index
    %100 = vector.load %arg5[%c13, %c0_59, %c0_60] : memref<27x32x128xbf16, #tpu.memory_space<vmem>>, vector<1x32x128xbf16>
    %101 = vector.shape_cast %100 : vector<1x32x128xbf16> to vector<32x128xbf16>
    %cst_61 = arith.constant dense<0.000000e+00> : vector<16x128xf32>
    %102 = tpu.matmul %99, %101, %cst_61 {dimension_numbers = #tpu.dot_dimension_numbers<[1], [0], [0], [1], [0, 0, 1, 1], [], []>} : vector<16x32xbf16>, vector<32x128xbf16>, vector<16x128xf32> -> vector<16x128xf32>
    %103 = arith.addf %98, %102 : vector<16x128xf32>
    %104 = vector.extract_strided_slice %32 {offsets = [224, 0], sizes = [16, 32], strides = [1, 1]} : vector<432x32xbf16> to vector<16x32xbf16>
    %c14 = arith.constant 14 : index
    %c0_62 = arith.constant 0 : index
    %c0_63 = arith.constant 0 : index
    %105 = vector.load %arg5[%c14, %c0_62, %c0_63] : memref<27x32x128xbf16, #tpu.memory_space<vmem>>, vector<1x32x128xbf16>
    %106 = vector.shape_cast %105 : vector<1x32x128xbf16> to vector<32x128xbf16>
    %cst_64 = arith.constant dense<0.000000e+00> : vector<16x128xf32>
    %107 = tpu.matmul %104, %106, %cst_64 {dimension_numbers = #tpu.dot_dimension_numbers<[1], [0], [0], [1], [0, 0, 1, 1], [], []>} : vector<16x32xbf16>, vector<32x128xbf16>, vector<16x128xf32> -> vector<16x128xf32>
    %108 = arith.addf %103, %107 : vector<16x128xf32>
    %109 = vector.extract_strided_slice %32 {offsets = [240, 0], sizes = [16, 32], strides = [1, 1]} : vector<432x32xbf16> to vector<16x32xbf16>
    %c15 = arith.constant 15 : index
    %c0_65 = arith.constant 0 : index
    %c0_66 = arith.constant 0 : index
    %110 = vector.load %arg5[%c15, %c0_65, %c0_66] : memref<27x32x128xbf16, #tpu.memory_space<vmem>>, vector<1x32x128xbf16>
    %111 = vector.shape_cast %110 : vector<1x32x128xbf16> to vector<32x128xbf16>
    %cst_67 = arith.constant dense<0.000000e+00> : vector<16x128xf32>
    %112 = tpu.matmul %109, %111, %cst_67 {dimension_numbers = #tpu.dot_dimension_numbers<[1], [0], [0], [1], [0, 0, 1, 1], [], []>} : vector<16x32xbf16>, vector<32x128xbf16>, vector<16x128xf32> -> vector<16x128xf32>
    %113 = arith.addf %108, %112 : vector<16x128xf32>
    %114 = vector.extract_strided_slice %32 {offsets = [256, 0], sizes = [16, 32], strides = [1, 1]} : vector<432x32xbf16> to vector<16x32xbf16>
    %c16 = arith.constant 16 : index
    %c0_68 = arith.constant 0 : index
    %c0_69 = arith.constant 0 : index
    %115 = vector.load %arg5[%c16, %c0_68, %c0_69] : memref<27x32x128xbf16, #tpu.memory_space<vmem>>, vector<1x32x128xbf16>
    %116 = vector.shape_cast %115 : vector<1x32x128xbf16> to vector<32x128xbf16>
    %cst_70 = arith.constant dense<0.000000e+00> : vector<16x128xf32>
    %117 = tpu.matmul %114, %116, %cst_70 {dimension_numbers = #tpu.dot_dimension_numbers<[1], [0], [0], [1], [0, 0, 1, 1], [], []>} : vector<16x32xbf16>, vector<32x128xbf16>, vector<16x128xf32> -> vector<16x128xf32>
    %118 = arith.addf %113, %117 : vector<16x128xf32>
    %119 = vector.extract_strided_slice %32 {offsets = [272, 0], sizes = [16, 32], strides = [1, 1]} : vector<432x32xbf16> to vector<16x32xbf16>
    %c17 = arith.constant 17 : index
    %c0_71 = arith.constant 0 : index
    %c0_72 = arith.constant 0 : index
    %120 = vector.load %arg5[%c17, %c0_71, %c0_72] : memref<27x32x128xbf16, #tpu.memory_space<vmem>>, vector<1x32x128xbf16>
    %121 = vector.shape_cast %120 : vector<1x32x128xbf16> to vector<32x128xbf16>
    %cst_73 = arith.constant dense<0.000000e+00> : vector<16x128xf32>
    %122 = tpu.matmul %119, %121, %cst_73 {dimension_numbers = #tpu.dot_dimension_numbers<[1], [0], [0], [1], [0, 0, 1, 1], [], []>} : vector<16x32xbf16>, vector<32x128xbf16>, vector<16x128xf32> -> vector<16x128xf32>
    %123 = arith.addf %118, %122 : vector<16x128xf32>
    %124 = vector.extract_strided_slice %32 {offsets = [288, 0], sizes = [16, 32], strides = [1, 1]} : vector<432x32xbf16> to vector<16x32xbf16>
    %c18 = arith.constant 18 : index
    %c0_74 = arith.constant 0 : index
    %c0_75 = arith.constant 0 : index
    %125 = vector.load %arg5[%c18, %c0_74, %c0_75] : memref<27x32x128xbf16, #tpu.memory_space<vmem>>, vector<1x32x128xbf16>
    %126 = vector.shape_cast %125 : vector<1x32x128xbf16> to vector<32x128xbf16>
    %cst_76 = arith.constant dense<0.000000e+00> : vector<16x128xf32>
    %127 = tpu.matmul %124, %126, %cst_76 {dimension_numbers = #tpu.dot_dimension_numbers<[1], [0], [0], [1], [0, 0, 1, 1], [], []>} : vector<16x32xbf16>, vector<32x128xbf16>, vector<16x128xf32> -> vector<16x128xf32>
    %128 = arith.addf %123, %127 : vector<16x128xf32>
    %129 = vector.extract_strided_slice %32 {offsets = [304, 0], sizes = [16, 32], strides = [1, 1]} : vector<432x32xbf16> to vector<16x32xbf16>
    %c19 = arith.constant 19 : index
    %c0_77 = arith.constant 0 : index
    %c0_78 = arith.constant 0 : index
    %130 = vector.load %arg5[%c19, %c0_77, %c0_78] : memref<27x32x128xbf16, #tpu.memory_space<vmem>>, vector<1x32x128xbf16>
    %131 = vector.shape_cast %130 : vector<1x32x128xbf16> to vector<32x128xbf16>
    %cst_79 = arith.constant dense<0.000000e+00> : vector<16x128xf32>
    %132 = tpu.matmul %129, %131, %cst_79 {dimension_numbers = #tpu.dot_dimension_numbers<[1], [0], [0], [1], [0, 0, 1, 1], [], []>} : vector<16x32xbf16>, vector<32x128xbf16>, vector<16x128xf32> -> vector<16x128xf32>
    %133 = arith.addf %128, %132 : vector<16x128xf32>
    %134 = vector.extract_strided_slice %32 {offsets = [320, 0], sizes = [16, 32], strides = [1, 1]} : vector<432x32xbf16> to vector<16x32xbf16>
    %c20 = arith.constant 20 : index
    %c0_80 = arith.constant 0 : index
    %c0_81 = arith.constant 0 : index
    %135 = vector.load %arg5[%c20, %c0_80, %c0_81] : memref<27x32x128xbf16, #tpu.memory_space<vmem>>, vector<1x32x128xbf16>
    %136 = vector.shape_cast %135 : vector<1x32x128xbf16> to vector<32x128xbf16>
    %cst_82 = arith.constant dense<0.000000e+00> : vector<16x128xf32>
    %137 = tpu.matmul %134, %136, %cst_82 {dimension_numbers = #tpu.dot_dimension_numbers<[1], [0], [0], [1], [0, 0, 1, 1], [], []>} : vector<16x32xbf16>, vector<32x128xbf16>, vector<16x128xf32> -> vector<16x128xf32>
    %138 = arith.addf %133, %137 : vector<16x128xf32>
    %139 = vector.extract_strided_slice %32 {offsets = [336, 0], sizes = [16, 32], strides = [1, 1]} : vector<432x32xbf16> to vector<16x32xbf16>
    %c21 = arith.constant 21 : index
    %c0_83 = arith.constant 0 : index
    %c0_84 = arith.constant 0 : index
    %140 = vector.load %arg5[%c21, %c0_83, %c0_84] : memref<27x32x128xbf16, #tpu.memory_space<vmem>>, vector<1x32x128xbf16>
    %141 = vector.shape_cast %140 : vector<1x32x128xbf16> to vector<32x128xbf16>
    %cst_85 = arith.constant dense<0.000000e+00> : vector<16x128xf32>
    %142 = tpu.matmul %139, %141, %cst_85 {dimension_numbers = #tpu.dot_dimension_numbers<[1], [0], [0], [1], [0, 0, 1, 1], [], []>} : vector<16x32xbf16>, vector<32x128xbf16>, vector<16x128xf32> -> vector<16x128xf32>
    %143 = arith.addf %138, %142 : vector<16x128xf32>
    %144 = vector.extract_strided_slice %32 {offsets = [352, 0], sizes = [16, 32], strides = [1, 1]} : vector<432x32xbf16> to vector<16x32xbf16>
    %c22 = arith.constant 22 : index
    %c0_86 = arith.constant 0 : index
    %c0_87 = arith.constant 0 : index
    %145 = vector.load %arg5[%c22, %c0_86, %c0_87] : memref<27x32x128xbf16, #tpu.memory_space<vmem>>, vector<1x32x128xbf16>
    %146 = vector.shape_cast %145 : vector<1x32x128xbf16> to vector<32x128xbf16>
    %cst_88 = arith.constant dense<0.000000e+00> : vector<16x128xf32>
    %147 = tpu.matmul %144, %146, %cst_88 {dimension_numbers = #tpu.dot_dimension_numbers<[1], [0], [0], [1], [0, 0, 1, 1], [], []>} : vector<16x32xbf16>, vector<32x128xbf16>, vector<16x128xf32> -> vector<16x128xf32>
    %148 = arith.addf %143, %147 : vector<16x128xf32>
    %149 = vector.extract_strided_slice %32 {offsets = [368, 0], sizes = [16, 32], strides = [1, 1]} : vector<432x32xbf16> to vector<16x32xbf16>
    %c23 = arith.constant 23 : index
    %c0_89 = arith.constant 0 : index
    %c0_90 = arith.constant 0 : index
    %150 = vector.load %arg5[%c23, %c0_89, %c0_90] : memref<27x32x128xbf16, #tpu.memory_space<vmem>>, vector<1x32x128xbf16>
    %151 = vector.shape_cast %150 : vector<1x32x128xbf16> to vector<32x128xbf16>
    %cst_91 = arith.constant dense<0.000000e+00> : vector<16x128xf32>
    %152 = tpu.matmul %149, %151, %cst_91 {dimension_numbers = #tpu.dot_dimension_numbers<[1], [0], [0], [1], [0, 0, 1, 1], [], []>} : vector<16x32xbf16>, vector<32x128xbf16>, vector<16x128xf32> -> vector<16x128xf32>
    %153 = arith.addf %148, %152 : vector<16x128xf32>
    %154 = vector.extract_strided_slice %32 {offsets = [384, 0], sizes = [16, 32], strides = [1, 1]} : vector<432x32xbf16> to vector<16x32xbf16>
    %c24 = arith.constant 24 : index
    %c0_92 = arith.constant 0 : index
    %c0_93 = arith.constant 0 : index
    %155 = vector.load %arg5[%c24, %c0_92, %c0_93] : memref<27x32x128xbf16, #tpu.memory_space<vmem>>, vector<1x32x128xbf16>
    %156 = vector.shape_cast %155 : vector<1x32x128xbf16> to vector<32x128xbf16>
    %cst_94 = arith.constant dense<0.000000e+00> : vector<16x128xf32>
    %157 = tpu.matmul %154, %156, %cst_94 {dimension_numbers = #tpu.dot_dimension_numbers<[1], [0], [0], [1], [0, 0, 1, 1], [], []>} : vector<16x32xbf16>, vector<32x128xbf16>, vector<16x128xf32> -> vector<16x128xf32>
    %158 = arith.addf %153, %157 : vector<16x128xf32>
    %159 = vector.extract_strided_slice %32 {offsets = [400, 0], sizes = [16, 32], strides = [1, 1]} : vector<432x32xbf16> to vector<16x32xbf16>
    %c25 = arith.constant 25 : index
    %c0_95 = arith.constant 0 : index
    %c0_96 = arith.constant 0 : index
    %160 = vector.load %arg5[%c25, %c0_95, %c0_96] : memref<27x32x128xbf16, #tpu.memory_space<vmem>>, vector<1x32x128xbf16>
    %161 = vector.shape_cast %160 : vector<1x32x128xbf16> to vector<32x128xbf16>
    %cst_97 = arith.constant dense<0.000000e+00> : vector<16x128xf32>
    %162 = tpu.matmul %159, %161, %cst_97 {dimension_numbers = #tpu.dot_dimension_numbers<[1], [0], [0], [1], [0, 0, 1, 1], [], []>} : vector<16x32xbf16>, vector<32x128xbf16>, vector<16x128xf32> -> vector<16x128xf32>
    %163 = arith.addf %158, %162 : vector<16x128xf32>
    %164 = vector.extract_strided_slice %32 {offsets = [416, 0], sizes = [16, 32], strides = [1, 1]} : vector<432x32xbf16> to vector<16x32xbf16>
    %c26 = arith.constant 26 : index
    %c0_98 = arith.constant 0 : index
    %c0_99 = arith.constant 0 : index
    %165 = vector.load %arg5[%c26, %c0_98, %c0_99] : memref<27x32x128xbf16, #tpu.memory_space<vmem>>, vector<1x32x128xbf16>
    %166 = vector.shape_cast %165 : vector<1x32x128xbf16> to vector<32x128xbf16>
    %cst_100 = arith.constant dense<0.000000e+00> : vector<16x128xf32>
    %167 = tpu.matmul %164, %166, %cst_100 {dimension_numbers = #tpu.dot_dimension_numbers<[1], [0], [0], [1], [0, 0, 1, 1], [], []>} : vector<16x32xbf16>, vector<32x128xbf16>, vector<16x128xf32> -> vector<16x128xf32>
    %168 = arith.addf %163, %167 : vector<16x128xf32>
    %cst_101 = arith.constant dense<0.000000e+00> : vector<128xf32>
    %169 = vector.multi_reduction <add>, %168, %cst_101 [0] : vector<16x128xf32> to vector<128xf32>
    %170 = vector.shape_cast %169 : vector<128xf32> to vector<1x128xf32>
    %cst_102 = arith.constant 6.250000e-02 : f32
    %171 = vector.broadcast %cst_102 : f32 to vector<1x128xf32>
    %172 = arith.mulf %170, %171 : vector<1x128xf32>
    %173 = vector.broadcast %172 : vector<1x128xf32> to vector<16x128xf32>
    %174 = arith.subf %168, %173 : vector<16x128xf32>
    %175 = arith.mulf %174, %174 : vector<16x128xf32>
    %cst_103 = arith.constant dense<0.000000e+00> : vector<128xf32>
    %176 = vector.multi_reduction <add>, %175, %cst_103 [0] : vector<16x128xf32> to vector<128xf32>
    %177 = vector.shape_cast %176 : vector<128xf32> to vector<1x128xf32>
    %cst_104 = arith.constant 6.250000e-02 : f32
    %178 = vector.broadcast %cst_104 : f32 to vector<1x128xf32>
    %179 = arith.mulf %177, %178 : vector<1x128xf32>
    %cst_105 = arith.constant 9.99999974E-6 : f32
    %180 = vector.broadcast %cst_105 : f32 to vector<1x128xf32>
    %181 = arith.addf %179, %180 : vector<1x128xf32>
    %182 = math.rsqrt %181 : vector<1x128xf32>
    %c0_106 = arith.constant 0 : index
    %c0_107 = arith.constant 0 : index
    %183 = vector.load %arg6[%c0_106, %c0_107] : memref<1x128xf32, #tpu.memory_space<vmem>>, vector<1x128xf32>
    %184 = arith.mulf %182, %183 : vector<1x128xf32>
    %185 = vector.broadcast %184 : vector<1x128xf32> to vector<16x128xf32>
    %186 = arith.mulf %174, %185 : vector<16x128xf32>
    %c0_108 = arith.constant 0 : index
    %c0_109 = arith.constant 0 : index
    %187 = vector.load %arg7[%c0_108, %c0_109] : memref<1x128xf32, #tpu.memory_space<vmem>>, vector<1x128xf32>
    %188 = vector.broadcast %187 : vector<1x128xf32> to vector<16x128xf32>
    %189 = arith.addf %186, %188 : vector<16x128xf32>
    %cst_110 = arith.constant 0.000000e+00 : f32
    %190 = vector.broadcast %cst_110 : f32 to vector<16x128xf32>
    %191 = arith.maximumf %189, %190 : vector<16x128xf32>
    %192 = vector.shape_cast %191 : vector<16x128xf32> to vector<1x16x128xf32>
    %cst_111 = arith.constant dense<0.000000e+00> : vector<1xf32>
    %193 = vector.multi_reduction <add>, %192, %cst_111 [1, 2] : vector<1x16x128xf32> to vector<1xf32>
    %194 = vector.shape_cast %193 : vector<1xf32> to vector<1x1x1xf32>
    %195 = vector.extract %194[0, 0, 0] : f32 from vector<1x1x1xf32>
    %cst_112 = arith.constant 0.00130208337 : f32
    %196 = arith.mulf %195, %cst_112 : f32
    %197 = vector.broadcast %196 : f32 to vector<16x128xf32>
    %198 = arith.subf %191, %197 : vector<16x128xf32>
    %199 = tpu.iota {dimensions = array<i32: 1>} : vector<16x128xi32>
    %c48_i32 = arith.constant 48 : i32
    %200 = vector.broadcast %c48_i32 : i32 to vector<16x128xi32>
    %201 = arith.cmpi slt, %199, %200 : vector<16x128xi32>
    %cst_113 = arith.constant 0.000000e+00 : f32
    %202 = vector.broadcast %cst_113 : f32 to vector<16x128xf32>
    %203 = arith.select %201, %198, %202 : vector<16x128xi1>, vector<16x128xf32>
    %204 = arith.mulf %203, %203 : vector<16x128xf32>
    %205 = vector.shape_cast %204 : vector<16x128xf32> to vector<1x16x128xf32>
    %cst_114 = arith.constant dense<0.000000e+00> : vector<1xf32>
    %206 = vector.multi_reduction <add>, %205, %cst_114 [1, 2] : vector<1x16x128xf32> to vector<1xf32>
    %207 = vector.shape_cast %206 : vector<1xf32> to vector<1x1x1xf32>
    %208 = vector.extract %207[0, 0, 0] : f32 from vector<1x1x1xf32>
    %cst_115 = arith.constant 0.00130378094 : f32
    %209 = arith.mulf %208, %cst_115 : f32
    %cst_116 = arith.constant 1.000000e+00 : f32
    %210 = arith.divf %cst_116, %209 : f32
    %211 = vector.broadcast %210 : f32 to vector<16x128xf32>
    %212 = arith.mulf %198, %211 : vector<16x128xf32>
    %c0_117 = arith.constant 0 : index
    %c0_118 = arith.constant 0 : index
    %213 = vector.load %arg15[%c0_117, %c0_118] : memref<16x128xf32, #tpu.memory_space<vmem>>, vector<16x128xf32>
    tpu.vector_store %arg15[%c0_117, %c0_118], %212 {strides = array<i32>} : memref<16x128xf32, #tpu.memory_space<vmem>>, vector<16x128xf32>,
    %214 = vector.shape_cast %191 : vector<16x128xf32> to vector<2x8x128xf32>
    %215 = vector.extract_strided_slice %214 {offsets = [0, 0, 0], sizes = [2, 1, 128], strides = [1, 1, 1]} : vector<2x8x128xf32> to vector<2x1x128xf32>
    %216 = vector.shape_cast %215 : vector<2x1x128xf32> to vector<2x128xf32>
    %217 = vector.extract_strided_slice %214 {offsets = [0, 1, 0], sizes = [2, 1, 128], strides = [1, 1, 1]} : vector<2x8x128xf32> to vector<2x1x128xf32>
    %218 = vector.shape_cast %217 : vector<2x1x128xf32> to vector<2x128xf32>
    %219 = vector.extract_strided_slice %214 {offsets = [0, 2, 0], sizes = [2, 1, 128], strides = [1, 1, 1]} : vector<2x8x128xf32> to vector<2x1x128xf32>
    %220 = vector.shape_cast %219 : vector<2x1x128xf32> to vector<2x128xf32>
    %221 = vector.extract_strided_slice %214 {offsets = [0, 3, 0], sizes = [2, 1, 128], strides = [1, 1, 1]} : vector<2x8x128xf32> to vector<2x1x128xf32>
    %222 = vector.shape_cast %221 : vector<2x1x128xf32> to vector<2x128xf32>
    %223 = vector.extract_strided_slice %214 {offsets = [0, 4, 0], sizes = [2, 1, 128], strides = [1, 1, 1]} : vector<2x8x128xf32> to vector<2x1x128xf32>
    %224 = vector.shape_cast %223 : vector<2x1x128xf32> to vector<2x128xf32>
    %225 = vector.extract_strided_slice %214 {offsets = [0, 5, 0], sizes = [2, 1, 128], strides = [1, 1, 1]} : vector<2x8x128xf32> to vector<2x1x128xf32>
    %226 = vector.shape_cast %225 : vector<2x1x128xf32> to vector<2x128xf32>
    %227 = vector.extract_strided_slice %214 {offsets = [0, 6, 0], sizes = [2, 1, 128], strides = [1, 1, 1]} : vector<2x8x128xf32> to vector<2x1x128xf32>
    %228 = vector.shape_cast %227 : vector<2x1x128xf32> to vector<2x128xf32>
    %229 = vector.extract_strided_slice %214 {offsets = [0, 7, 0], sizes = [2, 1, 128], strides = [1, 1, 1]} : vector<2x8x128xf32> to vector<2x1x128xf32>
    %230 = vector.shape_cast %229 : vector<2x1x128xf32> to vector<2x128xf32>
    %231 = tpu.concatenate %216, %218, %220, %222, %224, %226, %228, %230 in 1 : vector<2x128xf32>, vector<2x128xf32>, vector<2x128xf32>, vector<2x128xf32>, vector<2x128xf32>, vector<2x128xf32>, vector<2x128xf32>, vector<2x128xf32> -> vector<2x1024xf32>
    %c0_119 = arith.constant 0 : index
    %c0_120 = arith.constant 0 : index
    %232 = vector.load %arg8[%c0_119, %c0_120] : memref<1024x128xf32, #tpu.memory_space<vmem>>, vector<1024x128xf32>
    %cst_121 = arith.constant dense<0.000000e+00> : vector<2x128xf32>
    %233 = tpu.matmul %231, %232, %cst_121 {dimension_numbers = #tpu.dot_dimension_numbers<[1], [0], [0], [1], [0, 0, 1, 1], [], []>} : vector<2x1024xf32>, vector<1024x128xf32>, vector<2x128xf32> -> vector<2x128xf32>
    %c0_122 = arith.constant 0 : index
    %c0_123 = arith.constant 0 : index
    %234 = vector.load %arg9[%c0_122, %c0_123] : memref<1x128xf32, #tpu.memory_space<vmem>>, vector<1x128xf32>
    %235 = vector.broadcast %234 : vector<1x128xf32> to vector<2x128xf32>
    %236 = arith.addf %233, %235 : vector<2x128xf32>
    %cst_124 = arith.constant 0.000000e+00 : f32
    %237 = vector.broadcast %cst_124 : f32 to vector<2x128xf32>
    %238 = arith.maximumf %236, %237 : vector<2x128xf32>
    %c0_125 = arith.constant 0 : index
    %c0_126 = arith.constant 0 : index
    %239 = vector.load %arg10[%c0_125, %c0_126] : memref<128x128xf32, #tpu.memory_space<vmem>>, vector<128x128xf32>
    %cst_127 = arith.constant dense<0.000000e+00> : vector<2x128xf32>
    %240 = tpu.matmul %238, %239, %cst_127 {dimension_numbers = #tpu.dot_dimension_numbers<[1], [0], [0], [1], [0, 0, 1, 1], [], []>} : vector<2x128xf32>, vector<128x128xf32>, vector<2x128xf32> -> vector<2x128xf32>
    %c0_128 = arith.constant 0 : index
    %c0_129 = arith.constant 0 : index
    %241 = vector.load %arg11[%c0_128, %c0_129] : memref<1x128xf32, #tpu.memory_space<vmem>>, vector<1x128xf32>
    %242 = vector.broadcast %241 : vector<1x128xf32> to vector<2x128xf32>
    %243 = arith.addf %240, %242 : vector<2x128xf32>
    %cst_130 = arith.constant 0.000000e+00 : f32
    %244 = vector.broadcast %cst_130 : f32 to vector<2x128xf32>
    %245 = arith.maximumf %243, %244 : vector<2x128xf32>
    %c0_131 = arith.constant 0 : index
    %c0_132 = arith.constant 0 : index
    %246 = vector.load %arg12[%c0_131, %c0_132] : memref<128x128xf32, #tpu.memory_space<vmem>>, vector<128x128xf32>
    %cst_133 = arith.constant dense<0.000000e+00> : vector<2x128xf32>
    %247 = tpu.matmul %245, %246, %cst_133 {dimension_numbers = #tpu.dot_dimension_numbers<[1], [0], [0], [1], [0, 0, 1, 1], [], []>} : vector<2x128xf32>, vector<128x128xf32>, vector<2x128xf32> -> vector<2x128xf32>
    %c0_134 = arith.constant 0 : index
    %c0_135 = arith.constant 0 : index
    %248 = vector.load %arg13[%c0_134, %c0_135] : memref<1x128xf32, #tpu.memory_space<vmem>>, vector<1x128xf32>
    %249 = vector.broadcast %248 : vector<1x128xf32> to vector<2x128xf32>
    %250 = arith.addf %247, %249 : vector<2x128xf32>
    %c0_136 = arith.constant 0 : index
    %c0_137 = arith.constant 0 : index
    %251 = vector.load %arg14[%c0_136, %c0_137] : memref<2x128xf32, #tpu.memory_space<vmem>>, vector<2x128xf32>
    tpu.vector_store %arg14[%c0_136, %c0_137], %250 {strides = array<i32>} : memref<2x128xf32, #tpu.memory_space<vmem>>, vector<2x128xf32>,
    return
  }
}

</mosaic_0001>

<llo_original>
// kernel: _lambda_.1
$region0: #{_lambda_.1}
  #allocation0 [shape = 'u32[]', space=smem, size = 0x4, offset = 0x4, fixed_abs, tag = 'smem constant byte address 0x4 - core index']
  #allocation1 [shape = 'u32[144,128]{1,0:T(1,128)}', space=vmem, size = 0x12000, scoped, tag = 'internal scratch']
  %s0 = inlined_call_operand.vmem [shape: bf16[432,128], index: 0, kind: input, shape index: {}]
  %s1 = inlined_call_operand.vmem [shape: bf16[432,128], index: 1, kind: input, shape index: {}]
  %s2 = inlined_call_operand.vmem [shape: bf16[128,128], index: 2, kind: input, shape index: {}]
  %s3 = inlined_call_operand.vmem [shape: f32[1,128], index: 3, kind: input, shape index: {}, may-alias: {3,6}]
  %s4 = inlined_call_operand.vmem [shape: f32[1,128], index: 4, kind: input, shape index: {}, may-alias: {4,7,13}]
  %s5 = inlined_call_operand.vmem [shape: bf16[27,32,128], index: 5, kind: input, shape index: {}]
  %s6 = inlined_call_operand.vmem [shape: f32[1,128], index: 6, kind: input, shape index: {}, may-alias: {3,6}]
  %s7 = inlined_call_operand.vmem [shape: f32[1,128], index: 7, kind: input, shape index: {}, may-alias: {4,7,13}]
  %s8 = inlined_call_operand.vmem [shape: f32[1024,128], index: 8, kind: input, shape index: {}]
  %s9 = inlined_call_operand.vmem [shape: f32[1,128], index: 9, kind: input, shape index: {}]
  %s10 = inlined_call_operand.vmem [shape: f32[128,128], index: 10, kind: input, shape index: {}]
  %s11 = inlined_call_operand.vmem [shape: f32[1,128], index: 11, kind: input, shape index: {}]
  %s12 = inlined_call_operand.vmem [shape: f32[128,128], index: 12, kind: input, shape index: {}]
  %s13 = inlined_call_operand.vmem [shape: f32[1,128], index: 13, kind: input, shape index: {}, may-alias: {4,7,13}]
  %s14 = inlined_call_operand.hbm [shape: f32[2,128], index: 14, kind: output, shape index: {0}]
  %s15 = inlined_call_operand.hbm [shape: f32[16,128], index: 15, kind: output, shape index: {1}]
  %16 = xla_tuple %s14, %s15
  %s17 = sld [smem:[#allocation0]]
  $region74: #{_lambda_.1} parent=0
    _
  %s19 = ssub.s32 1, %s17
  %s20 = scalar_select 0, %s19, %s17
  $region1: #{_lambda_.1} parent=0
    #allocation2 [shape = 'u8[1024]{0}', space=vmem, size = 0x400, scoped, tag = 'output window, operand 0, single buffered']
    #allocation3 [shape = 's32[1]{0}', space=sflag, size = 0x4, scoped, tag = 'scoped memory for _lambda_.1']
    #allocation4 [shape = 'u8[8192]{0}', space=vmem, size = 0x2000, scoped, tag = 'output window, operand 1, single buffered']
    #allocation5 [shape = 's32[1]{0}', space=sflag, size = 0x4, scoped, tag = 'scoped memory for _lambda_.1']
    %21 = vsyncpa [#allocation3], 0
    %22 = vsyncpa [#allocation5], 0
    // Predicated region
    $region2: #{_lambda_.1} parent=1 // pred_check
      _
    $region3: #{_lambda_.1} parent=1 // pred_check_branch
      %24 = sbr.rel (0) target = $region5
    $region4: #{_lambda_.1} parent=1 // pred_region
      _
    $region5: #{_lambda_.1} parent=1 // pred_fallthru
      _
    // Predicated region
    $region6: #{_lambda_.1} parent=1 // pred_check
      _
    $region7: #{_lambda_.1} parent=1 // pred_check_branch
      %26 = sbr.rel (0) target = $region9
    $region8: #{_lambda_.1} parent=1 // pred_region
      _
    $region9: #{_lambda_.1} parent=1 // pred_fallthru
      _
    // Predicated region
    $region10: #{_lambda_.1} parent=1 // pred_check
      _
    $region11: #{_lambda_.1} parent=1 // pred_check_branch
      %28 = sbr.rel (0) target = $region13
    $region12: #{_lambda_.1} parent=1 // pred_region
      _
    $region13: #{_lambda_.1} parent=1 // pred_fallthru
      _
    // Predicated region
    $region14: #{_lambda_.1} parent=1 // pred_check
      _
    $region15: #{_lambda_.1} parent=1 // pred_check_branch
      %30 = sbr.rel (0) target = $region17
    $region16: #{_lambda_.1} parent=1 // pred_region
      _
    $region17: #{_lambda_.1} parent=1 // pred_fallthru
      _
    // Predicated region
    $region18: #{_lambda_.1} parent=1 // pred_check
      _
    $region19: #{_lambda_.1} parent=1 // pred_check_branch
      %32 = sbr.rel (0) target = $region21
    $region20: #{_lambda_.1} parent=1 // pred_region
      _
    $region21: #{_lambda_.1} parent=1 // pred_fallthru
      _
    // Predicated region
    $region22: #{_lambda_.1} parent=1 // pred_check
      _
    $region23: #{_lambda_.1} parent=1 // pred_check_branch
      %34 = sbr.rel (0) target = $region25
    $region24: #{_lambda_.1} parent=1 // pred_region
      _
    $region25: #{_lambda_.1} parent=1 // pred_fallthru
      _
    // Predicated region
    $region26: #{_lambda_.1} parent=1 // pred_check
      _
    $region27: #{_lambda_.1} parent=1 // pred_check_branch
      %36 = sbr.rel (0) target = $region29
    $region28: #{_lambda_.1} parent=1 // pred_region
      _
    $region29: #{_lambda_.1} parent=1 // pred_fallthru
      _
    // Predicated region
    $region30: #{_lambda_.1} parent=1 // pred_check
      _
    $region31: #{_lambda_.1} parent=1 // pred_check_branch
      %38 = sbr.rel (0) target = $region33
    $region32: #{_lambda_.1} parent=1 // pred_region
      _
    $region33: #{_lambda_.1} parent=1 // pred_fallthru
      _
    // Predicated region
    $region34: #{_lambda_.1} parent=1 // pred_check
      _
    $region35: #{_lambda_.1} parent=1 // pred_check_branch
      %40 = sbr.rel (0) target = $region37
    $region36: #{_lambda_.1} parent=1 // pred_region
      _
    $region37: #{_lambda_.1} parent=1 // pred_fallthru
      _
    // Predicated region
    $region38: #{_lambda_.1} parent=1 // pred_check
      _
    $region39: #{_lambda_.1} parent=1 // pred_check_branch
      %42 = sbr.rel (0) target = $region41
    $region40: #{_lambda_.1} parent=1 // pred_region
      _
    $region41: #{_lambda_.1} parent=1 // pred_fallthru
      _
    // Predicated region
    $region42: #{_lambda_.1} parent=1 // pred_check
      _
    $region43: #{_lambda_.1} parent=1 // pred_check_branch
      %44 = sbr.rel (0) target = $region45
    $region44: #{_lambda_.1} parent=1 // pred_region
      _
    $region45: #{_lambda_.1} parent=1 // pred_fallthru
      _
    // Predicated region
    $region46: #{_lambda_.1} parent=1 // pred_check
      _
    $region47: #{_lambda_.1} parent=1 // pred_check_branch
      %46 = sbr.rel (0) target = $region49
    $region48: #{_lambda_.1} parent=1 // pred_region
      _
    $region49: #{_lambda_.1} parent=1 // pred_fallthru
      _
    // Predicated region
    $region50: #{_lambda_.1} parent=1 // pred_check
      _
    $region51: #{_lambda_.1} parent=1 // pred_check_branch
      %48 = sbr.rel (0) target = $region53
    $region52: #{_lambda_.1} parent=1 // pred_region
      _
    $region53: #{_lambda_.1} parent=1 // pred_fallthru
      _
    // Predicated region
    $region54: #{_lambda_.1} parent=1 // pred_check
      _
    $region55: #{_lambda_.1} parent=1 // pred_check_branch
      %50 = sbr.rel (0) target = $region57
    $region56: #{_lambda_.1} parent=1 // pred_region
      _
    $region57: #{_lambda_.1} parent=1 // pred_fallthru
      _
    %v52 = vld [vmem:[%s0] sm:$0xf]
    %v53 = vld [vmem:[%s0 + $0x4] sm:$0xf]
    %v54 = vld [vmem:[%s0 + $0x8] sm:$0xf]
    %v55 = vld [vmem:[%s0 + $0xc] sm:$0xf]
    %v56 = vld [vmem:[%s0 + $0x10] sm:$0xf]
    %v57 = vld [vmem:[%s0 + $0x14] sm:$0xf]
    %v58 = vld [vmem:[%s0 + $0x18] sm:$0xf]
    %v59 = vld [vmem:[%s0 + $0x1c] sm:$0xf]
    %v60 = vld [vmem:[%s0 + $0x20] sm:$0xf]
    %v61 = vld [vmem:[%s0 + $0x24] sm:$0xf]
    %v62 = vld [vmem:[%s0 + $0x28] sm:$0xf]
    %v63 = vld [vmem:[%s0 + $0x2c] sm:$0xf]
    %v64 = vld [vmem:[%s0 + $0x30] sm:$0xf]
    %v65 = vld [vmem:[%s0 + $0x34] sm:$0xf]
    %v66 = vld [vmem:[%s0 + $0x38] sm:$0xf]
    %v67 = vld [vmem:[%s0 + $0x3c] sm:$0xf]
    %v68 = vld [vmem:[%s0 + $0x40] sm:$0xf]
    %v69 = vld [vmem:[%s0 + $0x44] sm:$0xf]
    %v70 = vld [vmem:[%s0 + $0x48] sm:$0xf]
    %v71 = vld [vmem:[%s0 + $0x4c] sm:$0xf]
    %v72 = vld [vmem:[%s0 + $0x50] sm:$0xf]
    %v73 = vld [vmem:[%s0 + $0x54] sm:$0xf]
    %v74 = vld [vmem:[%s0 + $0x58] sm:$0xf]
    %v75 = vld [vmem:[%s0 + $0x5c] sm:$0xf]
    %v76 = vld [vmem:[%s0 + $0x60] sm:$0xf]
    %v77 = vld [vmem:[%s0 + $0x64] sm:$0xf]
    %v78 = vld [vmem:[%s0 + $0x68] sm:$0xf]
    %v79 = vld [vmem:[%s0 + $0x6c] sm:$0xf]
    %v80 = vld [vmem:[%s0 + $0x70] sm:$0xf]
    %v81 = vld [vmem:[%s0 + $0x74] sm:$0xf]
    %v82 = vld [vmem:[%s0 + $0x78] sm:$0xf]
    %v83 = vld [vmem:[%s0 + $0x7c] sm:$0xf]
    %v84 = vld [vmem:[%s0 + $0x80] sm:$0xf]
    %v85 = vld [vmem:[%s0 + $0x84] sm:$0xf]
    %v86 = vld [vmem:[%s0 + $0x88] sm:$0xf]
    %v87 = vld [vmem:[%s0 + $0x8c] sm:$0xf]
    %v88 = vld [vmem:[%s0 + $0x90] sm:$0xf]
    %v89 = vld [vmem:[%s0 + $0x94] sm:$0xf]
    %v90 = vld [vmem:[%s0 + $0x98] sm:$0xf]
    %v91 = vld [vmem:[%s0 + $0x9c] sm:$0xf]
    %v92 = vld [vmem:[%s0 + $0xa0] sm:$0xf]
    %v93 = vld [vmem:[%s0 + $0xa4] sm:$0xf]
    %v94 = vld [vmem:[%s0 + $0xa8] sm:$0xf]
    %v95 = vld [vmem:[%s0 + $0xac] sm:$0xf]
    %v96 = vld [vmem:[%s0 + $0xb0] sm:$0xf]
    %v97 = vld [vmem:[%s0 + $0xb4] sm:$0xf]
    %v98 = vld [vmem:[%s0 + $0xb8] sm:$0xf]
    %v99 = vld [vmem:[%s0 + $0xbc] sm:$0xf]
    %v100 = vld [vmem:[%s0 + $0xc0] sm:$0xf]
    %v101 = vld [vmem:[%s0 + $0xc4] sm:$0xf]
    %v102 = vld [vmem:[%s0 + $0xc8] sm:$0xf]
    %v103 = vld [vmem:[%s0 + $0xcc] sm:$0xf]
    %v104 = vld [vmem:[%s0 + $0xd0] sm:$0xf]
    %v105 = vld [vmem:[%s0 + $0xd4] sm:$0xf]
    %v106 = vld [vmem:[%s2] sm:$0xf]
    %v107 = vld [vmem:[%s2 + $0x4] sm:$0xf]
    %v108 = vld [vmem:[%s2 + $0x8] sm:$0xf]
    %v109 = vld [vmem:[%s2 + $0xc] sm:$0xf]
    %v110 = vld [vmem:[%s2 + $0x10] sm:$0xf]
    %v111 = vld [vmem:[%s2 + $0x14] sm:$0xf]
    %v112 = vld [vmem:[%s2 + $0x18] sm:$0xf]
    %v113 = vld [vmem:[%s2 + $0x1c] sm:$0xf]
    %v114 = vld [vmem:[%s2 + $0x20] sm:$0xf]
    %v115 = vld [vmem:[%s2 + $0x24] sm:$0xf]
    %v116 = vld [vmem:[%s2 + $0x28] sm:$0xf]
    %v117 = vld [vmem:[%s2 + $0x2c] sm:$0xf]
    %v118 = vld [vmem:[%s2 + $0x30] sm:$0xf]
    %v119 = vld [vmem:[%s2 + $0x34] sm:$0xf]
    %v120 = vld [vmem:[%s2 + $0x38] sm:$0xf]
    %v121 = vld [vmem:[%s2 + $0x3c] sm:$0xf]
    %v176 = vunpack.c.l.b16 %v52
    %v177 = vunpack.c.l.b16 %v53
    %v178 = vunpack.c.l.b16 %v54
    %v179 = vunpack.c.l.b16 %v55
    %v180 = vunpack.c.l.b16 %v56
    %v181 = vunpack.c.l.b16 %v57
    %v182 = vunpack.c.l.b16 %v58
    %v183 = vunpack.c.l.b16 %v59
    %v184 = vunpack.c.l.b16 %v60
    %v185 = vunpack.c.l.b16 %v61
    %v186 = vunpack.c.l.b16 %v62
    %v187 = vunpack.c.l.b16 %v63
    %v188 = vunpack.c.l.b16 %v64
    %v189 = vunpack.c.l.b16 %v65
    %v190 = vunpack.c.l.b16 %v66
    %v191 = vunpack.c.l.b16 %v67
    %v192 = vunpack.c.l.b16 %v68
    %v193 = vunpack.c.l.b16 %v69
    %v194 = vunpack.c.l.b16 %v70
    %v195 = vunpack.c.l.b16 %v71
    %v196 = vunpack.c.l.b16 %v72
    %v197 = vunpack.c.l.b16 %v73
    %v198 = vunpack.c.l.b16 %v74
    %v199 = vunpack.c.l.b16 %v75
    %v200 = vunpack.c.l.b16 %v76
    %v201 = vunpack.c.l.b16 %v77
    %v202 = vunpack.c.l.b16 %v78
    %v203 = vunpack.c.l.b16 %v79
    %v204 = vunpack.c.l.b16 %v80
    %v205 = vunpack.c.l.b16 %v81
    %v206 = vunpack.c.l.b16 %v82
    %v207 = vunpack.c.l.b16 %v83
    %v208 = vunpack.c.l.b16 %v84
    %v209 = vunpack.c.l.b16 %v85
    %v210 = vunpack.c.l.b16 %v86
    %v211 = vunpack.c.l.b16 %v87
    %v212 = vunpack.c.l.b16 %v88
    %v213 = vunpack.c.l.b16 %v89
    %v214 = vunpack.c.l.b16 %v90
    %v215 = vunpack.c.l.b16 %v91
    %v216 = vunpack.c.l.b16 %v92
    %v217 = vunpack.c.l.b16 %v93
    %v218 = vunpack.c.l.b16 %v94
    %v219 = vunpack.c.l.b16 %v95
    %v220 = vunpack.c.l.b16 %v96
    %v221 = vunpack.c.l.b16 %v97
    %v222 = vunpack.c.l.b16 %v98
    %v223 = vunpack.c.l.b16 %v99
    %v224 = vunpack.c.l.b16 %v100
    %v225 = vunpack.c.l.b16 %v101
    %v226 = vunpack.c.l.b16 %v102
    %v227 = vunpack.c.l.b16 %v103
    %v228 = vunpack.c.l.b16 %v104
    %v229 = vunpack.c.l.b16 %v105
    %v230 = vpack.c.b16 %v177, %v176
    %v231 = vpack.c.b16 %v179, %v178
    %v232 = vpack.c.b16 %v181, %v180
    %v233 = vpack.c.b16 %v183, %v182
    %v234 = vpack.c.b16 %v185, %v184
    %v235 = vpack.c.b16 %v187, %v186
    %v236 = vpack.c.b16 %v189, %v188
    %v237 = vpack.c.b16 %v191, %v190
    %v238 = vpack.c.b16 %v193, %v192
    %v239 = vpack.c.b16 %v195, %v194
    %v240 = vpack.c.b16 %v197, %v196
    %v241 = vpack.c.b16 %v199, %v198
    %v242 = vpack.c.b16 %v201, %v200
    %v243 = vpack.c.b16 %v203, %v202
    %v244 = vpack.c.b16 %v205, %v204
    %v245 = vpack.c.b16 %v207, %v206
    %v246 = vpack.c.b16 %v209, %v208
    %v247 = vpack.c.b16 %v211, %v210
    %v248 = vpack.c.b16 %v213, %v212
    %v249 = vpack.c.b16 %v215, %v214
    %v250 = vpack.c.b16 %v217, %v216
    %v251 = vpack.c.b16 %v219, %v218
    %v252 = vpack.c.b16 %v221, %v220
    %v253 = vpack.c.b16 %v223, %v222
    %v254 = vpack.c.b16 %v225, %v224
    %v255 = vpack.c.b16 %v227, %v226
    %v256 = vpack.c.b16 %v229, %v228
    %v300 = vunpack.c.l.b16 %v106
    %v301 = vunpack.c.l.b16 %v107
    %v302 = vunpack.c.l.b16 %v108
    %v303 = vunpack.c.l.b16 %v109
    %v304 = vunpack.c.l.b16 %v110
    %v305 = vunpack.c.l.b16 %v111
    %v306 = vunpack.c.l.b16 %v112
    %v307 = vunpack.c.l.b16 %v113
    %v308 = vunpack.c.l.b16 %v114
    %v309 = vunpack.c.l.b16 %v115
    %v310 = vunpack.c.l.b16 %v116
    %v311 = vunpack.c.l.b16 %v117
    %v312 = vunpack.c.l.b16 %v118
    %v313 = vunpack.c.l.b16 %v119
    %v314 = vunpack.c.l.b16 %v120
    %v315 = vunpack.c.l.b16 %v121
    %v316 = vpack.c.b16 %v301, %v300
    %v317 = vpack.c.b16 %v303, %v302
    %v318 = vpack.c.b16 %v305, %v304
    %v319 = vpack.c.b16 %v307, %v306
    %v320 = vpack.c.b16 %v309, %v308
    %v321 = vpack.c.b16 %v311, %v310
    %v322 = vpack.c.b16 %v313, %v312
    %v323 = vpack.c.b16 %v315, %v314
    %332 = vmatprep.subr.bf16.mxu0 0
    %333 = vmatpush1.bf16.msra.mxu0 %v316
    %334 = vmatprep.subr.bf16.mxu0 0
    %335 = vmatpush1.bf16.msra.mxu0 %v317
    %336 = vmatprep.subr.bf16.mxu0 0
    %337 = vmatpush1.bf16.msra.mxu0 %v318
    %338 = vmatprep.subr.bf16.mxu0 0
    %339 = vmatpush1.bf16.msra.mxu0 %v319
    %340 = vmatprep.subr.bf16.mxu0 0
    %341 = vmatpush1.bf16.msra.mxu0 %v320
    %342 = vmatprep.subr.bf16.mxu0 0
    %343 = vmatpush1.bf16.msra.mxu0 %v321
    %344 = vmatprep.subr.bf16.mxu0 0
    %345 = vmatpush1.bf16.msra.mxu0 %v322
    %346 = vmatprep.subr.bf16.mxu0 0
    %347 = vmatpush1.bf16.msra.mxu0 %v323
    %348 = vmatprep.subr.bf16.mxu0 0
    %349 = vmatpush1.bf16.msra.mxu0 0
    %350 = vmatprep.subr.bf16.mxu0 0
    %351 = vmatpush1.bf16.msra.mxu0 0
    %352 = vmatprep.subr.bf16.mxu0 0
    %353 = vmatpush1.bf16.msra.mxu0 0
    %354 = vmatprep.subr.bf16.mxu0 0
    %355 = vmatpush1.bf16.msra.mxu0 0
    %356 = vmatprep.subr.bf16.mxu0 0
    %357 = vmatpush1.bf16.msra.mxu0 0
    %358 = vmatprep.subr.bf16.mxu0 0
    %359 = vmatpush1.bf16.msra.mxu0 0
    %360 = vmatprep.subr.bf16.mxu0 0
    %361 = vmatpush1.bf16.msra.mxu0 0
    %362 = vmatprep.subr.bf16.mxu0 0
    %363 = vmatpush1.bf16.msra.mxu0 0
    %364 = vmatprep.mubr.bf16.mxu0 0
    %365 = vmatmul.mubr.bf16.gmra.mrb[0].mxu0 %v230
    %v366 = vpop.f32.mrb[0].mxu0
    %v367 = vadd.f32 0.0, %v366
    %v368 = vpop.f32.mrb[0].mxu0
    %v369 = vpop.f32.mrb[0].mxu0
    %v370 = vadd.f32 0.0, %v369
    %v371 = vpop.f32.mrb[0].mxu0
    %372 = vmatprep.mubr.bf16.mxu0 0
    %373 = vmatmul.mubr.bf16.gmra.mrb[0].mxu0 %v231
    %v374 = vpop.f32.mrb[0].mxu0
    %v375 = vadd.f32 0.0, %v374
    %v376 = vpop.f32.mrb[0].mxu0
    %v377 = vpop.f32.mrb[0].mxu0
    %v378 = vadd.f32 0.0, %v377
    %v379 = vpop.f32.mrb[0].mxu0
    %380 = vmatprep.mubr.bf16.mxu0 0
    %381 = vmatmul.mubr.bf16.gmra.mrb[0].mxu0 %v232
    %v382 = vpop.f32.mrb[0].mxu0
    %v383 = vadd.f32 0.0, %v382
    %v384 = vpop.f32.mrb[0].mxu0
    %v385 = vpop.f32.mrb[0].mxu0
    %v386 = vadd.f32 0.0, %v385
    %v387 = vpop.f32.mrb[0].mxu0
    %388 = vmatprep.mubr.bf16.mxu0 0
    %389 = vmatmul.mubr.bf16.gmra.mrb[0].mxu0 %v233
    %v390 = vpop.f32.mrb[0].mxu0
    %v391 = vadd.f32 0.0, %v390
    %v392 = vpop.f32.mrb[0].mxu0
    %v393 = vpop.f32.mrb[0].mxu0
    %v394 = vadd.f32 0.0, %v393
    %v395 = vpop.f32.mrb[0].mxu0
    %396 = vmatprep.mubr.bf16.mxu0 0
    %397 = vmatmul.mubr.bf16.gmra.mrb[0].mxu0 %v234
    %v398 = vpop.f32.mrb[0].mxu0
    %v399 = vadd.f32 0.0, %v398
    %v400 = vpop.f32.mrb[0].mxu0
    %v401 = vpop.f32.mrb[0].mxu0
    %v402 = vadd.f32 0.0, %v401
    %v403 = vpop.f32.mrb[0].mxu0
    %404 = vmatprep.mubr.bf16.mxu0 0
    %405 = vmatmul.mubr.bf16.gmra.mrb[0].mxu0 %v235
    %v406 = vpop.f32.mrb[0].mxu0
    %v407 = vadd.f32 0.0, %v406
    %v408 = vpop.f32.mrb[0].mxu0
    %v409 = vpop.f32.mrb[0].mxu0
    %v410 = vadd.f32 0.0, %v409
    %v411 = vpop.f32.mrb[0].mxu0
    %412 = vmatprep.mubr.bf16.mxu0 0
    %413 = vmatmul.mubr.bf16.gmra.mrb[0].mxu0 %v236
    %v414 = vpop.f32.mrb[0].mxu0
    %v415 = vadd.f32 0.0, %v414
    %v416 = vpop.f32.mrb[0].mxu0
    %v417 = vpop.f32.mrb[0].mxu0
    %v418 = vadd.f32 0.0, %v417
    %v419 = vpop.f32.mrb[0].mxu0
    %420 = vmatprep.mubr.bf16.mxu0 0
    %421 = vmatmul.mubr.bf16.gmra.mrb[0].mxu0 %v237
    %v422 = vpop.f32.mrb[0].mxu0
    %v423 = vadd.f32 0.0, %v422
    %v424 = vpop.f32.mrb[0].mxu0
    %v425 = vpop.f32.mrb[0].mxu0
    %v426 = vadd.f32 0.0, %v425
    %v427 = vpop.f32.mrb[0].mxu0
    %428 = vmatprep.mubr.bf16.mxu0 0
    %429 = vmatmul.mubr.bf16.gmra.mrb[0].mxu0 %v238
    %v430 = vpop.f32.mrb[0].mxu0
    %v431 = vadd.f32 0.0, %v430
    %v432 = vpop.f32.mrb[0].mxu0
    %v433 = vpop.f32.mrb[0].mxu0
    %v434 = vadd.f32 0.0, %v433
    %v435 = vpop.f32.mrb[0].mxu0
    %436 = vmatprep.mubr.bf16.mxu0 0
    %437 = vmatmul.mubr.bf16.gmra.mrb[0].mxu0 %v239
    %v438 = vpop.f32.mrb[0].mxu0
    %v439 = vadd.f32 0.0, %v438
    %v440 = vpop.f32.mrb[0].mxu0
    %v441 = vpop.f32.mrb[0].mxu0
    %v442 = vadd.f32 0.0, %v441
    %v443 = vpop.f32.mrb[0].mxu0
    %444 = vmatprep.mubr.bf16.mxu0 0
    %445 = vmatmul.mubr.bf16.gmra.mrb[0].mxu0 %v240
    %v446 = vpop.f32.mrb[0].mxu0
    %v447 = vadd.f32 0.0, %v446
    %v448 = vpop.f32.mrb[0].mxu0
    %v449 = vpop.f32.mrb[0].mxu0
    %v450 = vadd.f32 0.0, %v449
    %v451 = vpop.f32.mrb[0].mxu0
    %452 = vmatprep.mubr.bf16.mxu0 0
    %453 = vmatmul.mubr.bf16.gmra.mrb[0].mxu0 %v241
    %v454 = vpop.f32.mrb[0].mxu0
    %v455 = vadd.f32 0.0, %v454
    %v456 = vpop.f32.mrb[0].mxu0
    %v457 = vpop.f32.mrb[0].mxu0
    %v458 = vadd.f32 0.0, %v457
    %v459 = vpop.f32.mrb[0].mxu0
    %460 = vmatprep.mubr.bf16.mxu0 0
    %461 = vmatmul.mubr.bf16.gmra.mrb[0].mxu0 %v242
    %v462 = vpop.f32.mrb[0].mxu0
    %v463 = vadd.f32 0.0, %v462
    %v464 = vpop.f32.mrb[0].mxu0
    %v465 = vpop.f32.mrb[0].mxu0
    %v466 = vadd.f32 0.0, %v465
    %v467 = vpop.f32.mrb[0].mxu0
    %468 = vmatprep.mubr.bf16.mxu0 0
    %469 = vmatmul.mubr.bf16.gmra.mrb[0].mxu0 %v243
    %v470 = vpop.f32.mrb[0].mxu0
    %v471 = vadd.f32 0.0, %v470
    %v472 = vpop.f32.mrb[0].mxu0
    %v473 = vpop.f32.mrb[0].mxu0
    %v474 = vadd.f32 0.0, %v473
    %v475 = vpop.f32.mrb[0].mxu0
    %476 = vmatprep.mubr.bf16.mxu0 0
    %477 = vmatmul.mubr.bf16.gmra.mrb[0].mxu0 %v244
    %v478 = vpop.f32.mrb[0].mxu0
    %v479 = vadd.f32 0.0, %v478
    %v480 = vpop.f32.mrb[0].mxu0
    %v481 = vpop.f32.mrb[0].mxu0
    %v482 = vadd.f32 0.0, %v481
    %v483 = vpop.f32.mrb[0].mxu0
    %484 = vmatprep.mubr.bf16.mxu0 0
    %485 = vmatmul.mubr.bf16.gmra.mrb[0].mxu0 %v245
    %v486 = vpop.f32.mrb[0].mxu0
    %v487 = vadd.f32 0.0, %v486
    %v488 = vpop.f32.mrb[0].mxu0
    %v489 = vpop.f32.mrb[0].mxu0
    %v490 = vadd.f32 0.0, %v489
    %v491 = vpop.f32.mrb[0].mxu0
    %492 = vmatprep.mubr.bf16.mxu0 0
    %493 = vmatmul.mubr.bf16.gmra.mrb[0].mxu0 %v246
    %v494 = vpop.f32.mrb[0].mxu0
    %v495 = vadd.f32 0.0, %v494
    %v496 = vpop.f32.mrb[0].mxu0
    %v497 = vpop.f32.mrb[0].mxu0
    %v498 = vadd.f32 0.0, %v497
    %v499 = vpop.f32.mrb[0].mxu0
    %500 = vmatprep.mubr.bf16.mxu0 0
    %501 = vmatmul.mubr.bf16.gmra.mrb[0].mxu0 %v247
    %v502 = vpop.f32.mrb[0].mxu0
    %v503 = vadd.f32 0.0, %v502
    %v504 = vpop.f32.mrb[0].mxu0
    %v505 = vpop.f32.mrb[0].mxu0
    %v506 = vadd.f32 0.0, %v505
    %v507 = vpop.f32.mrb[0].mxu0
    %508 = vmatprep.mubr.bf16.mxu0 0
    %509 = vmatmul.mubr.bf16.gmra.mrb[0].mxu0 %v248
    %v510 = vpop.f32.mrb[0].mxu0
    %v511 = vadd.f32 0.0, %v510
    %v512 = vpop.f32.mrb[0].mxu0
    %v513 = vpop.f32.mrb[0].mxu0
    %v514 = vadd.f32 0.0, %v513
    %v515 = vpop.f32.mrb[0].mxu0
    %516 = vmatprep.mubr.bf16.mxu0 0
    %517 = vmatmul.mubr.bf16.gmra.mrb[0].mxu0 %v249
    %v518 = vpop.f32.mrb[0].mxu0
    %v519 = vadd.f32 0.0, %v518
    %v520 = vpop.f32.mrb[0].mxu0
    %v521 = vpop.f32.mrb[0].mxu0
    %v522 = vadd.f32 0.0, %v521
    %v523 = vpop.f32.mrb[0].mxu0
    %524 = vmatprep.mubr.bf16.mxu0 0
    %525 = vmatmul.mubr.bf16.gmra.mrb[0].mxu0 %v250
    %v526 = vpop.f32.mrb[0].mxu0
    %v527 = vadd.f32 0.0, %v526
    %v528 = vpop.f32.mrb[0].mxu0
    %v529 = vpop.f32.mrb[0].mxu0
    %v530 = vadd.f32 0.0, %v529
    %v531 = vpop.f32.mrb[0].mxu0
    %532 = vmatprep.mubr.bf16.mxu0 0
    %533 = vmatmul.mubr.bf16.gmra.mrb[0].mxu0 %v251
    %v534 = vpop.f32.mrb[0].mxu0
    %v535 = vadd.f32 0.0, %v534
    %v536 = vpop.f32.mrb[0].mxu0
    %v537 = vpop.f32.mrb[0].mxu0
    %v538 = vadd.f32 0.0, %v537
    %v539 = vpop.f32.mrb[0].mxu0
    %540 = vmatprep.mubr.bf16.mxu0 0
    %541 = vmatmul.mubr.bf16.gmra.mrb[0].mxu0 %v252
    %v542 = vpop.f32.mrb[0].mxu0
    %v543 = vadd.f32 0.0, %v542
    %v544 = vpop.f32.mrb[0].mxu0
    %v545 = vpop.f32.mrb[0].mxu0
    %v546 = vadd.f32 0.0, %v545
    %v547 = vpop.f32.mrb[0].mxu0
    %548 = vmatprep.mubr.bf16.mxu0 0
    %549 = vmatmul.mubr.bf16.gmra.mrb[0].mxu0 %v253
    %v550 = vpop.f32.mrb[0].mxu0
    %v551 = vadd.f32 0.0, %v550
    %v552 = vpop.f32.mrb[0].mxu0
    %v553 = vpop.f32.mrb[0].mxu0
    %v554 = vadd.f32 0.0, %v553
    %v555 = vpop.f32.mrb[0].mxu0
    %556 = vmatprep.mubr.bf16.mxu0 0
    %557 = vmatmul.mubr.bf16.gmra.mrb[0].mxu0 %v254
    %v558 = vpop.f32.mrb[0].mxu0
    %v559 = vadd.f32 0.0, %v558
    %v560 = vpop.f32.mrb[0].mxu0
    %v561 = vpop.f32.mrb[0].mxu0
    %v562 = vadd.f32 0.0, %v561
    %v563 = vpop.f32.mrb[0].mxu0
    %564 = vmatprep.mubr.bf16.mxu0 0
    %565 = vmatmul.mubr.bf16.gmra.mrb[0].mxu0 %v255
    %v566 = vpop.f32.mrb[0].mxu0
    %v567 = vadd.f32 0.0, %v566
    %v568 = vpop.f32.mrb[0].mxu0
    %v569 = vpop.f32.mrb[0].mxu0
    %v570 = vadd.f32 0.0, %v569
    %v571 = vpop.f32.mrb[0].mxu0
    %572 = vmatprep.mubr.bf16.mxu0 0
    %573 = vmatmul.mubr.bf16.gmra.mrb[0].mxu0 %v256
    %v574 = vpop.f32.mrb[0].mxu0
    %v575 = vadd.f32 0.0, %v574
    %v576 = vpop.f32.mrb[0].mxu0
    %v577 = vpop.f32.mrb[0].mxu0
    %v578 = vadd.f32 0.0, %v577
    %v579 = vpop.f32.mrb[0].mxu0
    %580 = vdwg.mxu0
    %v581 = vld [vmem:[%s1] sm:$0xf]
    %v582 = vld [vmem:[%s1 + $0x4] sm:$0xf]
    %v583 = vld [vmem:[%s1 + $0x8] sm:$0xf]
    %v584 = vld [vmem:[%s1 + $0xc] sm:$0xf]
    %v585 = vld [vmem:[%s1 + $0x10] sm:$0xf]
    %v586 = vld [vmem:[%s1 + $0x14] sm:$0xf]
    %v587 = vld [vmem:[%s1 + $0x18] sm:$0xf]
    %v588 = vld [vmem:[%s1 + $0x1c] sm:$0xf]
    %v589 = vld [vmem:[%s1 + $0x20] sm:$0xf]
    %v590 = vld [vmem:[%s1 + $0x24] sm:$0xf]
    %v591 = vld [vmem:[%s1 + $0x28] sm:$0xf]
    %v592 = vld [vmem:[%s1 + $0x2c] sm:$0xf]
    %v593 = vld [vmem:[%s1 + $0x30] sm:$0xf]
    %v594 = vld [vmem:[%s1 + $0x34] sm:$0xf]
    %v595 = vld [vmem:[%s1 + $0x38] sm:$0xf]
    %v596 = vld [vmem:[%s1 + $0x3c] sm:$0xf]
    %v597 = vld [vmem:[%s1 + $0x40] sm:$0xf]
    %v598 = vld [vmem:[%s1 + $0x44] sm:$0xf]
    %v599 = vld [vmem:[%s1 + $0x48] sm:$0xf]
    %v600 = vld [vmem:[%s1 + $0x4c] sm:$0xf]
    %v601 = vld [vmem:[%s1 + $0x50] sm:$0xf]
    %v602 = vld [vmem:[%s1 + $0x54] sm:$0xf]
    %v603 = vld [vmem:[%s1 + $0x58] sm:$0xf]
    %v604 = vld [vmem:[%s1 + $0x5c] sm:$0xf]
    %v605 = vld [vmem:[%s1 + $0x60] sm:$0xf]
    %v606 = vld [vmem:[%s1 + $0x64] sm:$0xf]
    %v607 = vld [vmem:[%s1 + $0x68] sm:$0xf]
    %v608 = vld [vmem:[%s1 + $0x6c] sm:$0xf]
    %v609 = vld [vmem:[%s1 + $0x70] sm:$0xf]
    %v610 = vld [vmem:[%s1 + $0x74] sm:$0xf]
    %v611 = vld [vmem:[%s1 + $0x78] sm:$0xf]
    %v612 = vld [vmem:[%s1 + $0x7c] sm:$0xf]
    %v613 = vld [vmem:[%s1 + $0x80] sm:$0xf]
    %v614 = vld [vmem:[%s1 + $0x84] sm:$0xf]
    %v615 = vld [vmem:[%s1 + $0x88] sm:$0xf]
    %v616 = vld [vmem:[%s1 + $0x8c] sm:$0xf]
    %v617 = vld [vmem:[%s1 + $0x90] sm:$0xf]
    %v618 = vld [vmem:[%s1 + $0x94] sm:$0xf]
    %v619 = vld [vmem:[%s1 + $0x98] sm:$0xf]
    %v620 = vld [vmem:[%s1 + $0x9c] sm:$0xf]
    %v621 = vld [vmem:[%s1 + $0xa0] sm:$0xf]
    %v622 = vld [vmem:[%s1 + $0xa4] sm:$0xf]
    %v623 = vld [vmem:[%s1 + $0xa8] sm:$0xf]
    %v624 = vld [vmem:[%s1 + $0xac] sm:$0xf]
    %v625 = vld [vmem:[%s1 + $0xb0] sm:$0xf]
    %v626 = vld [vmem:[%s1 + $0xb4] sm:$0xf]
    %v627 = vld [vmem:[%s1 + $0xb8] sm:$0xf]
    %v628 = vld [vmem:[%s1 + $0xbc] sm:$0xf]
    %v629 = vld [vmem:[%s1 + $0xc0] sm:$0xf]
    %v630 = vld [vmem:[%s1 + $0xc4] sm:$0xf]
    %v631 = vld [vmem:[%s1 + $0xc8] sm:$0xf]
    %v632 = vld [vmem:[%s1 + $0xcc] sm:$0xf]
    %v633 = vld [vmem:[%s1 + $0xd0] sm:$0xf]
    %v634 = vld [vmem:[%s1 + $0xd4] sm:$0xf]
    %v689 = vunpack.c.l.b16 %v581
    %v690 = vunpack.c.l.b16 %v582
    %v691 = vunpack.c.l.b16 %v583
    %v692 = vunpack.c.l.b16 %v584
    %v693 = vunpack.c.l.b16 %v585
    %v694 = vunpack.c.l.b16 %v586
    %v695 = vunpack.c.l.b16 %v587
    %v696 = vunpack.c.l.b16 %v588
    %v697 = vunpack.c.l.b16 %v589
    %v698 = vunpack.c.l.b16 %v590
    %v699 = vunpack.c.l.b16 %v591
    %v700 = vunpack.c.l.b16 %v592
    %v701 = vunpack.c.l.b16 %v593
    %v702 = vunpack.c.l.b16 %v594
    %v703 = vunpack.c.l.b16 %v595
    %v704 = vunpack.c.l.b16 %v596
    %v705 = vunpack.c.l.b16 %v597
    %v706 = vunpack.c.l.b16 %v598
    %v707 = vunpack.c.l.b16 %v599
    %v708 = vunpack.c.l.b16 %v600
    %v709 = vunpack.c.l.b16 %v601
    %v710 = vunpack.c.l.b16 %v602
    %v711 = vunpack.c.l.b16 %v603
    %v712 = vunpack.c.l.b16 %v604
    %v713 = vunpack.c.l.b16 %v605
    %v714 = vunpack.c.l.b16 %v606
    %v715 = vunpack.c.l.b16 %v607
    %v716 = vunpack.c.l.b16 %v608
    %v717 = vunpack.c.l.b16 %v609
    %v718 = vunpack.c.l.b16 %v610
    %v719 = vunpack.c.l.b16 %v611
    %v720 = vunpack.c.l.b16 %v612
    %v721 = vunpack.c.l.b16 %v613
    %v722 = vunpack.c.l.b16 %v614
    %v723 = vunpack.c.l.b16 %v615
    %v724 = vunpack.c.l.b16 %v616
    %v725 = vunpack.c.l.b16 %v617
    %v726 = vunpack.c.l.b16 %v618
    %v727 = vunpack.c.l.b16 %v619
    %v728 = vunpack.c.l.b16 %v620
    %v729 = vunpack.c.l.b16 %v621
    %v730 = vunpack.c.l.b16 %v622
    %v731 = vunpack.c.l.b16 %v623
    %v732 = vunpack.c.l.b16 %v624
    %v733 = vunpack.c.l.b16 %v625
    %v734 = vunpack.c.l.b16 %v626
    %v735 = vunpack.c.l.b16 %v627
    %v736 = vunpack.c.l.b16 %v628
    %v737 = vunpack.c.l.b16 %v629
    %v738 = vunpack.c.l.b16 %v630
    %v739 = vunpack.c.l.b16 %v631
    %v740 = vunpack.c.l.b16 %v632
    %v741 = vunpack.c.l.b16 %v633
    %v742 = vunpack.c.l.b16 %v634
    %v743 = vpack.c.b16 %v690, %v689
    %v744 = vpack.c.b16 %v692, %v691
    %v745 = vpack.c.b16 %v694, %v693
    %v746 = vpack.c.b16 %v696, %v695
    %v747 = vpack.c.b16 %v698, %v697
    %v748 = vpack.c.b16 %v700, %v699
    %v749 = vpack.c.b16 %v702, %v701
    %v750 = vpack.c.b16 %v704, %v703
    %v751 = vpack.c.b16 %v706, %v705
    %v752 = vpack.c.b16 %v708, %v707
    %v753 = vpack.c.b16 %v710, %v709
    %v754 = vpack.c.b16 %v712, %v711
    %v755 = vpack.c.b16 %v714, %v713
    %v756 = vpack.c.b16 %v716, %v715
    %v757 = vpack.c.b16 %v718, %v717
    %v758 = vpack.c.b16 %v720, %v719
    %v759 = vpack.c.b16 %v722, %v721
    %v760 = vpack.c.b16 %v724, %v723
    %v761 = vpack.c.b16 %v726, %v725
    %v762 = vpack.c.b16 %v728, %v727
    %v763 = vpack.c.b16 %v730, %v729
    %v764 = vpack.c.b16 %v732, %v731
    %v765 = vpack.c.b16 %v734, %v733
    %v766 = vpack.c.b16 %v736, %v735
    %v767 = vpack.c.b16 %v738, %v737
    %v768 = vpack.c.b16 %v740, %v739
    %v769 = vpack.c.b16 %v742, %v741
    %797 = vmatprep.subr.bf16.mxu0 0
    %798 = vmatpush1.bf16.msra.mxu0 %v316
    %799 = vmatprep.subr.bf16.mxu0 0
    %800 = vmatpush1.bf16.msra.mxu0 %v317
    %801 = vmatprep.subr.bf16.mxu0 0
    %802 = vmatpush1.bf16.msra.mxu0 %v318
    %803 = vmatprep.subr.bf16.mxu0 0
    %804 = vmatpush1.bf16.msra.mxu0 %v319
    %805 = vmatprep.subr.bf16.mxu0 0
    %806 = vmatpush1.bf16.msra.mxu0 %v320
    %807 = vmatprep.subr.bf16.mxu0 0
    %808 = vmatpush1.bf16.msra.mxu0 %v321
    %809 = vmatprep.subr.bf16.mxu0 0
    %810 = vmatpush1.bf16.msra.mxu0 %v322
    %811 = vmatprep.subr.bf16.mxu0 0
    %812 = vmatpush1.bf16.msra.mxu0 %v323
    %813 = vmatprep.subr.bf16.mxu0 0
    %814 = vmatpush1.bf16.msra.mxu0 0
    %815 = vmatprep.subr.bf16.mxu0 0
    %816 = vmatpush1.bf16.msra.mxu0 0
    %817 = vmatprep.subr.bf16.mxu0 0
    %818 = vmatpush1.bf16.msra.mxu0 0
    %819 = vmatprep.subr.bf16.mxu0 0
    %820 = vmatpush1.bf16.msra.mxu0 0
    %821 = vmatprep.subr.bf16.mxu0 0
    %822 = vmatpush1.bf16.msra.mxu0 0
    %823 = vmatprep.subr.bf16.mxu0 0
    %824 = vmatpush1.bf16.msra.mxu0 0
    %825 = vmatprep.subr.bf16.mxu0 0
    %826 = vmatpush1.bf16.msra.mxu0 0
    %827 = vmatprep.subr.bf16.mxu0 0
    %828 = vmatpush1.bf16.msra.mxu0 0
    %829 = vmatprep.mubr.bf16.mxu0 0
    %830 = vmatmul.mubr.bf16.gmra.mrb[0].mxu0 %v743
    %v831 = vpop.f32.mrb[0].mxu0
    %v832 = vadd.f32 0.0, %v831
    %v833 = vpop.f32.mrb[0].mxu0
    %v834 = vpop.f32.mrb[0].mxu0
    %v835 = vadd.f32 0.0, %v834
    %v836 = vpop.f32.mrb[0].mxu0
    %837 = vmatprep.mubr.bf16.mxu0 0
    %838 = vmatmul.mubr.bf16.gmra.mrb[0].mxu0 %v744
    %v839 = vpop.f32.mrb[0].mxu0
    %v840 = vadd.f32 0.0, %v839
    %v841 = vpop.f32.mrb[0].mxu0
    %v842 = vpop.f32.mrb[0].mxu0
    %v843 = vadd.f32 0.0, %v842
    %v844 = vpop.f32.mrb[0].mxu0
    %845 = vmatprep.mubr.bf16.mxu0 0
    %846 = vmatmul.mubr.bf16.gmra.mrb[0].mxu0 %v745
    %v847 = vpop.f32.mrb[0].mxu0
    %v848 = vadd.f32 0.0, %v847
    %v849 = vpop.f32.mrb[0].mxu0
    %v850 = vpop.f32.mrb[0].mxu0
    %v851 = vadd.f32 0.0, %v850
    %v852 = vpop.f32.mrb[0].mxu0
    %853 = vmatprep.mubr.bf16.mxu0 0
    %854 = vmatmul.mubr.bf16.gmra.mrb[0].mxu0 %v746
    %v855 = vpop.f32.mrb[0].mxu0
    %v856 = vadd.f32 0.0, %v855
    %v857 = vpop.f32.mrb[0].mxu0
    %v858 = vpop.f32.mrb[0].mxu0
    %v859 = vadd.f32 0.0, %v858
    %v860 = vpop.f32.mrb[0].mxu0
    %861 = vmatprep.mubr.bf16.mxu0 0
    %862 = vmatmul.mubr.bf16.gmra.mrb[0].mxu0 %v747
    %v863 = vpop.f32.mrb[0].mxu0
    %v864 = vadd.f32 0.0, %v863
    %v865 = vpop.f32.mrb[0].mxu0
    %v866 = vpop.f32.mrb[0].mxu0
    %v867 = vadd.f32 0.0, %v866
    %v868 = vpop.f32.mrb[0].mxu0
    %869 = vmatprep.mubr.bf16.mxu0 0
    %870 = vmatmul.mubr.bf16.gmra.mrb[0].mxu0 %v748
    %v871 = vpop.f32.mrb[0].mxu0
    %v872 = vadd.f32 0.0, %v871
    %v873 = vpop.f32.mrb[0].mxu0
    %v874 = vpop.f32.mrb[0].mxu0
    %v875 = vadd.f32 0.0, %v874
    %v876 = vpop.f32.mrb[0].mxu0
    %877 = vmatprep.mubr.bf16.mxu0 0
    %878 = vmatmul.mubr.bf16.gmra.mrb[0].mxu0 %v749
    %v879 = vpop.f32.mrb[0].mxu0
    %v880 = vadd.f32 0.0, %v879
    %v881 = vpop.f32.mrb[0].mxu0
    %v882 = vpop.f32.mrb[0].mxu0
    %v883 = vadd.f32 0.0, %v882
    %v884 = vpop.f32.mrb[0].mxu0
    %885 = vmatprep.mubr.bf16.mxu0 0
    %886 = vmatmul.mubr.bf16.gmra.mrb[0].mxu0 %v750
    %v887 = vpop.f32.mrb[0].mxu0
    %v888 = vadd.f32 0.0, %v887
    %v889 = vpop.f32.mrb[0].mxu0
    %v890 = vpop.f32.mrb[0].mxu0
    %v891 = vadd.f32 0.0, %v890
    %v892 = vpop.f32.mrb[0].mxu0
    %893 = vmatprep.mubr.bf16.mxu0 0
    %894 = vmatmul.mubr.bf16.gmra.mrb[0].mxu0 %v751
    %v895 = vpop.f32.mrb[0].mxu0
    %v896 = vadd.f32 0.0, %v895
    %v897 = vpop.f32.mrb[0].mxu0
    %v898 = vpop.f32.mrb[0].mxu0
    %v899 = vadd.f32 0.0, %v898
    %v900 = vpop.f32.mrb[0].mxu0
    %901 = vmatprep.mubr.bf16.mxu0 0
    %902 = vmatmul.mubr.bf16.gmra.mrb[0].mxu0 %v752
    %v903 = vpop.f32.mrb[0].mxu0
    %v904 = vadd.f32 0.0, %v903
    %v905 = vpop.f32.mrb[0].mxu0
    %v906 = vpop.f32.mrb[0].mxu0
    %v907 = vadd.f32 0.0, %v906
    %v908 = vpop.f32.mrb[0].mxu0
    %909 = vmatprep.mubr.bf16.mxu0 0
    %910 = vmatmul.mubr.bf16.gmra.mrb[0].mxu0 %v753
    %v911 = vpop.f32.mrb[0].mxu0
    %v912 = vadd.f32 0.0, %v911
    %v913 = vpop.f32.mrb[0].mxu0
    %v914 = vpop.f32.mrb[0].mxu0
    %v915 = vadd.f32 0.0, %v914
    %v916 = vpop.f32.mrb[0].mxu0
    %917 = vmatprep.mubr.bf16.mxu0 0
    %918 = vmatmul.mubr.bf16.gmra.mrb[0].mxu0 %v754
    %v919 = vpop.f32.mrb[0].mxu0
    %v920 = vadd.f32 0.0, %v919
    %v921 = vpop.f32.mrb[0].mxu0
    %v922 = vpop.f32.mrb[0].mxu0
    %v923 = vadd.f32 0.0, %v922
    %v924 = vpop.f32.mrb[0].mxu0
    %925 = vmatprep.mubr.bf16.mxu0 0
    %926 = vmatmul.mubr.bf16.gmra.mrb[0].mxu0 %v755
    %v927 = vpop.f32.mrb[0].mxu0
    %v928 = vadd.f32 0.0, %v927
    %v929 = vpop.f32.mrb[0].mxu0
    %v930 = vpop.f32.mrb[0].mxu0
    %v931 = vadd.f32 0.0, %v930
    %v932 = vpop.f32.mrb[0].mxu0
    %933 = vmatprep.mubr.bf16.mxu0 0
    %934 = vmatmul.mubr.bf16.gmra.mrb[0].mxu0 %v756
    %v935 = vpop.f32.mrb[0].mxu0
    %v936 = vadd.f32 0.0, %v935
    %v937 = vpop.f32.mrb[0].mxu0
    %v938 = vpop.f32.mrb[0].mxu0
    %v939 = vadd.f32 0.0, %v938
    %v940 = vpop.f32.mrb[0].mxu0
    %941 = vmatprep.mubr.bf16.mxu0 0
    %942 = vmatmul.mubr.bf16.gmra.mrb[0].mxu0 %v757
    %v943 = vpop.f32.mrb[0].mxu0
    %v944 = vadd.f32 0.0, %v943
    %v945 = vpop.f32.mrb[0].mxu0
    %v946 = vpop.f32.mrb[0].mxu0
    %v947 = vadd.f32 0.0, %v946
    %v948 = vpop.f32.mrb[0].mxu0
    %949 = vmatprep.mubr.bf16.mxu0 0
    %950 = vmatmul.mubr.bf16.gmra.mrb[0].mxu0 %v758
    %v951 = vpop.f32.mrb[0].mxu0
    %v952 = vadd.f32 0.0, %v951
    %v953 = vpop.f32.mrb[0].mxu0
    %v954 = vpop.f32.mrb[0].mxu0
    %v955 = vadd.f32 0.0, %v954
    %v956 = vpop.f32.mrb[0].mxu0
    %957 = vmatprep.mubr.bf16.mxu0 0
    %958 = vmatmul.mubr.bf16.gmra.mrb[0].mxu0 %v759
    %v959 = vpop.f32.mrb[0].mxu0
    %v960 = vadd.f32 0.0, %v959
    %v961 = vpop.f32.mrb[0].mxu0
    %v962 = vpop.f32.mrb[0].mxu0
    %v963 = vadd.f32 0.0, %v962
    %v964 = vpop.f32.mrb[0].mxu0
    %965 = vmatprep.mubr.bf16.mxu0 0
    %966 = vmatmul.mubr.bf16.gmra.mrb[0].mxu0 %v760
    %v967 = vpop.f32.mrb[0].mxu0
    %v968 = vadd.f32 0.0, %v967
    %v969 = vpop.f32.mrb[0].mxu0
    %v970 = vpop.f32.mrb[0].mxu0
    %v971 = vadd.f32 0.0, %v970
    %v972 = vpop.f32.mrb[0].mxu0
    %973 = vmatprep.mubr.bf16.mxu0 0
    %974 = vmatmul.mubr.bf16.gmra.mrb[0].mxu0 %v761
    %v975 = vpop.f32.mrb[0].mxu0
    %v976 = vadd.f32 0.0, %v975
    %v977 = vpop.f32.mrb[0].mxu0
    %v978 = vpop.f32.mrb[0].mxu0
    %v979 = vadd.f32 0.0, %v978
    %v980 = vpop.f32.mrb[0].mxu0
    %981 = vmatprep.mubr.bf16.mxu0 0
    %982 = vmatmul.mubr.bf16.gmra.mrb[0].mxu0 %v762
    %v983 = vpop.f32.mrb[0].mxu0
    %v984 = vadd.f32 0.0, %v983
    %v985 = vpop.f32.mrb[0].mxu0
    %v986 = vpop.f32.mrb[0].mxu0
    %v987 = vadd.f32 0.0, %v986
    %v988 = vpop.f32.mrb[0].mxu0
    %989 = vmatprep.mubr.bf16.mxu0 0
    %990 = vmatmul.mubr.bf16.gmra.mrb[0].mxu0 %v763
    %v991 = vpop.f32.mrb[0].mxu0
    %v992 = vadd.f32 0.0, %v991
    %v993 = vpop.f32.mrb[0].mxu0
    %v994 = vpop.f32.mrb[0].mxu0
    %v995 = vadd.f32 0.0, %v994
    %v996 = vpop.f32.mrb[0].mxu0
    %997 = vmatprep.mubr.bf16.mxu0 0
    %998 = vmatmul.mubr.bf16.gmra.mrb[0].mxu0 %v764
    %v999 = vpop.f32.mrb[0].mxu0
    %v1000 = vadd.f32 0.0, %v999
    %v1001 = vpop.f32.mrb[0].mxu0
    %v1002 = vpop.f32.mrb[0].mxu0
    %v1003 = vadd.f32 0.0, %v1002
    %v1004 = vpop.f32.mrb[0].mxu0
    %1005 = vmatprep.mubr.bf16.mxu0 0
    %1006 = vmatmul.mubr.bf16.gmra.mrb[0].mxu0 %v765
    %v1007 = vpop.f32.mrb[0].mxu0
    %v1008 = vadd.f32 0.0, %v1007
    %v1009 = vpop.f32.mrb[0].mxu0
    %v1010 = vpop.f32.mrb[0].mxu0
    %v1011 = vadd.f32 0.0, %v1010
    %v1012 = vpop.f32.mrb[0].mxu0
    %1013 = vmatprep.mubr.bf16.mxu0 0
    %1014 = vmatmul.mubr.bf16.gmra.mrb[0].mxu0 %v766
    %v1015 = vpop.f32.mrb[0].mxu0
    %v1016 = vadd.f32 0.0, %v1015
    %v1017 = vpop.f32.mrb[0].mxu0
    %v1018 = vpop.f32.mrb[0].mxu0
    %v1019 = vadd.f32 0.0, %v1018
    %v1020 = vpop.f32.mrb[0].mxu0
    %1021 = vmatprep.mubr.bf16.mxu0 0
    %1022 = vmatmul.mubr.bf16.gmra.mrb[0].mxu0 %v767
    %v1023 = vpop.f32.mrb[0].mxu0
    %v1024 = vadd.f32 0.0, %v1023
    %v1025 = vpop.f32.mrb[0].mxu0
    %v1026 = vpop.f32.mrb[0].mxu0
    %v1027 = vadd.f32 0.0, %v1026
    %v1028 = vpop.f32.mrb[0].mxu0
    %1029 = vmatprep.mubr.bf16.mxu0 0
    %1030 = vmatmul.mubr.bf16.gmra.mrb[0].mxu0 %v768
    %v1031 = vpop.f32.mrb[0].mxu0
    %v1032 = vadd.f32 0.0, %v1031
    %v1033 = vpop.f32.mrb[0].mxu0
    %v1034 = vpop.f32.mrb[0].mxu0
    %v1035 = vadd.f32 0.0, %v1034
    %v1036 = vpop.f32.mrb[0].mxu0
    %1037 = vmatprep.mubr.bf16.mxu0 0
    %1038 = vmatmul.mubr.bf16.gmra.mrb[0].mxu0 %v769
    %v1039 = vpop.f32.mrb[0].mxu0
    %v1040 = vadd.f32 0.0, %v1039
    %v1041 = vpop.f32.mrb[0].mxu0
    %v1042 = vpop.f32.mrb[0].mxu0
    %v1043 = vadd.f32 0.0, %v1042
    %v1044 = vpop.f32.mrb[0].mxu0
    %1045 = vdwg.mxu0
    %v1046 = vadd.f32 %v367, %v370
    %v1047 = vadd.f32 %v1046, %v375
    %v1048 = vadd.f32 %v1047, %v378
    %v1049 = vadd.f32 %v1048, %v383
    %v1050 = vadd.f32 %v1049, %v386
    %v1051 = vadd.f32 %v1050, %v391
    %v1052 = vadd.f32 %v1051, %v394
    %v1053 = vadd.f32 %v1052, %v399
    %v1054 = vadd.f32 %v1053, %v402
    %v1055 = vadd.f32 %v1054, %v407
    %v1056 = vadd.f32 %v1055, %v410
    %v1057 = vadd.f32 %v1056, %v415
    %v1058 = vadd.f32 %v1057, %v418
    %v1059 = vadd.f32 %v1058, %v423
    %v1060 = vadd.f32 %v1059, %v426
    %v1061 = vadd.f32 %v1060, %v431
    %v1062 = vadd.f32 %v1061, %v434
    %v1063 = vadd.f32 %v1062, %v439
    %v1064 = vadd.f32 %v1063, %v442
    %v1065 = vadd.f32 %v1064, %v447
    %v1066 = vadd.f32 %v1065, %v450
    %v1067 = vadd.f32 %v1066, %v455
    %v1068 = vadd.f32 %v1067, %v458
    %v1069 = vadd.f32 %v1068, %v463
    %v1070 = vadd.f32 %v1069, %v466
    %v1071 = vadd.f32 %v1070, %v471
    %v1072 = vadd.f32 %v1071, %v474
    %v1073 = vadd.f32 %v1072, %v479
    %v1074 = vadd.f32 %v1073, %v482
    %v1075 = vadd.f32 %v1074, %v487
    %v1076 = vadd.f32 %v1075, %v490
    %v1077 = vadd.f32 %v1076, %v495
    %v1078 = vadd.f32 %v1077, %v498
    %v1079 = vadd.f32 %v1078, %v503
    %v1080 = vadd.f32 %v1079, %v506
    %v1081 = vadd.f32 %v1080, %v511
    %v1082 = vadd.f32 %v1081, %v514
    %v1083 = vadd.f32 %v1082, %v519
    %v1084 = vadd.f32 %v1083, %v522
    %v1085 = vadd.f32 %v1084, %v527
    %v1086 = vadd.f32 %v1085, %v530
    %v1087 = vadd.f32 %v1086, %v535
    %v1088 = vadd.f32 %v1087, %v538
    %v1089 = vadd.f32 %v1088, %v543
    %v1090 = vadd.f32 %v1089, %v546
    %v1091 = vadd.f32 %v1090, %v551
    %v1092 = vadd.f32 %v1091, %v554
    %v1093 = vadd.f32 %v1092, %v559
    %v1094 = vadd.f32 %v1093, %v562
    %v1095 = vadd.f32 %v1094, %v567
    %v1096 = vadd.f32 %v1095, %v570
    %v1097 = vadd.f32 %v1096, %v575
    %v1098 = vadd.f32 %v1097, %v578
    %v1099 = vrot.slane %v1098, 4
    %v1100 = vadd.f32 %v1098, %v1099
    %v1101 = vrot.slane %v1100, 2
    %v1102 = vadd.f32 %v1100, %v1101
    %v1103 = vrot.slane %v1102, 1
    %v1104 = vadd.f32 %v1102, %v1103
    %v1105 = vmul.f32 %v1104, 0.0023148148
    %v1106 = vsub.f32 %v367, %v1105
    %v1107 = vsub.f32 %v370, %v1105
    %v1108 = vsub.f32 %v375, %v1105
    %v1109 = vsub.f32 %v378, %v1105
    %v1110 = vsub.f32 %v383, %v1105
    %v1111 = vsub.f32 %v386, %v1105
    %v1112 = vsub.f32 %v391, %v1105
    %v1113 = vsub.f32 %v394, %v1105
    %v1114 = vsub.f32 %v399, %v1105
    %v1115 = vsub.f32 %v402, %v1105
    %v1116 = vsub.f32 %v407, %v1105
    %v1117 = vsub.f32 %v410, %v1105
    %v1118 = vsub.f32 %v415, %v1105
    %v1119 = vsub.f32 %v418, %v1105
    %v1120 = vsub.f32 %v423, %v1105
    %v1121 = vsub.f32 %v426, %v1105
    %v1122 = vsub.f32 %v431, %v1105
    %v1123 = vsub.f32 %v434, %v1105
    %v1124 = vsub.f32 %v439, %v1105
    %v1125 = vsub.f32 %v442, %v1105
    %v1126 = vsub.f32 %v447, %v1105
    %v1127 = vsub.f32 %v450, %v1105
    %v1128 = vsub.f32 %v455, %v1105
    %v1129 = vsub.f32 %v458, %v1105
    %v1130 = vsub.f32 %v463, %v1105
    %v1131 = vsub.f32 %v466, %v1105
    %v1132 = vsub.f32 %v471, %v1105
    %v1133 = vsub.f32 %v474, %v1105
    %v1134 = vsub.f32 %v479, %v1105
    %v1135 = vsub.f32 %v482, %v1105
    %v1136 = vsub.f32 %v487, %v1105
    %v1137 = vsub.f32 %v490, %v1105
    %v1138 = vsub.f32 %v495, %v1105
    %v1139 = vsub.f32 %v498, %v1105
    %v1140 = vsub.f32 %v503, %v1105
    %v1141 = vsub.f32 %v506, %v1105
    %v1142 = vsub.f32 %v511, %v1105
    %v1143 = vsub.f32 %v514, %v1105
    %v1144 = vsub.f32 %v519, %v1105
    %v1145 = vsub.f32 %v522, %v1105
    %v1146 = vsub.f32 %v527, %v1105
    %v1147 = vsub.f32 %v530, %v1105
    %v1148 = vsub.f32 %v535, %v1105
    %v1149 = vsub.f32 %v538, %v1105
    %v1150 = vsub.f32 %v543, %v1105
    %v1151 = vsub.f32 %v546, %v1105
    %v1152 = vsub.f32 %v551, %v1105
    %v1153 = vsub.f32 %v554, %v1105
    %v1154 = vsub.f32 %v559, %v1105
    %v1155 = vsub.f32 %v562, %v1105
    %v1156 = vsub.f32 %v567, %v1105
    %v1157 = vsub.f32 %v570, %v1105
    %v1158 = vsub.f32 %v575, %v1105
    %v1159 = vsub.f32 %v578, %v1105
    %v1160 = vmul.f32 %v1106, %v1106
    %v1161 = vmul.f32 %v1107, %v1107
    %v1162 = vmul.f32 %v1108, %v1108
    %v1163 = vmul.f32 %v1109, %v1109
    %v1164 = vmul.f32 %v1110, %v1110
    %v1165 = vmul.f32 %v1111, %v1111
    %v1166 = vmul.f32 %v1112, %v1112
    %v1167 = vmul.f32 %v1113, %v1113
    %v1168 = vmul.f32 %v1114, %v1114
    %v1169 = vmul.f32 %v1115, %v1115
    %v1170 = vmul.f32 %v1116, %v1116
    %v1171 = vmul.f32 %v1117, %v1117
    %v1172 = vmul.f32 %v1118, %v1118
    %v1173 = vmul.f32 %v1119, %v1119
    %v1174 = vmul.f32 %v1120, %v1120
    %v1175 = vmul.f32 %v1121, %v1121
    %v1176 = vmul.f32 %v1122, %v1122
    %v1177 = vmul.f32 %v1123, %v1123
    %v1178 = vmul.f32 %v1124, %v1124
    %v1179 = vmul.f32 %v1125, %v1125
    %v1180 = vmul.f32 %v1126, %v1126
    %v1181 = vmul.f32 %v1127, %v1127
    %v1182 = vmul.f32 %v1128, %v1128
    %v1183 = vmul.f32 %v1129, %v1129
    %v1184 = vmul.f32 %v1130, %v1130
    %v1185 = vmul.f32 %v1131, %v1131
    %v1186 = vmul.f32 %v1132, %v1132
    %v1187 = vmul.f32 %v1133, %v1133
    %v1188 = vmul.f32 %v1134, %v1134
    %v1189 = vmul.f32 %v1135, %v1135
    %v1190 = vmul.f32 %v1136, %v1136
    %v1191 = vmul.f32 %v1137, %v1137
    %v1192 = vmul.f32 %v1138, %v1138
    %v1193 = vmul.f32 %v1139, %v1139
    %v1194 = vmul.f32 %v1140, %v1140
    %v1195 = vmul.f32 %v1141, %v1141
    %v1196 = vmul.f32 %v1142, %v1142
    %v1197 = vmul.f32 %v1143, %v1143
    %v1198 = vmul.f32 %v1144, %v1144
    %v1199 = vmul.f32 %v1145, %v1145
    %v1200 = vmul.f32 %v1146, %v1146
    %v1201 = vmul.f32 %v1147, %v1147
    %v1202 = vmul.f32 %v1148, %v1148
    %v1203 = vmul.f32 %v1149, %v1149
    %v1204 = vmul.f32 %v1150, %v1150
    %v1205 = vmul.f32 %v1151, %v1151
    %v1206 = vmul.f32 %v1152, %v1152
    %v1207 = vmul.f32 %v1153, %v1153
    %v1208 = vmul.f32 %v1154, %v1154
    %v1209 = vmul.f32 %v1155, %v1155
    %v1210 = vmul.f32 %v1156, %v1156
    %v1211 = vmul.f32 %v1157, %v1157
    %v1212 = vmul.f32 %v1158, %v1158
    %v1213 = vmul.f32 %v1159, %v1159
    %v1214 = vadd.f32 %v1160, %v1161
    %v1215 = vadd.f32 %v1214, %v1162
    %v1216 = vadd.f32 %v1215, %v1163
    %v1217 = vadd.f32 %v1216, %v1164
    %v1218 = vadd.f32 %v1217, %v1165
    %v1219 = vadd.f32 %v1218, %v1166
    %v1220 = vadd.f32 %v1219, %v1167
    %v1221 = vadd.f32 %v1220, %v1168
    %v1222 = vadd.f32 %v1221, %v1169
    %v1223 = vadd.f32 %v1222, %v1170
    %v1224 = vadd.f32 %v1223, %v1171
    %v1225 = vadd.f32 %v1224, %v1172
    %v1226 = vadd.f32 %v1225, %v1173
    %v1227 = vadd.f32 %v1226, %v1174
    %v1228 = vadd.f32 %v1227, %v1175
    %v1229 = vadd.f32 %v1228, %v1176
    %v1230 = vadd.f32 %v1229, %v1177
    %v1231 = vadd.f32 %v1230, %v1178
    %v1232 = vadd.f32 %v1231, %v1179
    %v1233 = vadd.f32 %v1232, %v1180
    %v1234 = vadd.f32 %v1233, %v1181
    %v1235 = vadd.f32 %v1234, %v1182
    %v1236 = vadd.f32 %v1235, %v1183
    %v1237 = vadd.f32 %v1236, %v1184
    %v1238 = vadd.f32 %v1237, %v1185
    %v1239 = vadd.f32 %v1238, %v1186
    %v1240 = vadd.f32 %v1239, %v1187
    %v1241 = vadd.f32 %v1240, %v1188
    %v1242 = vadd.f32 %v1241, %v1189
    %v1243 = vadd.f32 %v1242, %v1190
    %v1244 = vadd.f32 %v1243, %v1191
    %v1245 = vadd.f32 %v1244, %v1192
    %v1246 = vadd.f32 %v1245, %v1193
    %v1247 = vadd.f32 %v1246, %v1194
    %v1248 = vadd.f32 %v1247, %v1195
    %v1249 = vadd.f32 %v1248, %v1196
    %v1250 = vadd.f32 %v1249, %v1197
    %v1251 = vadd.f32 %v1250, %v1198
    %v1252 = vadd.f32 %v1251, %v1199
    %v1253 = vadd.f32 %v1252, %v1200
    %v1254 = vadd.f32 %v1253, %v1201
    %v1255 = vadd.f32 %v1254, %v1202
    %v1256 = vadd.f32 %v1255, %v1203
    %v1257 = vadd.f32 %v1256, %v1204
    %v1258 = vadd.f32 %v1257, %v1205
    %v1259 = vadd.f32 %v1258, %v1206
    %v1260 = vadd.f32 %v1259, %v1207
    %v1261 = vadd.f32 %v1260, %v1208
    %v1262 = vadd.f32 %v1261, %v1209
    %v1263 = vadd.f32 %v1262, %v1210
    %v1264 = vadd.f32 %v1263, %v1211
    %v1265 = vadd.f32 %v1264, %v1212
    %v1266 = vadd.f32 %v1265, %v1213
    %v1267 = vrot.slane %v1266, 4
    %v1268 = vadd.f32 %v1266, %v1267
    %v1269 = vrot.slane %v1268, 2
    %v1270 = vadd.f32 %v1268, %v1269
    %v1271 = vrot.slane %v1270, 1
    %v1272 = vadd.f32 %v1270, %v1271
    %v1273 = vmul.f32 %v1272, 0.0023148148
    %v1274 = vadd.f32 %v1273, 1e-05
    %v1275 = vrsqrt.pop %v1274
    %v1276 = vld [vmem:[%s3] sm:$0x1]
    %v1277 = vmul.f32 %v1275, %v1276
    %v1278 = vld [vmem:[%s4] sm:$0x1]
    %v1279 = vmul.f32 %v1105, %v1277
    %v1280 = vsub.f32 %v1278, %v1279
    %v1281 = vlaneseq
    %v1282 = vshrl.u32 %v1281, 7
    %v1283 = vsub.s32 0, %v1282
    %v1284 = vrot.slane %v1277, %v1283
    %v1285 = vmul.f32 %v832, %v1284
    %v1286 = vmul.f32 %v835, %v1284
    %v1287 = vmul.f32 %v840, %v1284
    %v1288 = vmul.f32 %v843, %v1284
    %v1289 = vmul.f32 %v848, %v1284
    %v1290 = vmul.f32 %v851, %v1284
    %v1291 = vmul.f32 %v856, %v1284
    %v1292 = vmul.f32 %v859, %v1284
    %v1293 = vmul.f32 %v864, %v1284
    %v1294 = vmul.f32 %v867, %v1284
    %v1295 = vmul.f32 %v872, %v1284
    %v1296 = vmul.f32 %v875, %v1284
    %v1297 = vmul.f32 %v880, %v1284
    %v1298 = vmul.f32 %v883, %v1284
    %v1299 = vmul.f32 %v888, %v1284
    %v1300 = vmul.f32 %v891, %v1284
    %v1301 = vmul.f32 %v896, %v1284
    %v1302 = vmul.f32 %v899, %v1284
    %v1303 = vmul.f32 %v904, %v1284
    %v1304 = vmul.f32 %v907, %v1284
    %v1305 = vmul.f32 %v912, %v1284
    %v1306 = vmul.f32 %v915, %v1284
    %v1307 = vmul.f32 %v920, %v1284
    %v1308 = vmul.f32 %v923, %v1284
    %v1309 = vmul.f32 %v928, %v1284
    %v1310 = vmul.f32 %v931, %v1284
    %v1311 = vmul.f32 %v936, %v1284
    %v1312 = vmul.f32 %v939, %v1284
    %v1313 = vmul.f32 %v944, %v1284
    %v1314 = vmul.f32 %v947, %v1284
    %v1315 = vmul.f32 %v952, %v1284
    %v1316 = vmul.f32 %v955, %v1284
    %v1317 = vmul.f32 %v960, %v1284
    %v1318 = vmul.f32 %v963, %v1284
    %v1319 = vmul.f32 %v968, %v1284
    %v1320 = vmul.f32 %v971, %v1284
    %v1321 = vmul.f32 %v976, %v1284
    %v1322 = vmul.f32 %v979, %v1284
    %v1323 = vmul.f32 %v984, %v1284
    %v1324 = vmul.f32 %v987, %v1284
    %v1325 = vmul.f32 %v992, %v1284
    %v1326 = vmul.f32 %v995, %v1284
    %v1327 = vmul.f32 %v1000, %v1284
    %v1328 = vmul.f32 %v1003, %v1284
    %v1329 = vmul.f32 %v1008, %v1284
    %v1330 = vmul.f32 %v1011, %v1284
    %v1331 = vmul.f32 %v1016, %v1284
    %v1332 = vmul.f32 %v1019, %v1284
    %v1333 = vmul.f32 %v1024, %v1284
    %v1334 = vmul.f32 %v1027, %v1284
    %v1335 = vmul.f32 %v1032, %v1284
    %v1336 = vmul.f32 %v1035, %v1284
    %v1337 = vmul.f32 %v1040, %v1284
    %v1338 = vmul.f32 %v1043, %v1284
    %v1340 = vlaneseq
    %v1341 = vshrl.u32 %v1340, 7
    %v1342 = vsub.s32 0, %v1341
    %v1343 = vrot.slane %v1280, %v1342
    %v1345 = vadd.f32 %v1285, %v1343
    %v1346 = vadd.f32 %v1286, %v1343
    %v1347 = vadd.f32 %v1287, %v1343
    %v1348 = vadd.f32 %v1288, %v1343
    %v1349 = vadd.f32 %v1289, %v1343
    %v1350 = vadd.f32 %v1290, %v1343
    %v1351 = vadd.f32 %v1291, %v1343
    %v1352 = vadd.f32 %v1292, %v1343
    %v1353 = vadd.f32 %v1293, %v1343
    %v1354 = vadd.f32 %v1294, %v1343
    %v1355 = vadd.f32 %v1295, %v1343
    %v1356 = vadd.f32 %v1296, %v1343
    %v1357 = vadd.f32 %v1297, %v1343
    %v1358 = vadd.f32 %v1298, %v1343
    %v1359 = vadd.f32 %v1299, %v1343
    %v1360 = vadd.f32 %v1300, %v1343
    %v1361 = vadd.f32 %v1301, %v1343
    %v1362 = vadd.f32 %v1302, %v1343
    %v1363 = vadd.f32 %v1303, %v1343
    %v1364 = vadd.f32 %v1304, %v1343
    %v1365 = vadd.f32 %v1305, %v1343
    %v1366 = vadd.f32 %v1306, %v1343
    %v1367 = vadd.f32 %v1307, %v1343
    %v1368 = vadd.f32 %v1308, %v1343
    %v1369 = vadd.f32 %v1309, %v1343
    %v1370 = vadd.f32 %v1310, %v1343
    %v1371 = vadd.f32 %v1311, %v1343
    %v1372 = vadd.f32 %v1312, %v1343
    %v1373 = vadd.f32 %v1313, %v1343
    %v1374 = vadd.f32 %v1314, %v1343
    %v1375 = vadd.f32 %v1315, %v1343
    %v1376 = vadd.f32 %v1316, %v1343
    %v1377 = vadd.f32 %v1317, %v1343
    %v1378 = vadd.f32 %v1318, %v1343
    %v1379 = vadd.f32 %v1319, %v1343
    %v1380 = vadd.f32 %v1320, %v1343
    %v1381 = vadd.f32 %v1321, %v1343
    %v1382 = vadd.f32 %v1322, %v1343
    %v1383 = vadd.f32 %v1323, %v1343
    %v1384 = vadd.f32 %v1324, %v1343
    %v1385 = vadd.f32 %v1325, %v1343
    %v1386 = vadd.f32 %v1326, %v1343
    %v1387 = vadd.f32 %v1327, %v1343
    %v1388 = vadd.f32 %v1328, %v1343
    %v1389 = vadd.f32 %v1329, %v1343
    %v1390 = vadd.f32 %v1330, %v1343
    %v1391 = vadd.f32 %v1331, %v1343
    %v1392 = vadd.f32 %v1332, %v1343
    %v1393 = vadd.f32 %v1333, %v1343
    %v1394 = vadd.f32 %v1334, %v1343
    %v1395 = vadd.f32 %v1335, %v1343
    %v1396 = vadd.f32 %v1336, %v1343
    %v1397 = vadd.f32 %v1337, %v1343
    %v1398 = vadd.f32 %v1338, %v1343
    %v1399 = vmax.f32 %v1345, 0.0
    %v1400 = vmax.f32 %v1346, 0.0
    %v1401 = vmax.f32 %v1347, 0.0
    %v1402 = vmax.f32 %v1348, 0.0
    %v1403 = vmax.f32 %v1349, 0.0
    %v1404 = vmax.f32 %v1350, 0.0
    %v1405 = vmax.f32 %v1351, 0.0
    %v1406 = vmax.f32 %v1352, 0.0
    %v1407 = vmax.f32 %v1353, 0.0
    %v1408 = vmax.f32 %v1354, 0.0
    %v1409 = vmax.f32 %v1355, 0.0
    %v1410 = vmax.f32 %v1356, 0.0
    %v1411 = vmax.f32 %v1357, 0.0
    %v1412 = vmax.f32 %v1358, 0.0
    %v1413 = vmax.f32 %v1359, 0.0
    %v1414 = vmax.f32 %v1360, 0.0
    %v1415 = vmax.f32 %v1361, 0.0
    %v1416 = vmax.f32 %v1362, 0.0
    %v1417 = vmax.f32 %v1363, 0.0
    %v1418 = vmax.f32 %v1364, 0.0
    %v1419 = vmax.f32 %v1365, 0.0
    %v1420 = vmax.f32 %v1366, 0.0
    %v1421 = vmax.f32 %v1367, 0.0
    %v1422 = vmax.f32 %v1368, 0.0
    %v1423 = vmax.f32 %v1369, 0.0
    %v1424 = vmax.f32 %v1370, 0.0
    %v1425 = vmax.f32 %v1371, 0.0
    %v1426 = vmax.f32 %v1372, 0.0
    %v1427 = vmax.f32 %v1373, 0.0
    %v1428 = vmax.f32 %v1374, 0.0
    %v1429 = vmax.f32 %v1375, 0.0
    %v1430 = vmax.f32 %v1376, 0.0
    %v1431 = vmax.f32 %v1377, 0.0
    %v1432 = vmax.f32 %v1378, 0.0
    %v1433 = vmax.f32 %v1379, 0.0
    %v1434 = vmax.f32 %v1380, 0.0
    %v1435 = vmax.f32 %v1381, 0.0
    %v1436 = vmax.f32 %v1382, 0.0
    %v1437 = vmax.f32 %v1383, 0.0
    %v1438 = vmax.f32 %v1384, 0.0
    %v1439 = vmax.f32 %v1385, 0.0
    %v1440 = vmax.f32 %v1386, 0.0
    %v1441 = vmax.f32 %v1387, 0.0
    %v1442 = vmax.f32 %v1388, 0.0
    %v1443 = vmax.f32 %v1389, 0.0
    %v1444 = vmax.f32 %v1390, 0.0
    %v1445 = vmax.f32 %v1391, 0.0
    %v1446 = vmax.f32 %v1392, 0.0
    %v1447 = vmax.f32 %v1393, 0.0
    %v1448 = vmax.f32 %v1394, 0.0
    %v1449 = vmax.f32 %v1395, 0.0
    %v1450 = vmax.f32 %v1396, 0.0
    %v1451 = vmax.f32 %v1397, 0.0
    %v1452 = vmax.f32 %v1398, 0.0
    %v1453 = vpack.c.bf16 %v1400, %v1399
    %v1454 = vpack.c.bf16 %v1402, %v1401
    %v1455 = vpack.c.bf16 %v1404, %v1403
    %v1456 = vpack.c.bf16 %v1406, %v1405
    %v1457 = vpack.c.bf16 %v1408, %v1407
    %v1458 = vpack.c.bf16 %v1410, %v1409
    %v1459 = vpack.c.bf16 %v1412, %v1411
    %v1460 = vpack.c.bf16 %v1414, %v1413
    %v1461 = vpack.c.bf16 %v1416, %v1415
    %v1462 = vpack.c.bf16 %v1418, %v1417
    %v1463 = vpack.c.bf16 %v1420, %v1419
    %v1464 = vpack.c.bf16 %v1422, %v1421
    %v1465 = vpack.c.bf16 %v1424, %v1423
    %v1466 = vpack.c.bf16 %v1426, %v1425
    %v1467 = vpack.c.bf16 %v1428, %v1427
    %v1468 = vpack.c.bf16 %v1430, %v1429
    %v1469 = vpack.c.bf16 %v1432, %v1431
    %v1470 = vpack.c.bf16 %v1434, %v1433
    %v1471 = vpack.c.bf16 %v1436, %v1435
    %v1472 = vpack.c.bf16 %v1438, %v1437
    %v1473 = vpack.c.bf16 %v1440, %v1439
    %v1474 = vpack.c.bf16 %v1442, %v1441
    %v1475 = vpack.c.bf16 %v1444, %v1443
    %v1476 = vpack.c.bf16 %v1446, %v1445
    %v1477 = vpack.c.bf16 %v1448, %v1447
    %v1478 = vpack.c.bf16 %v1450, %v1449
    %v1479 = vpack.c.bf16 %v1452, %v1451
    %v1480 = vld [vmem:[%s5] sm:$0xf]
    %v1481 = vld [vmem:[%s5 + $0x4] sm:$0xf]
    %v1482 = vld [vmem:[%s5 + $0x8] sm:$0xf]
    %v1483 = vld [vmem:[%s5 + $0xc] sm:$0xf]
    %s1484 = scalar_lea.vmem %s5, 16
    %v1485 = vld [vmem:[%s1484] sm:$0xf]
    %v1486 = vld [vmem:[%s1484 + $0x4] sm:$0xf]
    %v1487 = vld [vmem:[%s1484 + $0x8] sm:$0xf]
    %v1488 = vld [vmem:[%s1484 + $0xc] sm:$0xf]
    %v1493 = vunpack.c.l.b16 %v1485
    %v1494 = vunpack.c.l.b16 %v1486
    %v1495 = vunpack.c.l.b16 %v1487
    %v1496 = vunpack.c.l.b16 %v1488
    %v1497 = vpack.c.b16 %v1494, %v1493
    %v1498 = vpack.c.b16 %v1496, %v1495
    %vm1501 = vcmask 261120
    %v1503 = vsel %vm1501, %v1454, 0
    %1505 = vmatprep.subr.bf16.mxu0 0
    %1506 = vmatpush1.bf16.msra.mxu0 %v1497
    %1507 = vmatprep.subr.bf16.mxu0 0
    %1508 = vmatpush1.bf16.msra.mxu0 %v1498
    %1509 = vmatprep.subr.bf16.mxu0 0
    %1510 = vmatpush1.bf16.msra.mxu0 0
    %1511 = vmatprep.subr.bf16.mxu0 0
    %1512 = vmatpush1.bf16.msra.mxu0 0
    %1513 = vmatprep.subr.bf16.mxu0 0
    %1514 = vmatpush1.bf16.msra.mxu0 0
    %1515 = vmatprep.subr.bf16.mxu0 0
    %1516 = vmatpush1.bf16.msra.mxu0 0
    %1517 = vmatprep.subr.bf16.mxu0 0
    %1518 = vmatpush1.bf16.msra.mxu0 0
    %1519 = vmatprep.subr.bf16.mxu0 0
    %1520 = vmatpush1.bf16.msra.mxu0 0
    %1521 = vmatprep.subr.bf16.mxu0 0
    %1522 = vmatpush1.bf16.msra.mxu0 0
    %1523 = vmatprep.subr.bf16.mxu0 0
    %1524 = vmatpush1.bf16.msra.mxu0 0
    %1525 = vmatprep.subr.bf16.mxu0 0
    %1526 = vmatpush1.bf16.msra.mxu0 0
    %1527 = vmatprep.subr.bf16.mxu0 0
    %1528 = vmatpush1.bf16.msra.mxu0 0
    %1529 = vmatprep.subr.bf16.mxu0 0
    %1530 = vmatpush1.bf16.msra.mxu0 0
    %1531 = vmatprep.subr.bf16.mxu0 0
    %1532 = vmatpush1.bf16.msra.mxu0 0
    %1533 = vmatprep.subr.bf16.mxu0 0
    %1534 = vmatpush1.bf16.msra.mxu0 0
    %1535 = vmatprep.subr.bf16.mxu0 0
    %1536 = vmatpush1.bf16.msra.mxu0 0
    %1537 = vmatprep.mubr.bf16.mxu0 0
    %1538 = vmatmul.mubr.bf16.gmra.mrb[0].mxu0 %v1503
    %v1539 = vpop.f32.mrb[0].mxu0
    %v1540 = vadd.f32 0.0, %v1539
    %v1541 = vpop.f32.mrb[0].mxu0
    %v1542 = vpop.f32.mrb[0].mxu0
    %v1543 = vadd.f32 0.0, %v1542
    %v1544 = vpop.f32.mrb[0].mxu0
    %1545 = vdwg.mxu0
    %v1550 = vunpack.c.l.b16 %v1480
    %v1551 = vunpack.c.l.b16 %v1481
    %v1552 = vunpack.c.l.b16 %v1482
    %v1553 = vunpack.c.l.b16 %v1483
    %v1554 = vpack.c.b16 %v1551, %v1550
    %v1555 = vpack.c.b16 %v1553, %v1552
    %v1559 = vsel %vm1501, %v1453, 0
    %1561 = vmatprep.subr.bf16.mxu0 0
    %1562 = vmatpush1.bf16.msra.mxu0 %v1554
    %1563 = vmatprep.subr.bf16.mxu0 0
    %1564 = vmatpush1.bf16.msra.mxu0 %v1555
    %1565 = vmatprep.subr.bf16.mxu0 0
    %1566 = vmatpush1.bf16.msra.mxu0 0
    %1567 = vmatprep.subr.bf16.mxu0 0
    %1568 = vmatpush1.bf16.msra.mxu0 0
    %1569 = vmatprep.subr.bf16.mxu0 0
    %1570 = vmatpush1.bf16.msra.mxu0 0
    %1571 = vmatprep.subr.bf16.mxu0 0
    %1572 = vmatpush1.bf16.msra.mxu0 0
    %1573 = vmatprep.subr.bf16.mxu0 0
    %1574 = vmatpush1.bf16.msra.mxu0 0
    %1575 = vmatprep.subr.bf16.mxu0 0
    %1576 = vmatpush1.bf16.msra.mxu0 0
    %1577 = vmatprep.subr.bf16.mxu0 0
    %1578 = vmatpush1.bf16.msra.mxu0 0
    %1579 = vmatprep.subr.bf16.mxu0 0
    %1580 = vmatpush1.bf16.msra.mxu0 0
    %1581 = vmatprep.subr.bf16.mxu0 0
    %1582 = vmatpush1.bf16.msra.mxu0 0
    %1583 = vmatprep.subr.bf16.mxu0 0
    %1584 = vmatpush1.bf16.msra.mxu0 0
    %1585 = vmatprep.subr.bf16.mxu0 0
    %1586 = vmatpush1.bf16.msra.mxu0 0
    %1587 = vmatprep.subr.bf16.mxu0 0
    %1588 = vmatpush1.bf16.msra.mxu0 0
    %1589 = vmatprep.subr.bf16.mxu0 0
    %1590 = vmatpush1.bf16.msra.mxu0 0
    %1591 = vmatprep.subr.bf16.mxu0 0
    %1592 = vmatpush1.bf16.msra.mxu0 0
    %1593 = vmatprep.mubr.bf16.mxu0 0
    %1594 = vmatmul.mubr.bf16.gmra.mrb[0].mxu0 %v1559
    %v1595 = vpop.f32.mrb[0].mxu0
    %v1596 = vadd.f32 %v1540, %v1595
    %v1597 = vpop.f32.mrb[0].mxu0
    %v1598 = vpop.f32.mrb[0].mxu0
    %v1599 = vadd.f32 %v1543, %v1598
    %v1600 = vpop.f32.mrb[0].mxu0
    %1601 = vdwg.mxu0
    %s1602 = scalar_lea.vmem %s5, 32
    %v1603 = vld [vmem:[%s1602] sm:$0xf]
    %v1604 = vld [vmem:[%s1602 + $0x4] sm:$0xf]
    %v1605 = vld [vmem:[%s1602 + $0x8] sm:$0xf]
    %v1606 = vld [vmem:[%s1602 + $0xc] sm:$0xf]
    %v1611 = vunpack.c.l.b16 %v1603
    %v1612 = vunpack.c.l.b16 %v1604
    %v1613 = vunpack.c.l.b16 %v1605
    %v1614 = vunpack.c.l.b16 %v1606
    %v1615 = vpack.c.b16 %v1612, %v1611
    %v1616 = vpack.c.b16 %v1614, %v1613
    %v1620 = vsel %vm1501, %v1455, 0
    %1622 = vmatprep.subr.bf16.mxu0 0
    %1623 = vmatpush1.bf16.msra.mxu0 %v1615
    %1624 = vmatprep.subr.bf16.mxu0 0
    %1625 = vmatpush1.bf16.msra.mxu0 %v1616
    %1626 = vmatprep.subr.bf16.mxu0 0
    %1627 = vmatpush1.bf16.msra.mxu0 0
    %1628 = vmatprep.subr.bf16.mxu0 0
    %1629 = vmatpush1.bf16.msra.mxu0 0
    %1630 = vmatprep.subr.bf16.mxu0 0
    %1631 = vmatpush1.bf16.msra.mxu0 0
    %1632 = vmatprep.subr.bf16.mxu0 0
    %1633 = vmatpush1.bf16.msra.mxu0 0
    %1634 = vmatprep.subr.bf16.mxu0 0
    %1635 = vmatpush1.bf16.msra.mxu0 0
    %1636 = vmatprep.subr.bf16.mxu0 0
    %1637 = vmatpush1.bf16.msra.mxu0 0
    %1638 = vmatprep.subr.bf16.mxu0 0
    %1639 = vmatpush1.bf16.msra.mxu0 0
    %1640 = vmatprep.subr.bf16.mxu0 0
    %1641 = vmatpush1.bf16.msra.mxu0 0
    %1642 = vmatprep.subr.bf16.mxu0 0
    %1643 = vmatpush1.bf16.msra.mxu0 0
    %1644 = vmatprep.subr.bf16.mxu0 0
    %1645 = vmatpush1.bf16.msra.mxu0 0
    %1646 = vmatprep.subr.bf16.mxu0 0
    %1647 = vmatpush1.bf16.msra.mxu0 0
    %1648 = vmatprep.subr.bf16.mxu0 0
    %1649 = vmatpush1.bf16.msra.mxu0 0
    %1650 = vmatprep.subr.bf16.mxu0 0
    %1651 = vmatpush1.bf16.msra.mxu0 0
    %1652 = vmatprep.subr.bf16.mxu0 0
    %1653 = vmatpush1.bf16.msra.mxu0 0
    %1654 = vmatprep.mubr.bf16.mxu0 0
    %1655 = vmatmul.mubr.bf16.gmra.mrb[0].mxu0 %v1620
    %v1656 = vpop.f32.mrb[0].mxu0
    %v1657 = vadd.f32 0.0, %v1656
    %v1658 = vpop.f32.mrb[0].mxu0
    %v1659 = vpop.f32.mrb[0].mxu0
    %v1660 = vadd.f32 0.0, %v1659
    %v1661 = vpop.f32.mrb[0].mxu0
    %1662 = vdwg.mxu0
    %v1663 = vadd.f32 %v1596, %v1657
    %v1664 = vadd.f32 %v1599, %v1660
    %s1665 = scalar_lea.vmem %s5, 48
    %v1666 = vld [vmem:[%s1665] sm:$0xf]
    %v1667 = vld [vmem:[%s1665 + $0x4] sm:$0xf]
    %v1668 = vld [vmem:[%s1665 + $0x8] sm:$0xf]
    %v1669 = vld [vmem:[%s1665 + $0xc] sm:$0xf]
    %v1674 = vunpack.c.l.b16 %v1666
    %v1675 = vunpack.c.l.b16 %v1667
    %v1676 = vunpack.c.l.b16 %v1668
    %v1677 = vunpack.c.l.b16 %v1669
    %v1678 = vpack.c.b16 %v1675, %v1674
    %v1679 = vpack.c.b16 %v1677, %v1676
    %v1683 = vsel %vm1501, %v1456, 0
    %1685 = vmatprep.subr.bf16.mxu0 0
    %1686 = vmatpush1.bf16.msra.mxu0 %v1678
    %1687 = vmatprep.subr.bf16.mxu0 0
    %1688 = vmatpush1.bf16.msra.mxu0 %v1679
    %1689 = vmatprep.subr.bf16.mxu0 0
    %1690 = vmatpush1.bf16.msra.mxu0 0
    %1691 = vmatprep.subr.bf16.mxu0 0
    %1692 = vmatpush1.bf16.msra.mxu0 0
    %1693 = vmatprep.subr.bf16.mxu0 0
    %1694 = vmatpush1.bf16.msra.mxu0 0
    %1695 = vmatprep.subr.bf16.mxu0 0
    %1696 = vmatpush1.bf16.msra.mxu0 0
    %1697 = vmatprep.subr.bf16.mxu0 0
    %1698 = vmatpush1.bf16.msra.mxu0 0
    %1699 = vmatprep.subr.bf16.mxu0 0
    %1700 = vmatpush1.bf16.msra.mxu0 0
    %1701 = vmatprep.subr.bf16.mxu0 0
    %1702 = vmatpush1.bf16.msra.mxu0 0
    %1703 = vmatprep.subr.bf16.mxu0 0
    %1704 = vmatpush1.bf16.msra.mxu0 0
    %1705 = vmatprep.subr.bf16.mxu0 0
    %1706 = vmatpush1.bf16.msra.mxu0 0
    %1707 = vmatprep.subr.bf16.mxu0 0
    %1708 = vmatpush1.bf16.msra.mxu0 0
    %1709 = vmatprep.subr.bf16.mxu0 0
    %1710 = vmatpush1.bf16.msra.mxu0 0
    %1711 = vmatprep.subr.bf16.mxu0 0
    %1712 = vmatpush1.bf16.msra.mxu0 0
    %1713 = vmatprep.subr.bf16.mxu0 0
    %1714 = vmatpush1.bf16.msra.mxu0 0
    %1715 = vmatprep.subr.bf16.mxu0 0
    %1716 = vmatpush1.bf16.msra.mxu0 0
    %1717 = vmatprep.mubr.bf16.mxu0 0
    %1718 = vmatmul.mubr.bf16.gmra.mrb[0].mxu0 %v1683
    %v1719 = vpop.f32.mrb[0].mxu0
    %v1720 = vadd.f32 0.0, %v1719
    %v1721 = vpop.f32.mrb[0].mxu0
    %v1722 = vpop.f32.mrb[0].mxu0
    %v1723 = vadd.f32 0.0, %v1722
    %v1724 = vpop.f32.mrb[0].mxu0
    %1725 = vdwg.mxu0
    %v1726 = vadd.f32 %v1663, %v1720
    %v1727 = vadd.f32 %v1664, %v1723
    %s1728 = scalar_lea.vmem %s5, 64
    %v1729 = vld [vmem:[%s1728] sm:$0xf]
    %v1730 = vld [vmem:[%s1728 + $0x4] sm:$0xf]
    %v1731 = vld [vmem:[%s1728 + $0x8] sm:$0xf]
    %v1732 = vld [vmem:[%s1728 + $0xc] sm:$0xf]
    %v1737 = vunpack.c.l.b16 %v1729
    %v1738 = vunpack.c.l.b16 %v1730
    %v1739 = vunpack.c.l.b16 %v1731
    %v1740 = vunpack.c.l.b16 %v1732
    %v1741 = vpack.c.b16 %v1738, %v1737
    %v1742 = vpack.c.b16 %v1740, %v1739
    %v1746 = vsel %vm1501, %v1457, 0
    %1748 = vmatprep.subr.bf16.mxu0 0
    %1749 = vmatpush1.bf16.msra.mxu0 %v1741
    %1750 = vmatprep.subr.bf16.mxu0 0
    %1751 = vmatpush1.bf16.msra.mxu0 %v1742
    %1752 = vmatprep.subr.bf16.mxu0 0
    %1753 = vmatpush1.bf16.msra.mxu0 0
    %1754 = vmatprep.subr.bf16.mxu0 0
    %1755 = vmatpush1.bf16.msra.mxu0 0
    %1756 = vmatprep.subr.bf16.mxu0 0
    %1757 = vmatpush1.bf16.msra.mxu0 0
    %1758 = vmatprep.subr.bf16.mxu0 0
    %1759 = vmatpush1.bf16.msra.mxu0 0
    %1760 = vmatprep.subr.bf16.mxu0 0
    %1761 = vmatpush1.bf16.msra.mxu0 0
    %1762 = vmatprep.subr.bf16.mxu0 0
    %1763 = vmatpush1.bf16.msra.mxu0 0
    %1764 = vmatprep.subr.bf16.mxu0 0
    %1765 = vmatpush1.bf16.msra.mxu0 0
    %1766 = vmatprep.subr.bf16.mxu0 0
    %1767 = vmatpush1.bf16.msra.mxu0 0
    %1768 = vmatprep.subr.bf16.mxu0 0
    %1769 = vmatpush1.bf16.msra.mxu0 0
    %1770 = vmatprep.subr.bf16.mxu0 0
    %1771 = vmatpush1.bf16.msra.mxu0 0
    %1772 = vmatprep.subr.bf16.mxu0 0
    %1773 = vmatpush1.bf16.msra.mxu0 0
    %1774 = vmatprep.subr.bf16.mxu0 0
    %1775 = vmatpush1.bf16.msra.mxu0 0
    %1776 = vmatprep.subr.bf16.mxu0 0
    %1777 = vmatpush1.bf16.msra.mxu0 0
    %1778 = vmatprep.subr.bf16.mxu0 0
    %1779 = vmatpush1.bf16.msra.mxu0 0
    %1780 = vmatprep.mubr.bf16.mxu0 0
    %1781 = vmatmul.mubr.bf16.gmra.mrb[0].mxu0 %v1746
    %v1782 = vpop.f32.mrb[0].mxu0
    %v1783 = vadd.f32 0.0, %v1782
    %v1784 = vpop.f32.mrb[0].mxu0
    %v1785 = vpop.f32.mrb[0].mxu0
    %v1786 = vadd.f32 0.0, %v1785
    %v1787 = vpop.f32.mrb[0].mxu0
    %1788 = vdwg.mxu0
    %v1789 = vadd.f32 %v1726, %v1783
    %v1790 = vadd.f32 %v1727, %v1786
    %s1791 = scalar_lea.vmem %s5, 80
    %v1792 = vld [vmem:[%s1791] sm:$0xf]
    %v1793 = vld [vmem:[%s1791 + $0x4] sm:$0xf]
    %v1794 = vld [vmem:[%s1791 + $0x8] sm:$0xf]
    %v1795 = vld [vmem:[%s1791 + $0xc] sm:$0xf]
    %v1800 = vunpack.c.l.b16 %v1792
    %v1801 = vunpack.c.l.b16 %v1793
    %v1802 = vunpack.c.l.b16 %v1794
    %v1803 = vunpack.c.l.b16 %v1795
    %v1804 = vpack.c.b16 %v1801, %v1800
    %v1805 = vpack.c.b16 %v1803, %v1802
    %v1809 = vsel %vm1501, %v1458, 0
    %1811 = vmatprep.subr.bf16.mxu0 0
    %1812 = vmatpush1.bf16.msra.mxu0 %v1804
    %1813 = vmatprep.subr.bf16.mxu0 0
    %1814 = vmatpush1.bf16.msra.mxu0 %v1805
    %1815 = vmatprep.subr.bf16.mxu0 0
    %1816 = vmatpush1.bf16.msra.mxu0 0
    %1817 = vmatprep.subr.bf16.mxu0 0
    %1818 = vmatpush1.bf16.msra.mxu0 0
    %1819 = vmatprep.subr.bf16.mxu0 0
    %1820 = vmatpush1.bf16.msra.mxu0 0
    %1821 = vmatprep.subr.bf16.mxu0 0
    %1822 = vmatpush1.bf16.msra.mxu0 0
    %1823 = vmatprep.subr.bf16.mxu0 0
    %1824 = vmatpush1.bf16.msra.mxu0 0
    %1825 = vmatprep.subr.bf16.mxu0 0
    %1826 = vmatpush1.bf16.msra.mxu0 0
    %1827 = vmatprep.subr.bf16.mxu0 0
    %1828 = vmatpush1.bf16.msra.mxu0 0
    %1829 = vmatprep.subr.bf16.mxu0 0
    %1830 = vmatpush1.bf16.msra.mxu0 0
    %1831 = vmatprep.subr.bf16.mxu0 0
    %1832 = vmatpush1.bf16.msra.mxu0 0
    %1833 = vmatprep.subr.bf16.mxu0 0
    %1834 = vmatpush1.bf16.msra.mxu0 0
    %1835 = vmatprep.subr.bf16.mxu0 0
    %1836 = vmatpush1.bf16.msra.mxu0 0
    %1837 = vmatprep.subr.bf16.mxu0 0
    %1838 = vmatpush1.bf16.msra.mxu0 0
    %1839 = vmatprep.subr.bf16.mxu0 0
    %1840 = vmatpush1.bf16.msra.mxu0 0
    %1841 = vmatprep.subr.bf16.mxu0 0
    %1842 = vmatpush1.bf16.msra.mxu0 0
    %1843 = vmatprep.mubr.bf16.mxu0 0
    %1844 = vmatmul.mubr.bf16.gmra.mrb[0].mxu0 %v1809
    %v1845 = vpop.f32.mrb[0].mxu0
    %v1846 = vadd.f32 0.0, %v1845
    %v1847 = vpop.f32.mrb[0].mxu0
    %v1848 = vpop.f32.mrb[0].mxu0
    %v1849 = vadd.f32 0.0, %v1848
    %v1850 = vpop.f32.mrb[0].mxu0
    %1851 = vdwg.mxu0
    %v1852 = vadd.f32 %v1789, %v1846
    %v1853 = vadd.f32 %v1790, %v1849
    %s1854 = scalar_lea.vmem %s5, 96
    %v1855 = vld [vmem:[%s1854] sm:$0xf]
    %v1856 = vld [vmem:[%s1854 + $0x4] sm:$0xf]
    %v1857 = vld [vmem:[%s1854 + $0x8] sm:$0xf]
    %v1858 = vld [vmem:[%s1854 + $0xc] sm:$0xf]
    %v1863 = vunpack.c.l.b16 %v1855
    %v1864 = vunpack.c.l.b16 %v1856
    %v1865 = vunpack.c.l.b16 %v1857
    %v1866 = vunpack.c.l.b16 %v1858
    %v1867 = vpack.c.b16 %v1864, %v1863
    %v1868 = vpack.c.b16 %v1866, %v1865
    %v1872 = vsel %vm1501, %v1459, 0
    %1874 = vmatprep.subr.bf16.mxu0 0
    %1875 = vmatpush1.bf16.msra.mxu0 %v1867
    %1876 = vmatprep.subr.bf16.mxu0 0
    %1877 = vmatpush1.bf16.msra.mxu0 %v1868
    %1878 = vmatprep.subr.bf16.mxu0 0
    %1879 = vmatpush1.bf16.msra.mxu0 0
    %1880 = vmatprep.subr.bf16.mxu0 0
    %1881 = vmatpush1.bf16.msra.mxu0 0
    %1882 = vmatprep.subr.bf16.mxu0 0
    %1883 = vmatpush1.bf16.msra.mxu0 0
    %1884 = vmatprep.subr.bf16.mxu0 0
    %1885 = vmatpush1.bf16.msra.mxu0 0
    %1886 = vmatprep.subr.bf16.mxu0 0
    %1887 = vmatpush1.bf16.msra.mxu0 0
    %1888 = vmatprep.subr.bf16.mxu0 0
    %1889 = vmatpush1.bf16.msra.mxu0 0
    %1890 = vmatprep.subr.bf16.mxu0 0
    %1891 = vmatpush1.bf16.msra.mxu0 0
    %1892 = vmatprep.subr.bf16.mxu0 0
    %1893 = vmatpush1.bf16.msra.mxu0 0
    %1894 = vmatprep.subr.bf16.mxu0 0
    %1895 = vmatpush1.bf16.msra.mxu0 0
    %1896 = vmatprep.subr.bf16.mxu0 0
    %1897 = vmatpush1.bf16.msra.mxu0 0
    %1898 = vmatprep.subr.bf16.mxu0 0
    %1899 = vmatpush1.bf16.msra.mxu0 0
    %1900 = vmatprep.subr.bf16.mxu0 0
    %1901 = vmatpush1.bf16.msra.mxu0 0
    %1902 = vmatprep.subr.bf16.mxu0 0
    %1903 = vmatpush1.bf16.msra.mxu0 0
    %1904 = vmatprep.subr.bf16.mxu0 0
    %1905 = vmatpush1.bf16.msra.mxu0 0
    %1906 = vmatprep.mubr.bf16.mxu0 0
    %1907 = vmatmul.mubr.bf16.gmra.mrb[0].mxu0 %v1872
    %v1908 = vpop.f32.mrb[0].mxu0
    %v1909 = vadd.f32 0.0, %v1908
    %v1910 = vpop.f32.mrb[0].mxu0
    %v1911 = vpop.f32.mrb[0].mxu0
    %v1912 = vadd.f32 0.0, %v1911
    %v1913 = vpop.f32.mrb[0].mxu0
    %1914 = vdwg.mxu0
    %v1915 = vadd.f32 %v1852, %v1909
    %v1916 = vadd.f32 %v1853, %v1912
    %s1917 = scalar_lea.vmem %s5, 112
    %v1918 = vld [vmem:[%s1917] sm:$0xf]
    %v1919 = vld [vmem:[%s1917 + $0x4] sm:$0xf]
    %v1920 = vld [vmem:[%s1917 + $0x8] sm:$0xf]
    %v1921 = vld [vmem:[%s1917 + $0xc] sm:$0xf]
    %v1926 = vunpack.c.l.b16 %v1918
    %v1927 = vunpack.c.l.b16 %v1919
    %v1928 = vunpack.c.l.b16 %v1920
    %v1929 = vunpack.c.l.b16 %v1921
    %v1930 = vpack.c.b16 %v1927, %v1926
    %v1931 = vpack.c.b16 %v1929, %v1928
    %v1935 = vsel %vm1501, %v1460, 0
    %1937 = vmatprep.subr.bf16.mxu0 0
    %1938 = vmatpush1.bf16.msra.mxu0 %v1930
    %1939 = vmatprep.subr.bf16.mxu0 0
    %1940 = vmatpush1.bf16.msra.mxu0 %v1931
    %1941 = vmatprep.subr.bf16.mxu0 0
    %1942 = vmatpush1.bf16.msra.mxu0 0
    %1943 = vmatprep.subr.bf16.mxu0 0
    %1944 = vmatpush1.bf16.msra.mxu0 0
    %1945 = vmatprep.subr.bf16.mxu0 0
    %1946 = vmatpush1.bf16.msra.mxu0 0
    %1947 = vmatprep.subr.bf16.mxu0 0
    %1948 = vmatpush1.bf16.msra.mxu0 0
    %1949 = vmatprep.subr.bf16.mxu0 0
    %1950 = vmatpush1.bf16.msra.mxu0 0
    %1951 = vmatprep.subr.bf16.mxu0 0
    %1952 = vmatpush1.bf16.msra.mxu0 0
    %1953 = vmatprep.subr.bf16.mxu0 0
    %1954 = vmatpush1.bf16.msra.mxu0 0
    %1955 = vmatprep.subr.bf16.mxu0 0
    %1956 = vmatpush1.bf16.msra.mxu0 0
    %1957 = vmatprep.subr.bf16.mxu0 0
    %1958 = vmatpush1.bf16.msra.mxu0 0
    %1959 = vmatprep.subr.bf16.mxu0 0
    %1960 = vmatpush1.bf16.msra.mxu0 0
    %1961 = vmatprep.subr.bf16.mxu0 0
    %1962 = vmatpush1.bf16.msra.mxu0 0
    %1963 = vmatprep.subr.bf16.mxu0 0
    %1964 = vmatpush1.bf16.msra.mxu0 0
    %1965 = vmatprep.subr.bf16.mxu0 0
    %1966 = vmatpush1.bf16.msra.mxu0 0
    %1967 = vmatprep.subr.bf16.mxu0 0
    %1968 = vmatpush1.bf16.msra.mxu0 0
    %1969 = vmatprep.mubr.bf16.mxu0 0
    %1970 = vmatmul.mubr.bf16.gmra.mrb[0].mxu0 %v1935
    %v1971 = vpop.f32.mrb[0].mxu0
    %v1972 = vadd.f32 0.0, %v1971
    %v1973 = vpop.f32.mrb[0].mxu0
    %v1974 = vpop.f32.mrb[0].mxu0
    %v1975 = vadd.f32 0.0, %v1974
    %v1976 = vpop.f32.mrb[0].mxu0
    %1977 = vdwg.mxu0
    %v1978 = vadd.f32 %v1915, %v1972
    %v1979 = vadd.f32 %v1916, %v1975
    %s1980 = scalar_lea.vmem %s5, 128
    %v1981 = vld [vmem:[%s1980] sm:$0xf]
    %v1982 = vld [vmem:[%s1980 + $0x4] sm:$0xf]
    %v1983 = vld [vmem:[%s1980 + $0x8] sm:$0xf]
    %v1984 = vld [vmem:[%s1980 + $0xc] sm:$0xf]
    %v1989 = vunpack.c.l.b16 %v1981
    %v1990 = vunpack.c.l.b16 %v1982
    %v1991 = vunpack.c.l.b16 %v1983
    %v1992 = vunpack.c.l.b16 %v1984
    %v1993 = vpack.c.b16 %v1990, %v1989
    %v1994 = vpack.c.b16 %v1992, %v1991
    %v1998 = vsel %vm1501, %v1461, 0
    %2000 = vmatprep.subr.bf16.mxu0 0
    %2001 = vmatpush1.bf16.msra.mxu0 %v1993
    %2002 = vmatprep.subr.bf16.mxu0 0
    %2003 = vmatpush1.bf16.msra.mxu0 %v1994
    %2004 = vmatprep.subr.bf16.mxu0 0
    %2005 = vmatpush1.bf16.msra.mxu0 0
    %2006 = vmatprep.subr.bf16.mxu0 0
    %2007 = vmatpush1.bf16.msra.mxu0 0
    %2008 = vmatprep.subr.bf16.mxu0 0
    %2009 = vmatpush1.bf16.msra.mxu0 0
    %2010 = vmatprep.subr.bf16.mxu0 0
    %2011 = vmatpush1.bf16.msra.mxu0 0
    %2012 = vmatprep.subr.bf16.mxu0 0
    %2013 = vmatpush1.bf16.msra.mxu0 0
    %2014 = vmatprep.subr.bf16.mxu0 0
    %2015 = vmatpush1.bf16.msra.mxu0 0
    %2016 = vmatprep.subr.bf16.mxu0 0
    %2017 = vmatpush1.bf16.msra.mxu0 0
    %2018 = vmatprep.subr.bf16.mxu0 0
    %2019 = vmatpush1.bf16.msra.mxu0 0
    %2020 = vmatprep.subr.bf16.mxu0 0
    %2021 = vmatpush1.bf16.msra.mxu0 0
    %2022 = vmatprep.subr.bf16.mxu0 0
    %2023 = vmatpush1.bf16.msra.mxu0 0
    %2024 = vmatprep.subr.bf16.mxu0 0
    %2025 = vmatpush1.bf16.msra.mxu0 0
    %2026 = vmatprep.subr.bf16.mxu0 0
    %2027 = vmatpush1.bf16.msra.mxu0 0
    %2028 = vmatprep.subr.bf16.mxu0 0
    %2029 = vmatpush1.bf16.msra.mxu0 0
    %2030 = vmatprep.subr.bf16.mxu0 0
    %2031 = vmatpush1.bf16.msra.mxu0 0
    %2032 = vmatprep.mubr.bf16.mxu0 0
    %2033 = vmatmul.mubr.bf16.gmra.mrb[0].mxu0 %v1998
    %v2034 = vpop.f32.mrb[0].mxu0
    %v2035 = vadd.f32 0.0, %v2034
    %v2036 = vpop.f32.mrb[0].mxu0
    %v2037 = vpop.f32.mrb[0].mxu0
    %v2038 = vadd.f32 0.0, %v2037
    %v2039 = vpop.f32.mrb[0].mxu0
    %2040 = vdwg.mxu0
    %v2041 = vadd.f32 %v1978, %v2035
    %v2042 = vadd.f32 %v1979, %v2038
    %s2043 = scalar_lea.vmem %s5, 144
    %v2044 = vld [vmem:[%s2043] sm:$0xf]
    %v2045 = vld [vmem:[%s2043 + $0x4] sm:$0xf]
    %v2046 = vld [vmem:[%s2043 + $0x8] sm:$0xf]
    %v2047 = vld [vmem:[%s2043 + $0xc] sm:$0xf]
    %v2052 = vunpack.c.l.b16 %v2044
    %v2053 = vunpack.c.l.b16 %v2045
    %v2054 = vunpack.c.l.b16 %v2046
    %v2055 = vunpack.c.l.b16 %v2047
    %v2056 = vpack.c.b16 %v2053, %v2052
    %v2057 = vpack.c.b16 %v2055, %v2054
    %v2061 = vsel %vm1501, %v1462, 0
    %2063 = vmatprep.subr.bf16.mxu0 0
    %2064 = vmatpush1.bf16.msra.mxu0 %v2056
    %2065 = vmatprep.subr.bf16.mxu0 0
    %2066 = vmatpush1.bf16.msra.mxu0 %v2057
    %2067 = vmatprep.subr.bf16.mxu0 0
    %2068 = vmatpush1.bf16.msra.mxu0 0
    %2069 = vmatprep.subr.bf16.mxu0 0
    %2070 = vmatpush1.bf16.msra.mxu0 0
    %2071 = vmatprep.subr.bf16.mxu0 0
    %2072 = vmatpush1.bf16.msra.mxu0 0
    %2073 = vmatprep.subr.bf16.mxu0 0
    %2074 = vmatpush1.bf16.msra.mxu0 0
    %2075 = vmatprep.subr.bf16.mxu0 0
    %2076 = vmatpush1.bf16.msra.mxu0 0
    %2077 = vmatprep.subr.bf16.mxu0 0
    %2078 = vmatpush1.bf16.msra.mxu0 0
    %2079 = vmatprep.subr.bf16.mxu0 0
    %2080 = vmatpush1.bf16.msra.mxu0 0
    %2081 = vmatprep.subr.bf16.mxu0 0
    %2082 = vmatpush1.bf16.msra.mxu0 0
    %2083 = vmatprep.subr.bf16.mxu0 0
    %2084 = vmatpush1.bf16.msra.mxu0 0
    %2085 = vmatprep.subr.bf16.mxu0 0
    %2086 = vmatpush1.bf16.msra.mxu0 0
    %2087 = vmatprep.subr.bf16.mxu0 0
    %2088 = vmatpush1.bf16.msra.mxu0 0
    %2089 = vmatprep.subr.bf16.mxu0 0
    %2090 = vmatpush1.bf16.msra.mxu0 0
    %2091 = vmatprep.subr.bf16.mxu0 0
    %2092 = vmatpush1.bf16.msra.mxu0 0
    %2093 = vmatprep.subr.bf16.mxu0 0
    %2094 = vmatpush1.bf16.msra.mxu0 0
    %2095 = vmatprep.mubr.bf16.mxu0 0
    %2096 = vmatmul.mubr.bf16.gmra.mrb[0].mxu0 %v2061
    %v2097 = vpop.f32.mrb[0].mxu0
    %v2098 = vadd.f32 0.0, %v2097
    %v2099 = vpop.f32.mrb[0].mxu0
    %v2100 = vpop.f32.mrb[0].mxu0
    %v2101 = vadd.f32 0.0, %v2100
    %v2102 = vpop.f32.mrb[0].mxu0
    %2103 = vdwg.mxu0
    %v2104 = vadd.f32 %v2041, %v2098
    %v2105 = vadd.f32 %v2042, %v2101
    %s2106 = scalar_lea.vmem %s5, 160
    %v2107 = vld [vmem:[%s2106] sm:$0xf]
    %v2108 = vld [vmem:[%s2106 + $0x4] sm:$0xf]
    %v2109 = vld [vmem:[%s2106 + $0x8] sm:$0xf]
    %v2110 = vld [vmem:[%s2106 + $0xc] sm:$0xf]
    %v2115 = vunpack.c.l.b16 %v2107
    %v2116 = vunpack.c.l.b16 %v2108
    %v2117 = vunpack.c.l.b16 %v2109
    %v2118 = vunpack.c.l.b16 %v2110
    %v2119 = vpack.c.b16 %v2116, %v2115
    %v2120 = vpack.c.b16 %v2118, %v2117
    %v2124 = vsel %vm1501, %v1463, 0
    %2126 = vmatprep.subr.bf16.mxu0 0
    %2127 = vmatpush1.bf16.msra.mxu0 %v2119
    %2128 = vmatprep.subr.bf16.mxu0 0
    %2129 = vmatpush1.bf16.msra.mxu0 %v2120
    %2130 = vmatprep.subr.bf16.mxu0 0
    %2131 = vmatpush1.bf16.msra.mxu0 0
    %2132 = vmatprep.subr.bf16.mxu0 0
    %2133 = vmatpush1.bf16.msra.mxu0 0
    %2134 = vmatprep.subr.bf16.mxu0 0
    %2135 = vmatpush1.bf16.msra.mxu0 0
    %2136 = vmatprep.subr.bf16.mxu0 0
    %2137 = vmatpush1.bf16.msra.mxu0 0
    %2138 = vmatprep.subr.bf16.mxu0 0
    %2139 = vmatpush1.bf16.msra.mxu0 0
    %2140 = vmatprep.subr.bf16.mxu0 0
    %2141 = vmatpush1.bf16.msra.mxu0 0
    %2142 = vmatprep.subr.bf16.mxu0 0
    %2143 = vmatpush1.bf16.msra.mxu0 0
    %2144 = vmatprep.subr.bf16.mxu0 0
    %2145 = vmatpush1.bf16.msra.mxu0 0
    %2146 = vmatprep.subr.bf16.mxu0 0
    %2147 = vmatpush1.bf16.msra.mxu0 0
    %2148 = vmatprep.subr.bf16.mxu0 0
    %2149 = vmatpush1.bf16.msra.mxu0 0
    %2150 = vmatprep.subr.bf16.mxu0 0
    %2151 = vmatpush1.bf16.msra.mxu0 0
    %2152 = vmatprep.subr.bf16.mxu0 0
    %2153 = vmatpush1.bf16.msra.mxu0 0
    %2154 = vmatprep.subr.bf16.mxu0 0
    %2155 = vmatpush1.bf16.msra.mxu0 0
    %2156 = vmatprep.subr.bf16.mxu0 0
    %2157 = vmatpush1.bf16.msra.mxu0 0
    %2158 = vmatprep.mubr.bf16.mxu0 0
    %2159 = vmatmul.mubr.bf16.gmra.mrb[0].mxu0 %v2124
    %v2160 = vpop.f32.mrb[0].mxu0
    %v2161 = vadd.f32 0.0, %v2160
    %v2162 = vpop.f32.mrb[0].mxu0
    %v2163 = vpop.f32.mrb[0].mxu0
    %v2164 = vadd.f32 0.0, %v2163
    %v2165 = vpop.f32.mrb[0].mxu0
    %2166 = vdwg.mxu0
    %v2167 = vadd.f32 %v2104, %v2161
    %v2168 = vadd.f32 %v2105, %v2164
    %s2169 = scalar_lea.vmem %s5, 176
    %v2170 = vld [vmem:[%s2169] sm:$0xf]
    %v2171 = vld [vmem:[%s2169 + $0x4] sm:$0xf]
    %v2172 = vld [vmem:[%s2169 + $0x8] sm:$0xf]
    %v2173 = vld [vmem:[%s2169 + $0xc] sm:$0xf]
    %v2178 = vunpack.c.l.b16 %v2170
    %v2179 = vunpack.c.l.b16 %v2171
    %v2180 = vunpack.c.l.b16 %v2172
    %v2181 = vunpack.c.l.b16 %v2173
    %v2182 = vpack.c.b16 %v2179, %v2178
    %v2183 = vpack.c.b16 %v2181, %v2180
    %v2187 = vsel %vm1501, %v1464, 0
    %2189 = vmatprep.subr.bf16.mxu0 0
    %2190 = vmatpush1.bf16.msra.mxu0 %v2182
    %2191 = vmatprep.subr.bf16.mxu0 0
    %2192 = vmatpush1.bf16.msra.mxu0 %v2183
    %2193 = vmatprep.subr.bf16.mxu0 0
    %2194 = vmatpush1.bf16.msra.mxu0 0
    %2195 = vmatprep.subr.bf16.mxu0 0
    %2196 = vmatpush1.bf16.msra.mxu0 0
    %2197 = vmatprep.subr.bf16.mxu0 0
    %2198 = vmatpush1.bf16.msra.mxu0 0
    %2199 = vmatprep.subr.bf16.mxu0 0
    %2200 = vmatpush1.bf16.msra.mxu0 0
    %2201 = vmatprep.subr.bf16.mxu0 0
    %2202 = vmatpush1.bf16.msra.mxu0 0
    %2203 = vmatprep.subr.bf16.mxu0 0
    %2204 = vmatpush1.bf16.msra.mxu0 0
    %2205 = vmatprep.subr.bf16.mxu0 0
    %2206 = vmatpush1.bf16.msra.mxu0 0
    %2207 = vmatprep.subr.bf16.mxu0 0
    %2208 = vmatpush1.bf16.msra.mxu0 0
    %2209 = vmatprep.subr.bf16.mxu0 0
    %2210 = vmatpush1.bf16.msra.mxu0 0
    %2211 = vmatprep.subr.bf16.mxu0 0
    %2212 = vmatpush1.bf16.msra.mxu0 0
    %2213 = vmatprep.subr.bf16.mxu0 0
    %2214 = vmatpush1.bf16.msra.mxu0 0
    %2215 = vmatprep.subr.bf16.mxu0 0
    %2216 = vmatpush1.bf16.msra.mxu0 0
    %2217 = vmatprep.subr.bf16.mxu0 0
    %2218 = vmatpush1.bf16.msra.mxu0 0
    %2219 = vmatprep.subr.bf16.mxu0 0
    %2220 = vmatpush1.bf16.msra.mxu0 0
    %2221 = vmatprep.mubr.bf16.mxu0 0
    %2222 = vmatmul.mubr.bf16.gmra.mrb[0].mxu0 %v2187
    %v2223 = vpop.f32.mrb[0].mxu0
    %v2224 = vadd.f32 0.0, %v2223
    %v2225 = vpop.f32.mrb[0].mxu0
    %v2226 = vpop.f32.mrb[0].mxu0
    %v2227 = vadd.f32 0.0, %v2226
    %v2228 = vpop.f32.mrb[0].mxu0
    %2229 = vdwg.mxu0
    %v2230 = vadd.f32 %v2167, %v2224
    %v2231 = vadd.f32 %v2168, %v2227
    %s2232 = scalar_lea.vmem %s5, 192
    %v2233 = vld [vmem:[%s2232] sm:$0xf]
    %v2234 = vld [vmem:[%s2232 + $0x4] sm:$0xf]
    %v2235 = vld [vmem:[%s2232 + $0x8] sm:$0xf]
    %v2236 = vld [vmem:[%s2232 + $0xc] sm:$0xf]
    %v2241 = vunpack.c.l.b16 %v2233
    %v2242 = vunpack.c.l.b16 %v2234
    %v2243 = vunpack.c.l.b16 %v2235
    %v2244 = vunpack.c.l.b16 %v2236
    %v2245 = vpack.c.b16 %v2242, %v2241
    %v2246 = vpack.c.b16 %v2244, %v2243
    %v2250 = vsel %vm1501, %v1465, 0
    %2252 = vmatprep.subr.bf16.mxu0 0
    %2253 = vmatpush1.bf16.msra.mxu0 %v2245
    %2254 = vmatprep.subr.bf16.mxu0 0
    %2255 = vmatpush1.bf16.msra.mxu0 %v2246
    %2256 = vmatprep.subr.bf16.mxu0 0
    %2257 = vmatpush1.bf16.msra.mxu0 0
    %2258 = vmatprep.subr.bf16.mxu0 0
    %2259 = vmatpush1.bf16.msra.mxu0 0
    %2260 = vmatprep.subr.bf16.mxu0 0
    %2261 = vmatpush1.bf16.msra.mxu0 0
    %2262 = vmatprep.subr.bf16.mxu0 0
    %2263 = vmatpush1.bf16.msra.mxu0 0
    %2264 = vmatprep.subr.bf16.mxu0 0
    %2265 = vmatpush1.bf16.msra.mxu0 0
    %2266 = vmatprep.subr.bf16.mxu0 0
    %2267 = vmatpush1.bf16.msra.mxu0 0
    %2268 = vmatprep.subr.bf16.mxu0 0
    %2269 = vmatpush1.bf16.msra.mxu0 0
    %2270 = vmatprep.subr.bf16.mxu0 0
    %2271 = vmatpush1.bf16.msra.mxu0 0
    %2272 = vmatprep.subr.bf16.mxu0 0
    %2273 = vmatpush1.bf16.msra.mxu0 0
    %2274 = vmatprep.subr.bf16.mxu0 0
    %2275 = vmatpush1.bf16.msra.mxu0 0
    %2276 = vmatprep.subr.bf16.mxu0 0
    %2277 = vmatpush1.bf16.msra.mxu0 0
    %2278 = vmatprep.subr.bf16.mxu0 0
    %2279 = vmatpush1.bf16.msra.mxu0 0
    %2280 = vmatprep.subr.bf16.mxu0 0
    %2281 = vmatpush1.bf16.msra.mxu0 0
    %2282 = vmatprep.subr.bf16.mxu0 0
    %2283 = vmatpush1.bf16.msra.mxu0 0
    %2284 = vmatprep.mubr.bf16.mxu0 0
    %2285 = vmatmul.mubr.bf16.gmra.mrb[0].mxu0 %v2250
    %v2286 = vpop.f32.mrb[0].mxu0
    %v2287 = vadd.f32 0.0, %v2286
    %v2288 = vpop.f32.mrb[0].mxu0
    %v2289 = vpop.f32.mrb[0].mxu0
    %v2290 = vadd.f32 0.0, %v2289
    %v2291 = vpop.f32.mrb[0].mxu0
    %2292 = vdwg.mxu0
    %v2293 = vadd.f32 %v2230, %v2287
    %v2294 = vadd.f32 %v2231, %v2290
    %s2295 = scalar_lea.vmem %s5, 208
    %v2296 = vld [vmem:[%s2295] sm:$0xf]
    %v2297 = vld [vmem:[%s2295 + $0x4] sm:$0xf]
    %v2298 = vld [vmem:[%s2295 + $0x8] sm:$0xf]
    %v2299 = vld [vmem:[%s2295 + $0xc] sm:$0xf]
    %v2304 = vunpack.c.l.b16 %v2296
    %v2305 = vunpack.c.l.b16 %v2297
    %v2306 = vunpack.c.l.b16 %v2298
    %v2307 = vunpack.c.l.b16 %v2299
    %v2308 = vpack.c.b16 %v2305, %v2304
    %v2309 = vpack.c.b16 %v2307, %v2306
    %v2313 = vsel %vm1501, %v1466, 0
    %2315 = vmatprep.subr.bf16.mxu0 0
    %2316 = vmatpush1.bf16.msra.mxu0 %v2308
    %2317 = vmatprep.subr.bf16.mxu0 0
    %2318 = vmatpush1.bf16.msra.mxu0 %v2309
    %2319 = vmatprep.subr.bf16.mxu0 0
    %2320 = vmatpush1.bf16.msra.mxu0 0
    %2321 = vmatprep.subr.bf16.mxu0 0
    %2322 = vmatpush1.bf16.msra.mxu0 0
    %2323 = vmatprep.subr.bf16.mxu0 0
    %2324 = vmatpush1.bf16.msra.mxu0 0
    %2325 = vmatprep.subr.bf16.mxu0 0
    %2326 = vmatpush1.bf16.msra.mxu0 0
    %2327 = vmatprep.subr.bf16.mxu0 0
    %2328 = vmatpush1.bf16.msra.mxu0 0
    %2329 = vmatprep.subr.bf16.mxu0 0
    %2330 = vmatpush1.bf16.msra.mxu0 0
    %2331 = vmatprep.subr.bf16.mxu0 0
    %2332 = vmatpush1.bf16.msra.mxu0 0
    %2333 = vmatprep.subr.bf16.mxu0 0
    %2334 = vmatpush1.bf16.msra.mxu0 0
    %2335 = vmatprep.subr.bf16.mxu0 0
    %2336 = vmatpush1.bf16.msra.mxu0 0
    %2337 = vmatprep.subr.bf16.mxu0 0
    %2338 = vmatpush1.bf16.msra.mxu0 0
    %2339 = vmatprep.subr.bf16.mxu0 0
    %2340 = vmatpush1.bf16.msra.mxu0 0
    %2341 = vmatprep.subr.bf16.mxu0 0
    %2342 = vmatpush1.bf16.msra.mxu0 0
    %2343 = vmatprep.subr.bf16.mxu0 0
    %2344 = vmatpush1.bf16.msra.mxu0 0
    %2345 = vmatprep.subr.bf16.mxu0 0
    %2346 = vmatpush1.bf16.msra.mxu0 0
    %2347 = vmatprep.mubr.bf16.mxu0 0
    %2348 = vmatmul.mubr.bf16.gmra.mrb[0].mxu0 %v2313
    %v2349 = vpop.f32.mrb[0].mxu0
    %v2350 = vadd.f32 0.0, %v2349
    %v2351 = vpop.f32.mrb[0].mxu0
    %v2352 = vpop.f32.mrb[0].mxu0
    %v2353 = vadd.f32 0.0, %v2352
    %v2354 = vpop.f32.mrb[0].mxu0
    %2355 = vdwg.mxu0
    %v2356 = vadd.f32 %v2293, %v2350
    %v2357 = vadd.f32 %v2294, %v2353
    %s2358 = scalar_lea.vmem %s5, 224
    %v2359 = vld [vmem:[%s2358] sm:$0xf]
    %v2360 = vld [vmem:[%s2358 + $0x4] sm:$0xf]
    %v2361 = vld [vmem:[%s2358 + $0x8] sm:$0xf]
    %v2362 = vld [vmem:[%s2358 + $0xc] sm:$0xf]
    %v2367 = vunpack.c.l.b16 %v2359
    %v2368 = vunpack.c.l.b16 %v2360
    %v2369 = vunpack.c.l.b16 %v2361
    %v2370 = vunpack.c.l.b16 %v2362
    %v2371 = vpack.c.b16 %v2368, %v2367
    %v2372 = vpack.c.b16 %v2370, %v2369
    %v2376 = vsel %vm1501, %v1467, 0
    %2378 = vmatprep.subr.bf16.mxu0 0
    %2379 = vmatpush1.bf16.msra.mxu0 %v2371
    %2380 = vmatprep.subr.bf16.mxu0 0
    %2381 = vmatpush1.bf16.msra.mxu0 %v2372
    %2382 = vmatprep.subr.bf16.mxu0 0
    %2383 = vmatpush1.bf16.msra.mxu0 0
    %2384 = vmatprep.subr.bf16.mxu0 0
    %2385 = vmatpush1.bf16.msra.mxu0 0
    %2386 = vmatprep.subr.bf16.mxu0 0
    %2387 = vmatpush1.bf16.msra.mxu0 0
    %2388 = vmatprep.subr.bf16.mxu0 0
    %2389 = vmatpush1.bf16.msra.mxu0 0
    %2390 = vmatprep.subr.bf16.mxu0 0
    %2391 = vmatpush1.bf16.msra.mxu0 0
    %2392 = vmatprep.subr.bf16.mxu0 0
    %2393 = vmatpush1.bf16.msra.mxu0 0
    %2394 = vmatprep.subr.bf16.mxu0 0
    %2395 = vmatpush1.bf16.msra.mxu0 0
    %2396 = vmatprep.subr.bf16.mxu0 0
    %2397 = vmatpush1.bf16.msra.mxu0 0
    %2398 = vmatprep.subr.bf16.mxu0 0
    %2399 = vmatpush1.bf16.msra.mxu0 0
    %2400 = vmatprep.subr.bf16.mxu0 0
    %2401 = vmatpush1.bf16.msra.mxu0 0
    %2402 = vmatprep.subr.bf16.mxu0 0
    %2403 = vmatpush1.bf16.msra.mxu0 0
    %2404 = vmatprep.subr.bf16.mxu0 0
    %2405 = vmatpush1.bf16.msra.mxu0 0
    %2406 = vmatprep.subr.bf16.mxu0 0
    %2407 = vmatpush1.bf16.msra.mxu0 0
    %2408 = vmatprep.subr.bf16.mxu0 0
    %2409 = vmatpush1.bf16.msra.mxu0 0
    %2410 = vmatprep.mubr.bf16.mxu0 0
    %2411 = vmatmul.mubr.bf16.gmra.mrb[0].mxu0 %v2376
    %v2412 = vpop.f32.mrb[0].mxu0
    %v2413 = vadd.f32 0.0, %v2412
    %v2414 = vpop.f32.mrb[0].mxu0
    %v2415 = vpop.f32.mrb[0].mxu0
    %v2416 = vadd.f32 0.0, %v2415
    %v2417 = vpop.f32.mrb[0].mxu0
    %2418 = vdwg.mxu0
    %v2419 = vadd.f32 %v2356, %v2413
    %v2420 = vadd.f32 %v2357, %v2416
    %s2421 = scalar_lea.vmem %s5, 240
    %v2422 = vld [vmem:[%s2421] sm:$0xf]
    %v2423 = vld [vmem:[%s2421 + $0x4] sm:$0xf]
    %v2424 = vld [vmem:[%s2421 + $0x8] sm:$0xf]
    %v2425 = vld [vmem:[%s2421 + $0xc] sm:$0xf]
    %v2430 = vunpack.c.l.b16 %v2422
    %v2431 = vunpack.c.l.b16 %v2423
    %v2432 = vunpack.c.l.b16 %v2424
    %v2433 = vunpack.c.l.b16 %v2425
    %v2434 = vpack.c.b16 %v2431, %v2430
    %v2435 = vpack.c.b16 %v2433, %v2432
    %v2439 = vsel %vm1501, %v1468, 0
    %2441 = vmatprep.subr.bf16.mxu0 0
    %2442 = vmatpush1.bf16.msra.mxu0 %v2434
    %2443 = vmatprep.subr.bf16.mxu0 0
    %2444 = vmatpush1.bf16.msra.mxu0 %v2435
    %2445 = vmatprep.subr.bf16.mxu0 0
    %2446 = vmatpush1.bf16.msra.mxu0 0
    %2447 = vmatprep.subr.bf16.mxu0 0
    %2448 = vmatpush1.bf16.msra.mxu0 0
    %2449 = vmatprep.subr.bf16.mxu0 0
    %2450 = vmatpush1.bf16.msra.mxu0 0
    %2451 = vmatprep.subr.bf16.mxu0 0
    %2452 = vmatpush1.bf16.msra.mxu0 0
    %2453 = vmatprep.subr.bf16.mxu0 0
    %2454 = vmatpush1.bf16.msra.mxu0 0
    %2455 = vmatprep.subr.bf16.mxu0 0
    %2456 = vmatpush1.bf16.msra.mxu0 0
    %2457 = vmatprep.subr.bf16.mxu0 0
    %2458 = vmatpush1.bf16.msra.mxu0 0
    %2459 = vmatprep.subr.bf16.mxu0 0
    %2460 = vmatpush1.bf16.msra.mxu0 0
    %2461 = vmatprep.subr.bf16.mxu0 0
    %2462 = vmatpush1.bf16.msra.mxu0 0
    %2463 = vmatprep.subr.bf16.mxu0 0
    %2464 = vmatpush1.bf16.msra.mxu0 0
    %2465 = vmatprep.subr.bf16.mxu0 0
    %2466 = vmatpush1.bf16.msra.mxu0 0
    %2467 = vmatprep.subr.bf16.mxu0 0
    %2468 = vmatpush1.bf16.msra.mxu0 0
    %2469 = vmatprep.subr.bf16.mxu0 0
    %2470 = vmatpush1.bf16.msra.mxu0 0
    %2471 = vmatprep.subr.bf16.mxu0 0
    %2472 = vmatpush1.bf16.msra.mxu0 0
    %2473 = vmatprep.mubr.bf16.mxu0 0
    %2474 = vmatmul.mubr.bf16.gmra.mrb[0].mxu0 %v2439
    %v2475 = vpop.f32.mrb[0].mxu0
    %v2476 = vadd.f32 0.0, %v2475
    %v2477 = vpop.f32.mrb[0].mxu0
    %v2478 = vpop.f32.mrb[0].mxu0
    %v2479 = vadd.f32 0.0, %v2478
    %v2480 = vpop.f32.mrb[0].mxu0
    %2481 = vdwg.mxu0
    %v2482 = vadd.f32 %v2419, %v2476
    %v2483 = vadd.f32 %v2420, %v2479
    %s2484 = scalar_lea.vmem %s5, 256
    %v2485 = vld [vmem:[%s2484] sm:$0xf]
    %v2486 = vld [vmem:[%s2484 + $0x4] sm:$0xf]
    %v2487 = vld [vmem:[%s2484 + $0x8] sm:$0xf]
    %v2488 = vld [vmem:[%s2484 + $0xc] sm:$0xf]
    %v2493 = vunpack.c.l.b16 %v2485
    %v2494 = vunpack.c.l.b16 %v2486
    %v2495 = vunpack.c.l.b16 %v2487
    %v2496 = vunpack.c.l.b16 %v2488
    %v2497 = vpack.c.b16 %v2494, %v2493
    %v2498 = vpack.c.b16 %v2496, %v2495
    %v2502 = vsel %vm1501, %v1469, 0
    %2504 = vmatprep.subr.bf16.mxu0 0
    %2505 = vmatpush1.bf16.msra.mxu0 %v2497
    %2506 = vmatprep.subr.bf16.mxu0 0
    %2507 = vmatpush1.bf16.msra.mxu0 %v2498
    %2508 = vmatprep.subr.bf16.mxu0 0
    %2509 = vmatpush1.bf16.msra.mxu0 0
    %2510 = vmatprep.subr.bf16.mxu0 0
    %2511 = vmatpush1.bf16.msra.mxu0 0
    %2512 = vmatprep.subr.bf16.mxu0 0
    %2513 = vmatpush1.bf16.msra.mxu0 0
    %2514 = vmatprep.subr.bf16.mxu0 0
    %2515 = vmatpush1.bf16.msra.mxu0 0
    %2516 = vmatprep.subr.bf16.mxu0 0
    %2517 = vmatpush1.bf16.msra.mxu0 0
    %2518 = vmatprep.subr.bf16.mxu0 0
    %2519 = vmatpush1.bf16.msra.mxu0 0
    %2520 = vmatprep.subr.bf16.mxu0 0
    %2521 = vmatpush1.bf16.msra.mxu0 0
    %2522 = vmatprep.subr.bf16.mxu0 0
    %2523 = vmatpush1.bf16.msra.mxu0 0
    %2524 = vmatprep.subr.bf16.mxu0 0
    %2525 = vmatpush1.bf16.msra.mxu0 0
    %2526 = vmatprep.subr.bf16.mxu0 0
    %2527 = vmatpush1.bf16.msra.mxu0 0
    %2528 = vmatprep.subr.bf16.mxu0 0
    %2529 = vmatpush1.bf16.msra.mxu0 0
    %2530 = vmatprep.subr.bf16.mxu0 0
    %2531 = vmatpush1.bf16.msra.mxu0 0
    %2532 = vmatprep.subr.bf16.mxu0 0
    %2533 = vmatpush1.bf16.msra.mxu0 0
    %2534 = vmatprep.subr.bf16.mxu0 0
    %2535 = vmatpush1.bf16.msra.mxu0 0
    %2536 = vmatprep.mubr.bf16.mxu0 0
    %2537 = vmatmul.mubr.bf16.gmra.mrb[0].mxu0 %v2502
    %v2538 = vpop.f32.mrb[0].mxu0
    %v2539 = vadd.f32 0.0, %v2538
    %v2540 = vpop.f32.mrb[0].mxu0
    %v2541 = vpop.f32.mrb[0].mxu0
    %v2542 = vadd.f32 0.0, %v2541
    %v2543 = vpop.f32.mrb[0].mxu0
    %2544 = vdwg.mxu0
    %v2545 = vadd.f32 %v2482, %v2539
    %v2546 = vadd.f32 %v2483, %v2542
    %s2547 = scalar_lea.vmem %s5, 272
    %v2548 = vld [vmem:[%s2547] sm:$0xf]
    %v2549 = vld [vmem:[%s2547 + $0x4] sm:$0xf]
    %v2550 = vld [vmem:[%s2547 + $0x8] sm:$0xf]
    %v2551 = vld [vmem:[%s2547 + $0xc] sm:$0xf]
    %v2556 = vunpack.c.l.b16 %v2548
    %v2557 = vunpack.c.l.b16 %v2549
    %v2558 = vunpack.c.l.b16 %v2550
    %v2559 = vunpack.c.l.b16 %v2551
    %v2560 = vpack.c.b16 %v2557, %v2556
    %v2561 = vpack.c.b16 %v2559, %v2558
    %v2565 = vsel %vm1501, %v1470, 0
    %2567 = vmatprep.subr.bf16.mxu0 0
    %2568 = vmatpush1.bf16.msra.mxu0 %v2560
    %2569 = vmatprep.subr.bf16.mxu0 0
    %2570 = vmatpush1.bf16.msra.mxu0 %v2561
    %2571 = vmatprep.subr.bf16.mxu0 0
    %2572 = vmatpush1.bf16.msra.mxu0 0
    %2573 = vmatprep.subr.bf16.mxu0 0
    %2574 = vmatpush1.bf16.msra.mxu0 0
    %2575 = vmatprep.subr.bf16.mxu0 0
    %2576 = vmatpush1.bf16.msra.mxu0 0
    %2577 = vmatprep.subr.bf16.mxu0 0
    %2578 = vmatpush1.bf16.msra.mxu0 0
    %2579 = vmatprep.subr.bf16.mxu0 0
    %2580 = vmatpush1.bf16.msra.mxu0 0
    %2581 = vmatprep.subr.bf16.mxu0 0
    %2582 = vmatpush1.bf16.msra.mxu0 0
    %2583 = vmatprep.subr.bf16.mxu0 0
    %2584 = vmatpush1.bf16.msra.mxu0 0
    %2585 = vmatprep.subr.bf16.mxu0 0
    %2586 = vmatpush1.bf16.msra.mxu0 0
    %2587 = vmatprep.subr.bf16.mxu0 0
    %2588 = vmatpush1.bf16.msra.mxu0 0
    %2589 = vmatprep.subr.bf16.mxu0 0
    %2590 = vmatpush1.bf16.msra.mxu0 0
    %2591 = vmatprep.subr.bf16.mxu0 0
    %2592 = vmatpush1.bf16.msra.mxu0 0
    %2593 = vmatprep.subr.bf16.mxu0 0
    %2594 = vmatpush1.bf16.msra.mxu0 0
    %2595 = vmatprep.subr.bf16.mxu0 0
    %2596 = vmatpush1.bf16.msra.mxu0 0
    %2597 = vmatprep.subr.bf16.mxu0 0
    %2598 = vmatpush1.bf16.msra.mxu0 0
    %2599 = vmatprep.mubr.bf16.mxu0 0
    %2600 = vmatmul.mubr.bf16.gmra.mrb[0].mxu0 %v2565
    %v2601 = vpop.f32.mrb[0].mxu0
    %v2602 = vadd.f32 0.0, %v2601
    %v2603 = vpop.f32.mrb[0].mxu0
    %v2604 = vpop.f32.mrb[0].mxu0
    %v2605 = vadd.f32 0.0, %v2604
    %v2606 = vpop.f32.mrb[0].mxu0
    %2607 = vdwg.mxu0
    %v2608 = vadd.f32 %v2545, %v2602
    %v2609 = vadd.f32 %v2546, %v2605
    %s2610 = scalar_lea.vmem %s5, 288
    %v2611 = vld [vmem:[%s2610] sm:$0xf]
    %v2612 = vld [vmem:[%s2610 + $0x4] sm:$0xf]
    %v2613 = vld [vmem:[%s2610 + $0x8] sm:$0xf]
    %v2614 = vld [vmem:[%s2610 + $0xc] sm:$0xf]
    %v2619 = vunpack.c.l.b16 %v2611
    %v2620 = vunpack.c.l.b16 %v2612
    %v2621 = vunpack.c.l.b16 %v2613
    %v2622 = vunpack.c.l.b16 %v2614
    %v2623 = vpack.c.b16 %v2620, %v2619
    %v2624 = vpack.c.b16 %v2622, %v2621
    %v2628 = vsel %vm1501, %v1471, 0
    %2630 = vmatprep.subr.bf16.mxu0 0
    %2631 = vmatpush1.bf16.msra.mxu0 %v2623
    %2632 = vmatprep.subr.bf16.mxu0 0
    %2633 = vmatpush1.bf16.msra.mxu0 %v2624
    %2634 = vmatprep.subr.bf16.mxu0 0
    %2635 = vmatpush1.bf16.msra.mxu0 0
    %2636 = vmatprep.subr.bf16.mxu0 0
    %2637 = vmatpush1.bf16.msra.mxu0 0
    %2638 = vmatprep.subr.bf16.mxu0 0
    %2639 = vmatpush1.bf16.msra.mxu0 0
    %2640 = vmatprep.subr.bf16.mxu0 0
    %2641 = vmatpush1.bf16.msra.mxu0 0
    %2642 = vmatprep.subr.bf16.mxu0 0
    %2643 = vmatpush1.bf16.msra.mxu0 0
    %2644 = vmatprep.subr.bf16.mxu0 0
    %2645 = vmatpush1.bf16.msra.mxu0 0
    %2646 = vmatprep.subr.bf16.mxu0 0
    %2647 = vmatpush1.bf16.msra.mxu0 0
    %2648 = vmatprep.subr.bf16.mxu0 0
    %2649 = vmatpush1.bf16.msra.mxu0 0
    %2650 = vmatprep.subr.bf16.mxu0 0
    %2651 = vmatpush1.bf16.msra.mxu0 0
    %2652 = vmatprep.subr.bf16.mxu0 0
    %2653 = vmatpush1.bf16.msra.mxu0 0
    %2654 = vmatprep.subr.bf16.mxu0 0
    %2655 = vmatpush1.bf16.msra.mxu0 0
    %2656 = vmatprep.subr.bf16.mxu0 0
    %2657 = vmatpush1.bf16.msra.mxu0 0
    %2658 = vmatprep.subr.bf16.mxu0 0
    %2659 = vmatpush1.bf16.msra.mxu0 0
    %2660 = vmatprep.subr.bf16.mxu0 0
    %2661 = vmatpush1.bf16.msra.mxu0 0
    %2662 = vmatprep.mubr.bf16.mxu0 0
    %2663 = vmatmul.mubr.bf16.gmra.mrb[0].mxu0 %v2628
    %v2664 = vpop.f32.mrb[0].mxu0
    %v2665 = vadd.f32 0.0, %v2664
    %v2666 = vpop.f32.mrb[0].mxu0
    %v2667 = vpop.f32.mrb[0].mxu0
    %v2668 = vadd.f32 0.0, %v2667
    %v2669 = vpop.f32.mrb[0].mxu0
    %2670 = vdwg.mxu0
    %v2671 = vadd.f32 %v2608, %v2665
    %v2672 = vadd.f32 %v2609, %v2668
    %s2673 = scalar_lea.vmem %s5, 304
    %v2674 = vld [vmem:[%s2673] sm:$0xf]
    %v2675 = vld [vmem:[%s2673 + $0x4] sm:$0xf]
    %v2676 = vld [vmem:[%s2673 + $0x8] sm:$0xf]
    %v2677 = vld [vmem:[%s2673 + $0xc] sm:$0xf]
    %v2682 = vunpack.c.l.b16 %v2674
    %v2683 = vunpack.c.l.b16 %v2675
    %v2684 = vunpack.c.l.b16 %v2676
    %v2685 = vunpack.c.l.b16 %v2677
    %v2686 = vpack.c.b16 %v2683, %v2682
    %v2687 = vpack.c.b16 %v2685, %v2684
    %v2691 = vsel %vm1501, %v1472, 0
    %2693 = vmatprep.subr.bf16.mxu0 0
    %2694 = vmatpush1.bf16.msra.mxu0 %v2686
    %2695 = vmatprep.subr.bf16.mxu0 0
    %2696 = vmatpush1.bf16.msra.mxu0 %v2687
    %2697 = vmatprep.subr.bf16.mxu0 0
    %2698 = vmatpush1.bf16.msra.mxu0 0
    %2699 = vmatprep.subr.bf16.mxu0 0
    %2700 = vmatpush1.bf16.msra.mxu0 0
    %2701 = vmatprep.subr.bf16.mxu0 0
    %2702 = vmatpush1.bf16.msra.mxu0 0
    %2703 = vmatprep.subr.bf16.mxu0 0
    %2704 = vmatpush1.bf16.msra.mxu0 0
    %2705 = vmatprep.subr.bf16.mxu0 0
    %2706 = vmatpush1.bf16.msra.mxu0 0
    %2707 = vmatprep.subr.bf16.mxu0 0
    %2708 = vmatpush1.bf16.msra.mxu0 0
    %2709 = vmatprep.subr.bf16.mxu0 0
    %2710 = vmatpush1.bf16.msra.mxu0 0
    %2711 = vmatprep.subr.bf16.mxu0 0
    %2712 = vmatpush1.bf16.msra.mxu0 0
    %2713 = vmatprep.subr.bf16.mxu0 0
    %2714 = vmatpush1.bf16.msra.mxu0 0
    %2715 = vmatprep.subr.bf16.mxu0 0
    %2716 = vmatpush1.bf16.msra.mxu0 0
    %2717 = vmatprep.subr.bf16.mxu0 0
    %2718 = vmatpush1.bf16.msra.mxu0 0
    %2719 = vmatprep.subr.bf16.mxu0 0
    %2720 = vmatpush1.bf16.msra.mxu0 0
    %2721 = vmatprep.subr.bf16.mxu0 0
    %2722 = vmatpush1.bf16.msra.mxu0 0
    %2723 = vmatprep.subr.bf16.mxu0 0
    %2724 = vmatpush1.bf16.msra.mxu0 0
    %2725 = vmatprep.mubr.bf16.mxu0 0
    %2726 = vmatmul.mubr.bf16.gmra.mrb[0].mxu0 %v2691
    %v2727 = vpop.f32.mrb[0].mxu0
    %v2728 = vadd.f32 0.0, %v2727
    %v2729 = vpop.f32.mrb[0].mxu0
    %v2730 = vpop.f32.mrb[0].mxu0
    %v2731 = vadd.f32 0.0, %v2730
    %v2732 = vpop.f32.mrb[0].mxu0
    %2733 = vdwg.mxu0
    %v2734 = vadd.f32 %v2671, %v2728
    %v2735 = vadd.f32 %v2672, %v2731
    %s2736 = scalar_lea.vmem %s5, 320
    %v2737 = vld [vmem:[%s2736] sm:$0xf]
    %v2738 = vld [vmem:[%s2736 + $0x4] sm:$0xf]
    %v2739 = vld [vmem:[%s2736 + $0x8] sm:$0xf]
    %v2740 = vld [vmem:[%s2736 + $0xc] sm:$0xf]
    %v2745 = vunpack.c.l.b16 %v2737
    %v2746 = vunpack.c.l.b16 %v2738
    %v2747 = vunpack.c.l.b16 %v2739
    %v2748 = vunpack.c.l.b16 %v2740
    %v2749 = vpack.c.b16 %v2746, %v2745
    %v2750 = vpack.c.b16 %v2748, %v2747
    %v2754 = vsel %vm1501, %v1473, 0
    %2756 = vmatprep.subr.bf16.mxu0 0
    %2757 = vmatpush1.bf16.msra.mxu0 %v2749
    %2758 = vmatprep.subr.bf16.mxu0 0
    %2759 = vmatpush1.bf16.msra.mxu0 %v2750
    %2760 = vmatprep.subr.bf16.mxu0 0
    %2761 = vmatpush1.bf16.msra.mxu0 0
    %2762 = vmatprep.subr.bf16.mxu0 0
    %2763 = vmatpush1.bf16.msra.mxu0 0
    %2764 = vmatprep.subr.bf16.mxu0 0
    %2765 = vmatpush1.bf16.msra.mxu0 0
    %2766 = vmatprep.subr.bf16.mxu0 0
    %2767 = vmatpush1.bf16.msra.mxu0 0
    %2768 = vmatprep.subr.bf16.mxu0 0
    %2769 = vmatpush1.bf16.msra.mxu0 0
    %2770 = vmatprep.subr.bf16.mxu0 0
    %2771 = vmatpush1.bf16.msra.mxu0 0
    %2772 = vmatprep.subr.bf16.mxu0 0
    %2773 = vmatpush1.bf16.msra.mxu0 0
    %2774 = vmatprep.subr.bf16.mxu0 0
    %2775 = vmatpush1.bf16.msra.mxu0 0
    %2776 = vmatprep.subr.bf16.mxu0 0
    %2777 = vmatpush1.bf16.msra.mxu0 0
    %2778 = vmatprep.subr.bf16.mxu0 0
    %2779 = vmatpush1.bf16.msra.mxu0 0
    %2780 = vmatprep.subr.bf16.mxu0 0
    %2781 = vmatpush1.bf16.msra.mxu0 0
    %2782 = vmatprep.subr.bf16.mxu0 0
    %2783 = vmatpush1.bf16.msra.mxu0 0
    %2784 = vmatprep.subr.bf16.mxu0 0
    %2785 = vmatpush1.bf16.msra.mxu0 0
    %2786 = vmatprep.subr.bf16.mxu0 0
    %2787 = vmatpush1.bf16.msra.mxu0 0
    %2788 = vmatprep.mubr.bf16.mxu0 0
    %2789 = vmatmul.mubr.bf16.gmra.mrb[0].mxu0 %v2754
    %v2790 = vpop.f32.mrb[0].mxu0
    %v2791 = vadd.f32 0.0, %v2790
    %v2792 = vpop.f32.mrb[0].mxu0
    %v2793 = vpop.f32.mrb[0].mxu0
    %v2794 = vadd.f32 0.0, %v2793
    %v2795 = vpop.f32.mrb[0].mxu0
    %2796 = vdwg.mxu0
    %v2797 = vadd.f32 %v2734, %v2791
    %v2798 = vadd.f32 %v2735, %v2794
    %s2799 = scalar_lea.vmem %s5, 336
    %v2800 = vld [vmem:[%s2799] sm:$0xf]
    %v2801 = vld [vmem:[%s2799 + $0x4] sm:$0xf]
    %v2802 = vld [vmem:[%s2799 + $0x8] sm:$0xf]
    %v2803 = vld [vmem:[%s2799 + $0xc] sm:$0xf]
    %v2808 = vunpack.c.l.b16 %v2800
    %v2809 = vunpack.c.l.b16 %v2801
    %v2810 = vunpack.c.l.b16 %v2802
    %v2811 = vunpack.c.l.b16 %v2803
    %v2812 = vpack.c.b16 %v2809, %v2808
    %v2813 = vpack.c.b16 %v2811, %v2810
    %v2817 = vsel %vm1501, %v1474, 0
    %2819 = vmatprep.subr.bf16.mxu0 0
    %2820 = vmatpush1.bf16.msra.mxu0 %v2812
    %2821 = vmatprep.subr.bf16.mxu0 0
    %2822 = vmatpush1.bf16.msra.mxu0 %v2813
    %2823 = vmatprep.subr.bf16.mxu0 0
    %2824 = vmatpush1.bf16.msra.mxu0 0
    %2825 = vmatprep.subr.bf16.mxu0 0
    %2826 = vmatpush1.bf16.msra.mxu0 0
    %2827 = vmatprep.subr.bf16.mxu0 0
    %2828 = vmatpush1.bf16.msra.mxu0 0
    %2829 = vmatprep.subr.bf16.mxu0 0
    %2830 = vmatpush1.bf16.msra.mxu0 0
    %2831 = vmatprep.subr.bf16.mxu0 0
    %2832 = vmatpush1.bf16.msra.mxu0 0
    %2833 = vmatprep.subr.bf16.mxu0 0
    %2834 = vmatpush1.bf16.msra.mxu0 0
    %2835 = vmatprep.subr.bf16.mxu0 0
    %2836 = vmatpush1.bf16.msra.mxu0 0
    %2837 = vmatprep.subr.bf16.mxu0 0
    %2838 = vmatpush1.bf16.msra.mxu0 0
    %2839 = vmatprep.subr.bf16.mxu0 0
    %2840 = vmatpush1.bf16.msra.mxu0 0
    %2841 = vmatprep.subr.bf16.mxu0 0
    %2842 = vmatpush1.bf16.msra.mxu0 0
    %2843 = vmatprep.subr.bf16.mxu0 0
    %2844 = vmatpush1.bf16.msra.mxu0 0
    %2845 = vmatprep.subr.bf16.mxu0 0
    %2846 = vmatpush1.bf16.msra.mxu0 0
    %2847 = vmatprep.subr.bf16.mxu0 0
    %2848 = vmatpush1.bf16.msra.mxu0 0
    %2849 = vmatprep.subr.bf16.mxu0 0
    %2850 = vmatpush1.bf16.msra.mxu0 0
    %2851 = vmatprep.mubr.bf16.mxu0 0
    %2852 = vmatmul.mubr.bf16.gmra.mrb[0].mxu0 %v2817
    %v2853 = vpop.f32.mrb[0].mxu0
    %v2854 = vadd.f32 0.0, %v2853
    %v2855 = vpop.f32.mrb[0].mxu0
    %v2856 = vpop.f32.mrb[0].mxu0
    %v2857 = vadd.f32 0.0, %v2856
    %v2858 = vpop.f32.mrb[0].mxu0
    %2859 = vdwg.mxu0
    %v2860 = vadd.f32 %v2797, %v2854
    %v2861 = vadd.f32 %v2798, %v2857
    %s2862 = scalar_lea.vmem %s5, 352
    %v2863 = vld [vmem:[%s2862] sm:$0xf]
    %v2864 = vld [vmem:[%s2862 + $0x4] sm:$0xf]
    %v2865 = vld [vmem:[%s2862 + $0x8] sm:$0xf]
    %v2866 = vld [vmem:[%s2862 + $0xc] sm:$0xf]
    %v2871 = vunpack.c.l.b16 %v2863
    %v2872 = vunpack.c.l.b16 %v2864
    %v2873 = vunpack.c.l.b16 %v2865
    %v2874 = vunpack.c.l.b16 %v2866
    %v2875 = vpack.c.b16 %v2872, %v2871
    %v2876 = vpack.c.b16 %v2874, %v2873
    %v2880 = vsel %vm1501, %v1475, 0
    %2882 = vmatprep.subr.bf16.mxu0 0
    %2883 = vmatpush1.bf16.msra.mxu0 %v2875
    %2884 = vmatprep.subr.bf16.mxu0 0
    %2885 = vmatpush1.bf16.msra.mxu0 %v2876
    %2886 = vmatprep.subr.bf16.mxu0 0
    %2887 = vmatpush1.bf16.msra.mxu0 0
    %2888 = vmatprep.subr.bf16.mxu0 0
    %2889 = vmatpush1.bf16.msra.mxu0 0
    %2890 = vmatprep.subr.bf16.mxu0 0
    %2891 = vmatpush1.bf16.msra.mxu0 0
    %2892 = vmatprep.subr.bf16.mxu0 0
    %2893 = vmatpush1.bf16.msra.mxu0 0
    %2894 = vmatprep.subr.bf16.mxu0 0
    %2895 = vmatpush1.bf16.msra.mxu0 0
    %2896 = vmatprep.subr.bf16.mxu0 0
    %2897 = vmatpush1.bf16.msra.mxu0 0
    %2898 = vmatprep.subr.bf16.mxu0 0
    %2899 = vmatpush1.bf16.msra.mxu0 0
    %2900 = vmatprep.subr.bf16.mxu0 0
    %2901 = vmatpush1.bf16.msra.mxu0 0
    %2902 = vmatprep.subr.bf16.mxu0 0
    %2903 = vmatpush1.bf16.msra.mxu0 0
    %2904 = vmatprep.subr.bf16.mxu0 0
    %2905 = vmatpush1.bf16.msra.mxu0 0
    %2906 = vmatprep.subr.bf16.mxu0 0
    %2907 = vmatpush1.bf16.msra.mxu0 0
    %2908 = vmatprep.subr.bf16.mxu0 0
    %2909 = vmatpush1.bf16.msra.mxu0 0
    %2910 = vmatprep.subr.bf16.mxu0 0
    %2911 = vmatpush1.bf16.msra.mxu0 0
    %2912 = vmatprep.subr.bf16.mxu0 0
    %2913 = vmatpush1.bf16.msra.mxu0 0
    %2914 = vmatprep.mubr.bf16.mxu0 0
    %2915 = vmatmul.mubr.bf16.gmra.mrb[0].mxu0 %v2880
    %v2916 = vpop.f32.mrb[0].mxu0
    %v2917 = vadd.f32 0.0, %v2916
    %v2918 = vpop.f32.mrb[0].mxu0
    %v2919 = vpop.f32.mrb[0].mxu0
    %v2920 = vadd.f32 0.0, %v2919
    %v2921 = vpop.f32.mrb[0].mxu0
    %2922 = vdwg.mxu0
    %v2923 = vadd.f32 %v2860, %v2917
    %v2924 = vadd.f32 %v2861, %v2920
    %s2925 = scalar_lea.vmem %s5, 368
    %v2926 = vld [vmem:[%s2925] sm:$0xf]
    %v2927 = vld [vmem:[%s2925 + $0x4] sm:$0xf]
    %v2928 = vld [vmem:[%s2925 + $0x8] sm:$0xf]
    %v2929 = vld [vmem:[%s2925 + $0xc] sm:$0xf]
    %v2934 = vunpack.c.l.b16 %v2926
    %v2935 = vunpack.c.l.b16 %v2927
    %v2936 = vunpack.c.l.b16 %v2928
    %v2937 = vunpack.c.l.b16 %v2929
    %v2938 = vpack.c.b16 %v2935, %v2934
    %v2939 = vpack.c.b16 %v2937, %v2936
    %v2943 = vsel %vm1501, %v1476, 0
    %2945 = vmatprep.subr.bf16.mxu0 0
    %2946 = vmatpush1.bf16.msra.mxu0 %v2938
    %2947 = vmatprep.subr.bf16.mxu0 0
    %2948 = vmatpush1.bf16.msra.mxu0 %v2939
    %2949 = vmatprep.subr.bf16.mxu0 0
    %2950 = vmatpush1.bf16.msra.mxu0 0
    %2951 = vmatprep.subr.bf16.mxu0 0
    %2952 = vmatpush1.bf16.msra.mxu0 0
    %2953 = vmatprep.subr.bf16.mxu0 0
    %2954 = vmatpush1.bf16.msra.mxu0 0
    %2955 = vmatprep.subr.bf16.mxu0 0
    %2956 = vmatpush1.bf16.msra.mxu0 0
    %2957 = vmatprep.subr.bf16.mxu0 0
    %2958 = vmatpush1.bf16.msra.mxu0 0
    %2959 = vmatprep.subr.bf16.mxu0 0
    %2960 = vmatpush1.bf16.msra.mxu0 0
    %2961 = vmatprep.subr.bf16.mxu0 0
    %2962 = vmatpush1.bf16.msra.mxu0 0
    %2963 = vmatprep.subr.bf16.mxu0 0
    %2964 = vmatpush1.bf16.msra.mxu0 0
    %2965 = vmatprep.subr.bf16.mxu0 0
    %2966 = vmatpush1.bf16.msra.mxu0 0
    %2967 = vmatprep.subr.bf16.mxu0 0
    %2968 = vmatpush1.bf16.msra.mxu0 0
    %2969 = vmatprep.subr.bf16.mxu0 0
    %2970 = vmatpush1.bf16.msra.mxu0 0
    %2971 = vmatprep.subr.bf16.mxu0 0
    %2972 = vmatpush1.bf16.msra.mxu0 0
    %2973 = vmatprep.subr.bf16.mxu0 0
    %2974 = vmatpush1.bf16.msra.mxu0 0
    %2975 = vmatprep.subr.bf16.mxu0 0
    %2976 = vmatpush1.bf16.msra.mxu0 0
    %2977 = vmatprep.mubr.bf16.mxu0 0
    %2978 = vmatmul.mubr.bf16.gmra.mrb[0].mxu0 %v2943
    %v2979 = vpop.f32.mrb[0].mxu0
    %v2980 = vadd.f32 0.0, %v2979
    %v2981 = vpop.f32.mrb[0].mxu0
    %v2982 = vpop.f32.mrb[0].mxu0
    %v2983 = vadd.f32 0.0, %v2982
    %v2984 = vpop.f32.mrb[0].mxu0
    %2985 = vdwg.mxu0
    %v2986 = vadd.f32 %v2923, %v2980
    %v2987 = vadd.f32 %v2924, %v2983
    %s2988 = scalar_lea.vmem %s5, 384
    %v2989 = vld [vmem:[%s2988] sm:$0xf]
    %v2990 = vld [vmem:[%s2988 + $0x4] sm:$0xf]
    %v2991 = vld [vmem:[%s2988 + $0x8] sm:$0xf]
    %v2992 = vld [vmem:[%s2988 + $0xc] sm:$0xf]
    %v2997 = vunpack.c.l.b16 %v2989
    %v2998 = vunpack.c.l.b16 %v2990
    %v2999 = vunpack.c.l.b16 %v2991
    %v3000 = vunpack.c.l.b16 %v2992
    %v3001 = vpack.c.b16 %v2998, %v2997
    %v3002 = vpack.c.b16 %v3000, %v2999
    %v3006 = vsel %vm1501, %v1477, 0
    %3008 = vmatprep.subr.bf16.mxu0 0
    %3009 = vmatpush1.bf16.msra.mxu0 %v3001
    %3010 = vmatprep.subr.bf16.mxu0 0
    %3011 = vmatpush1.bf16.msra.mxu0 %v3002
    %3012 = vmatprep.subr.bf16.mxu0 0
    %3013 = vmatpush1.bf16.msra.mxu0 0
    %3014 = vmatprep.subr.bf16.mxu0 0
    %3015 = vmatpush1.bf16.msra.mxu0 0
    %3016 = vmatprep.subr.bf16.mxu0 0
    %3017 = vmatpush1.bf16.msra.mxu0 0
    %3018 = vmatprep.subr.bf16.mxu0 0
    %3019 = vmatpush1.bf16.msra.mxu0 0
    %3020 = vmatprep.subr.bf16.mxu0 0
    %3021 = vmatpush1.bf16.msra.mxu0 0
    %3022 = vmatprep.subr.bf16.mxu0 0
    %3023 = vmatpush1.bf16.msra.mxu0 0
    %3024 = vmatprep.subr.bf16.mxu0 0
    %3025 = vmatpush1.bf16.msra.mxu0 0
    %3026 = vmatprep.subr.bf16.mxu0 0
    %3027 = vmatpush1.bf16.msra.mxu0 0
    %3028 = vmatprep.subr.bf16.mxu0 0
    %3029 = vmatpush1.bf16.msra.mxu0 0
    %3030 = vmatprep.subr.bf16.mxu0 0
    %3031 = vmatpush1.bf16.msra.mxu0 0
    %3032 = vmatprep.subr.bf16.mxu0 0
    %3033 = vmatpush1.bf16.msra.mxu0 0
    %3034 = vmatprep.subr.bf16.mxu0 0
    %3035 = vmatpush1.bf16.msra.mxu0 0
    %3036 = vmatprep.subr.bf16.mxu0 0
    %3037 = vmatpush1.bf16.msra.mxu0 0
    %3038 = vmatprep.subr.bf16.mxu0 0
    %3039 = vmatpush1.bf16.msra.mxu0 0
    %3040 = vmatprep.mubr.bf16.mxu0 0
    %3041 = vmatmul.mubr.bf16.gmra.mrb[0].mxu0 %v3006
    %v3042 = vpop.f32.mrb[0].mxu0
    %v3043 = vadd.f32 0.0, %v3042
    %v3044 = vpop.f32.mrb[0].mxu0
    %v3045 = vpop.f32.mrb[0].mxu0
    %v3046 = vadd.f32 0.0, %v3045
    %v3047 = vpop.f32.mrb[0].mxu0
    %3048 = vdwg.mxu0
    %v3049 = vadd.f32 %v2986, %v3043
    %v3050 = vadd.f32 %v2987, %v3046
    %s3051 = scalar_lea.vmem %s5, 400
    %v3052 = vld [vmem:[%s3051] sm:$0xf]
    %v3053 = vld [vmem:[%s3051 + $0x4] sm:$0xf]
    %v3054 = vld [vmem:[%s3051 + $0x8] sm:$0xf]
    %v3055 = vld [vmem:[%s3051 + $0xc] sm:$0xf]
    %v3060 = vunpack.c.l.b16 %v3052
    %v3061 = vunpack.c.l.b16 %v3053
    %v3062 = vunpack.c.l.b16 %v3054
    %v3063 = vunpack.c.l.b16 %v3055
    %v3064 = vpack.c.b16 %v3061, %v3060
    %v3065 = vpack.c.b16 %v3063, %v3062
    %v3069 = vsel %vm1501, %v1478, 0
    %3071 = vmatprep.subr.bf16.mxu0 0
    %3072 = vmatpush1.bf16.msra.mxu0 %v3064
    %3073 = vmatprep.subr.bf16.mxu0 0
    %3074 = vmatpush1.bf16.msra.mxu0 %v3065
    %3075 = vmatprep.subr.bf16.mxu0 0
    %3076 = vmatpush1.bf16.msra.mxu0 0
    %3077 = vmatprep.subr.bf16.mxu0 0
    %3078 = vmatpush1.bf16.msra.mxu0 0
    %3079 = vmatprep.subr.bf16.mxu0 0
    %3080 = vmatpush1.bf16.msra.mxu0 0
    %3081 = vmatprep.subr.bf16.mxu0 0
    %3082 = vmatpush1.bf16.msra.mxu0 0
    %3083 = vmatprep.subr.bf16.mxu0 0
    %3084 = vmatpush1.bf16.msra.mxu0 0
    %3085 = vmatprep.subr.bf16.mxu0 0
    %3086 = vmatpush1.bf16.msra.mxu0 0
    %3087 = vmatprep.subr.bf16.mxu0 0
    %3088 = vmatpush1.bf16.msra.mxu0 0
    %3089 = vmatprep.subr.bf16.mxu0 0
    %3090 = vmatpush1.bf16.msra.mxu0 0
    %3091 = vmatprep.subr.bf16.mxu0 0
    %3092 = vmatpush1.bf16.msra.mxu0 0
    %3093 = vmatprep.subr.bf16.mxu0 0
    %3094 = vmatpush1.bf16.msra.mxu0 0
    %3095 = vmatprep.subr.bf16.mxu0 0
    %3096 = vmatpush1.bf16.msra.mxu0 0
    %3097 = vmatprep.subr.bf16.mxu0 0
    %3098 = vmatpush1.bf16.msra.mxu0 0
    %3099 = vmatprep.subr.bf16.mxu0 0
    %3100 = vmatpush1.bf16.msra.mxu0 0
    %3101 = vmatprep.subr.bf16.mxu0 0
    %3102 = vmatpush1.bf16.msra.mxu0 0
    %3103 = vmatprep.mubr.bf16.mxu0 0
    %3104 = vmatmul.mubr.bf16.gmra.mrb[0].mxu0 %v3069
    %v3105 = vpop.f32.mrb[0].mxu0
    %v3106 = vadd.f32 0.0, %v3105
    %v3107 = vpop.f32.mrb[0].mxu0
    %v3108 = vpop.f32.mrb[0].mxu0
    %v3109 = vadd.f32 0.0, %v3108
    %v3110 = vpop.f32.mrb[0].mxu0
    %3111 = vdwg.mxu0
    %v3112 = vadd.f32 %v3049, %v3106
    %v3113 = vadd.f32 %v3050, %v3109
    %s3114 = scalar_lea.vmem %s5, 416
    %v3115 = vld [vmem:[%s3114] sm:$0xf]
    %v3116 = vld [vmem:[%s3114 + $0x4] sm:$0xf]
    %v3117 = vld [vmem:[%s3114 + $0x8] sm:$0xf]
    %v3118 = vld [vmem:[%s3114 + $0xc] sm:$0xf]
    %v3123 = vunpack.c.l.b16 %v3115
    %v3124 = vunpack.c.l.b16 %v3116
    %v3125 = vunpack.c.l.b16 %v3117
    %v3126 = vunpack.c.l.b16 %v3118
    %v3127 = vpack.c.b16 %v3124, %v3123
    %v3128 = vpack.c.b16 %v3126, %v3125
    %v3132 = vsel %vm1501, %v1479, 0
    %3134 = vmatprep.subr.bf16.mxu0 0
    %3135 = vmatpush1.bf16.msra.mxu0 %v3127
    %3136 = vmatprep.subr.bf16.mxu0 0
    %3137 = vmatpush1.bf16.msra.mxu0 %v3128
    %3138 = vmatprep.subr.bf16.mxu0 0
    %3139 = vmatpush1.bf16.msra.mxu0 0
    %3140 = vmatprep.subr.bf16.mxu0 0
    %3141 = vmatpush1.bf16.msra.mxu0 0
    %3142 = vmatprep.subr.bf16.mxu0 0
    %3143 = vmatpush1.bf16.msra.mxu0 0
    %3144 = vmatprep.subr.bf16.mxu0 0
    %3145 = vmatpush1.bf16.msra.mxu0 0
    %3146 = vmatprep.subr.bf16.mxu0 0
    %3147 = vmatpush1.bf16.msra.mxu0 0
    %3148 = vmatprep.subr.bf16.mxu0 0
    %3149 = vmatpush1.bf16.msra.mxu0 0
    %3150 = vmatprep.subr.bf16.mxu0 0
    %3151 = vmatpush1.bf16.msra.mxu0 0
    %3152 = vmatprep.subr.bf16.mxu0 0
    %3153 = vmatpush1.bf16.msra.mxu0 0
    %3154 = vmatprep.subr.bf16.mxu0 0
    %3155 = vmatpush1.bf16.msra.mxu0 0
    %3156 = vmatprep.subr.bf16.mxu0 0
    %3157 = vmatpush1.bf16.msra.mxu0 0
    %3158 = vmatprep.subr.bf16.mxu0 0
    %3159 = vmatpush1.bf16.msra.mxu0 0
    %3160 = vmatprep.subr.bf16.mxu0 0
    %3161 = vmatpush1.bf16.msra.mxu0 0
    %3162 = vmatprep.subr.bf16.mxu0 0
    %3163 = vmatpush1.bf16.msra.mxu0 0
    %3164 = vmatprep.subr.bf16.mxu0 0
    %3165 = vmatpush1.bf16.msra.mxu0 0
    %3166 = vmatprep.mubr.bf16.mxu0 0
    %3167 = vmatmul.mubr.bf16.gmra.mrb[0].mxu0 %v3132
    %v3168 = vpop.f32.mrb[0].mxu0
    %v3169 = vadd.f32 0.0, %v3168
    %v3170 = vpop.f32.mrb[0].mxu0
    %v3171 = vpop.f32.mrb[0].mxu0
    %v3172 = vadd.f32 0.0, %v3171
    %v3173 = vpop.f32.mrb[0].mxu0
    %3174 = vdwg.mxu0
    %v3175 = vadd.f32 %v3112, %v3169
    %v3176 = vadd.f32 %v3113, %v3172
    %v3177 = vadd.f32 %v3175, %v3176
    %v3178 = vrot.slane %v3177, 4
    %v3179 = vadd.f32 %v3177, %v3178
    %v3180 = vrot.slane %v3179, 2
    %v3181 = vadd.f32 %v3179, %v3180
    %v3182 = vrot.slane %v3181, 1
    %v3183 = vadd.f32 %v3181, %v3182
    %v3184 = vmul.f32 %v3183, 0.0625
    %v3185 = vsub.f32 %v3175, %v3184
    %v3186 = vsub.f32 %v3176, %v3184
    %v3187 = vmul.f32 %v3185, %v3185
    %v3188 = vmul.f32 %v3186, %v3186
    %v3189 = vadd.f32 %v3187, %v3188
    %v3190 = vrot.slane %v3189, 4
    %v3191 = vadd.f32 %v3189, %v3190
    %v3192 = vrot.slane %v3191, 2
    %v3193 = vadd.f32 %v3191, %v3192
    %v3194 = vrot.slane %v3193, 1
    %v3195 = vadd.f32 %v3193, %v3194
    %v3196 = vmul.f32 %v3195, 0.0625
    %v3197 = vadd.f32 %v3196, 1e-05
    %v3198 = vrsqrt.pop %v3197
    %v3199 = vld [vmem:[%s6] sm:$0x1]
    %v3200 = vmul.f32 %v3198, %v3199
    %v3201 = vlaneseq
    %v3202 = vshrl.u32 %v3201, 7
    %v3203 = vsub.s32 0, %v3202
    %v3204 = vrot.slane %v3200, %v3203
    %v3205 = vmul.f32 %v3185, %v3204
    %v3206 = vmul.f32 %v3186, %v3204
    %v3207 = vld [vmem:[%s7] sm:$0x1]
    %v3209 = vlaneseq
    %v3210 = vshrl.u32 %v3209, 7
    %v3211 = vsub.s32 0, %v3210
    %v3212 = vrot.slane %v3207, %v3211
    %v3214 = vadd.f32 %v3205, %v3212
    %v3215 = vadd.f32 %v3206, %v3212
    %v3216 = vmax.f32 %v3214, 0.0
    %v3217 = vmax.f32 %v3215, 0.0
    %v3218 = vadd.f32 %v3216, %v3217
    %3219 = vadd.xlane.f32.xlu0 %v3218
    %v3220 = vpop.xlane.xlu0 %3219
    %v3221 = vrot.slane %v3220, 4
    %v3222 = vadd.f32 %v3220, %v3221
    %v3223 = vrot.slane %v3222, 2
    %v3224 = vadd.f32 %v3222, %v3223
    %v3225 = vrot.slane %v3224, 1
    %v3226 = vadd.f32 %v3224, %v3225
    %s3227 = vtos %v3226
    %s3228 = smul.f32 %s3227, 0.0013020834
    %v3229 = vstv %s3228
    %v3230 = vsub.f32 %v3216, %v3229
    %v3231 = vsub.f32 %v3217, %v3229
    %v3232 = vlaneseq
    %v3233 = vand.u32 %v3232, 127
    %vm3234 = vcmp.lt.s32.totalorder %v3233, 48
    %v3235 = vsel %vm3234, %v3230, 0.0
    %v3236 = vsel %vm3234, %v3231, 0.0
    %v3237 = vmul.f32 %v3235, %v3235
    %v3238 = vmul.f32 %v3236, %v3236
    %v3239 = vadd.f32 %v3237, %v3238
    %3240 = vadd.xlane.f32.xlu0 %v3239
    %v3241 = vpop.xlane.xlu0 %3240
    %v3242 = vrot.slane %v3241, 4
    %v3243 = vadd.f32 %v3241, %v3242
    %v3244 = vrot.slane %v3243, 2
    %v3245 = vadd.f32 %v3243, %v3244
    %v3246 = vrot.slane %v3245, 1
    %v3247 = vadd.f32 %v3245, %v3246
    %s3248 = vtos %v3247
    %s3249 = smul.f32 %s3248, 0.0013037809
    %v3250 = vstv %s3249
    %v3251 = vrcp.pop %v3250
    %s3252 = vtos %v3251
    %v3253 = vstv %s3252
    %v3254 = vmul.f32 %v3230, %v3253
    %v3255 = vmul.f32 %v3231, %v3253
    %3256 = vst [vmem:[#allocation4] sm:$0xff] %v3254
    %3257 = vst [vmem:[#allocation4 + $0x8] sm:$0xff] %v3255
    %v3260 = vrot.slane %v3217, 7
    %vm3261 = vcmask 1041409
    %v3262 = vsel %vm3261, %v3260, %v3216
    %v3264 = vrot.slane %v3216, 1
    %v3265 = vsel %vm3261, %v3217, %v3264
    %v3267 = vrot.slane %v3216, 2
    %v3268 = vrot.slane %v3217, 1
    %v3269 = vsel %vm3261, %v3268, %v3267
    %v3271 = vrot.slane %v3216, 3
    %v3272 = vrot.slane %v3217, 2
    %v3273 = vsel %vm3261, %v3272, %v3271
    %v3275 = vrot.slane %v3216, 4
    %v3276 = vrot.slane %v3217, 3
    %v3277 = vsel %vm3261, %v3276, %v3275
    %v3279 = vrot.slane %v3216, 5
    %v3280 = vrot.slane %v3217, 4
    %v3281 = vsel %vm3261, %v3280, %v3279
    %v3283 = vrot.slane %v3216, 6
    %v3284 = vrot.slane %v3217, 5
    %v3285 = vsel %vm3261, %v3284, %v3283
    %v3287 = vrot.slane %v3216, 7
    %v3288 = vrot.slane %v3217, 6
    %v3289 = vsel %vm3261, %v3288, %v3287
    %v3291 = vld [vmem:[%s8] sm:$0xff]
    %v3292 = vld [vmem:[%s8 + $0x8] sm:$0xff]
    %v3293 = vld [vmem:[%s8 + $0x10] sm:$0xff]
    %v3294 = vld [vmem:[%s8 + $0x18] sm:$0xff]
    %v3295 = vld [vmem:[%s8 + $0x20] sm:$0xff]
    %v3296 = vld [vmem:[%s8 + $0x28] sm:$0xff]
    %v3297 = vld [vmem:[%s8 + $0x30] sm:$0xff]
    %v3298 = vld [vmem:[%s8 + $0x38] sm:$0xff]
    %v3299 = vld [vmem:[%s8 + $0x40] sm:$0xff]
    %v3300 = vld [vmem:[%s8 + $0x48] sm:$0xff]
    %v3301 = vld [vmem:[%s8 + $0x50] sm:$0xff]
    %v3302 = vld [vmem:[%s8 + $0x58] sm:$0xff]
    %v3303 = vld [vmem:[%s8 + $0x60] sm:$0xff]
    %v3304 = vld [vmem:[%s8 + $0x68] sm:$0xff]
    %v3305 = vld [vmem:[%s8 + $0x70] sm:$0xff]
    %v3306 = vld [vmem:[%s8 + $0x78] sm:$0xff]
    %v3307 = vld [vmem:[%s8 + $0x80] sm:$0xff]
    %v3308 = vld [vmem:[%s8 + $0x88] sm:$0xff]
    %v3309 = vld [vmem:[%s8 + $0x90] sm:$0xff]
    %v3310 = vld [vmem:[%s8 + $0x98] sm:$0xff]
    %v3311 = vld [vmem:[%s8 + $0xa0] sm:$0xff]
    %v3312 = vld [vmem:[%s8 + $0xa8] sm:$0xff]
    %v3313 = vld [vmem:[%s8 + $0xb0] sm:$0xff]
    %v3314 = vld [vmem:[%s8 + $0xb8] sm:$0xff]
    %v3315 = vld [vmem:[%s8 + $0xc0] sm:$0xff]
    %v3316 = vld [vmem:[%s8 + $0xc8] sm:$0xff]
    %v3317 = vld [vmem:[%s8 + $0xd0] sm:$0xff]
    %v3318 = vld [vmem:[%s8 + $0xd8] sm:$0xff]
    %v3319 = vld [vmem:[%s8 + $0xe0] sm:$0xff]
    %v3320 = vld [vmem:[%s8 + $0xe8] sm:$0xff]
    %v3321 = vld [vmem:[%s8 + $0xf0] sm:$0xff]
    %v3322 = vld [vmem:[%s8 + $0xf8] sm:$0xff]
    %v3323 = vld [vmem:[%s8 + $0x100] sm:$0xff]
    %v3324 = vld [vmem:[%s8 + $0x108] sm:$0xff]
    %v3325 = vld [vmem:[%s8 + $0x110] sm:$0xff]
    %v3326 = vld [vmem:[%s8 + $0x118] sm:$0xff]
    %v3327 = vld [vmem:[%s8 + $0x120] sm:$0xff]
    %v3328 = vld [vmem:[%s8 + $0x128] sm:$0xff]
    %v3329 = vld [vmem:[%s8 + $0x130] sm:$0xff]
    %v3330 = vld [vmem:[%s8 + $0x138] sm:$0xff]
    %v3331 = vld [vmem:[%s8 + $0x140] sm:$0xff]
    %v3332 = vld [vmem:[%s8 + $0x148] sm:$0xff]
    %v3333 = vld [vmem:[%s8 + $0x150] sm:$0xff]
    %v3334 = vld [vmem:[%s8 + $0x158] sm:$0xff]
    %v3335 = vld [vmem:[%s8 + $0x160] sm:$0xff]
    %v3336 = vld [vmem:[%s8 + $0x168] sm:$0xff]
    %v3337 = vld [vmem:[%s8 + $0x170] sm:$0xff]
    %v3338 = vld [vmem:[%s8 + $0x178] sm:$0xff]
    %v3339 = vld [vmem:[%s8 + $0x180] sm:$0xff]
    %v3340 = vld [vmem:[%s8 + $0x188] sm:$0xff]
    %v3341 = vld [vmem:[%s8 + $0x190] sm:$0xff]
    %v3342 = vld [vmem:[%s8 + $0x198] sm:$0xff]
    %v3343 = vld [vmem:[%s8 + $0x1a0] sm:$0xff]
    %v3344 = vld [vmem:[%s8 + $0x1a8] sm:$0xff]
    %v3345 = vld [vmem:[%s8 + $0x1b0] sm:$0xff]
    %v3346 = vld [vmem:[%s8 + $0x1b8] sm:$0xff]
    %v3347 = vld [vmem:[%s8 + $0x1c0] sm:$0xff]
    %v3348 = vld [vmem:[%s8 + $0x1c8] sm:$0xff]
    %v3349 = vld [vmem:[%s8 + $0x1d0] sm:$0xff]
    %v3350 = vld [vmem:[%s8 + $0x1d8] sm:$0xff]
    %v3351 = vld [vmem:[%s8 + $0x1e0] sm:$0xff]
    %v3352 = vld [vmem:[%s8 + $0x1e8] sm:$0xff]
    %v3353 = vld [vmem:[%s8 + $0x1f0] sm:$0xff]
    %v3354 = vld [vmem:[%s8 + $0x1f8] sm:$0xff]
    %v3355 = vld [vmem:[%s8 + $0x200] sm:$0xff]
    %v3356 = vld [vmem:[%s8 + $0x208] sm:$0xff]
    %v3357 = vld [vmem:[%s8 + $0x210] sm:$0xff]
    %v3358 = vld [vmem:[%s8 + $0x218] sm:$0xff]
    %v3359 = vld [vmem:[%s8 + $0x220] sm:$0xff]
    %v3360 = vld [vmem:[%s8 + $0x228] sm:$0xff]
    %v3361 = vld [vmem:[%s8 + $0x230] sm:$0xff]
    %v3362 = vld [vmem:[%s8 + $0x238] sm:$0xff]
    %v3363 = vld [vmem:[%s8 + $0x240] sm:$0xff]
    %v3364 = vld [vmem:[%s8 + $0x248] sm:$0xff]
    %v3365 = vld [vmem:[%s8 + $0x250] sm:$0xff]
    %v3366 = vld [vmem:[%s8 + $0x258] sm:$0xff]
    %v3367 = vld [vmem:[%s8 + $0x260] sm:$0xff]
    %v3368 = vld [vmem:[%s8 + $0x268] sm:$0xff]
    %v3369 = vld [vmem:[%s8 + $0x270] sm:$0xff]
    %v3370 = vld [vmem:[%s8 + $0x278] sm:$0xff]
    %v3371 = vld [vmem:[%s8 + $0x280] sm:$0xff]
    %v3372 = vld [vmem:[%s8 + $0x288] sm:$0xff]
    %v3373 = vld [vmem:[%s8 + $0x290] sm:$0xff]
    %v3374 = vld [vmem:[%s8 + $0x298] sm:$0xff]
    %v3375 = vld [vmem:[%s8 + $0x2a0] sm:$0xff]
    %v3376 = vld [vmem:[%s8 + $0x2a8] sm:$0xff]
    %v3377 = vld [vmem:[%s8 + $0x2b0] sm:$0xff]
    %v3378 = vld [vmem:[%s8 + $0x2b8] sm:$0xff]
    %v3379 = vld [vmem:[%s8 + $0x2c0] sm:$0xff]
    %v3380 = vld [vmem:[%s8 + $0x2c8] sm:$0xff]
    %v3381 = vld [vmem:[%s8 + $0x2d0] sm:$0xff]
    %v3382 = vld [vmem:[%s8 + $0x2d8] sm:$0xff]
    %v3383 = vld [vmem:[%s8 + $0x2e0] sm:$0xff]
    %v3384 = vld [vmem:[%s8 + $0x2e8] sm:$0xff]
    %v3385 = vld [vmem:[%s8 + $0x2f0] sm:$0xff]
    %v3386 = vld [vmem:[%s8 + $0x2f8] sm:$0xff]
    %v3387 = vld [vmem:[%s8 + $0x300] sm:$0xff]
    %v3388 = vld [vmem:[%s8 + $0x308] sm:$0xff]
    %v3389 = vld [vmem:[%s8 + $0x310] sm:$0xff]
    %v3390 = vld [vmem:[%s8 + $0x318] sm:$0xff]
    %v3391 = vld [vmem:[%s8 + $0x320] sm:$0xff]
    %v3392 = vld [vmem:[%s8 + $0x328] sm:$0xff]
    %v3393 = vld [vmem:[%s8 + $0x330] sm:$0xff]
    %v3394 = vld [vmem:[%s8 + $0x338] sm:$0xff]
    %v3395 = vld [vmem:[%s8 + $0x340] sm:$0xff]
    %v3396 = vld [vmem:[%s8 + $0x348] sm:$0xff]
    %v3397 = vld [vmem:[%s8 + $0x350] sm:$0xff]
    %v3398 = vld [vmem:[%s8 + $0x358] sm:$0xff]
    %v3399 = vld [vmem:[%s8 + $0x360] sm:$0xff]
    %v3400 = vld [vmem:[%s8 + $0x368] sm:$0xff]
    %v3401 = vld [vmem:[%s8 + $0x370] sm:$0xff]
    %v3402 = vld [vmem:[%s8 + $0x378] sm:$0xff]
    %v3403 = vld [vmem:[%s8 + $0x380] sm:$0xff]
    %v3404 = vld [vmem:[%s8 + $0x388] sm:$0xff]
    %v3405 = vld [vmem:[%s8 + $0x390] sm:$0xff]
    %v3406 = vld [vmem:[%s8 + $0x398] sm:$0xff]
    %v3407 = vld [vmem:[%s8 + $0x3a0] sm:$0xff]
    %v3408 = vld [vmem:[%s8 + $0x3a8] sm:$0xff]
    %v3409 = vld [vmem:[%s8 + $0x3b0] sm:$0xff]
    %v3410 = vld [vmem:[%s8 + $0x3b8] sm:$0xff]
    %v3411 = vld [vmem:[%s8 + $0x3c0] sm:$0xff]
    %v3412 = vld [vmem:[%s8 + $0x3c8] sm:$0xff]
    %v3413 = vld [vmem:[%s8 + $0x3d0] sm:$0xff]
    %v3414 = vld [vmem:[%s8 + $0x3d8] sm:$0xff]
    %v3415 = vld [vmem:[%s8 + $0x3e0] sm:$0xff]
    %v3416 = vld [vmem:[%s8 + $0x3e8] sm:$0xff]
    %v3417 = vld [vmem:[%s8 + $0x3f0] sm:$0xff]
    %v3418 = vld [vmem:[%s8 + $0x3f8] sm:$0xff]
    %v3419 = vld [vmem:[%s9] sm:$0x1]
    %v3421 = vlaneseq
    %v3422 = vshrl.u32 %v3421, 7
    %v3423 = vsub.s32 0, %v3422
    %v3424 = vrot.slane %v3419, %v3423
    %3426 = vmatprep.subr.mxu0 0.0
    %3427 = vmatpush1.msra.mxu0 %v3291
    %3428 = vmatprep.subr.mxu0 0.0
    %3429 = vmatpush1.msra.mxu0 %v3292
    %3430 = vmatprep.subr.mxu0 0.0
    %3431 = vmatpush1.msra.mxu0 %v3293
    %3432 = vmatprep.subr.mxu0 0.0
    %3433 = vmatpush1.msra.mxu0 %v3294
    %3434 = vmatprep.subr.mxu0 0.0
    %3435 = vmatpush1.msra.mxu0 %v3295
    %3436 = vmatprep.subr.mxu0 0.0
    %3437 = vmatpush1.msra.mxu0 %v3296
    %3438 = vmatprep.subr.mxu0 0.0
    %3439 = vmatpush1.msra.mxu0 %v3297
    %3440 = vmatprep.subr.mxu0 0.0
    %3441 = vmatpush1.msra.mxu0 %v3298
    %3442 = vmatprep.subr.mxu0 0.0
    %3443 = vmatpush1.msra.mxu0 %v3299
    %3444 = vmatprep.subr.mxu0 0.0
    %3445 = vmatpush1.msra.mxu0 %v3300
    %3446 = vmatprep.subr.mxu0 0.0
    %3447 = vmatpush1.msra.mxu0 %v3301
    %3448 = vmatprep.subr.mxu0 0.0
    %3449 = vmatpush1.msra.mxu0 %v3302
    %3450 = vmatprep.subr.mxu0 0.0
    %3451 = vmatpush1.msra.mxu0 %v3303
    %3452 = vmatprep.subr.mxu0 0.0
    %3453 = vmatpush1.msra.mxu0 %v3304
    %3454 = vmatprep.subr.mxu0 0.0
    %3455 = vmatpush1.msra.mxu0 %v3305
    %3456 = vmatprep.subr.mxu0 0.0
    %3457 = vmatpush1.msra.mxu0 %v3306
    %3458 = vmatprep.subr.mxu0 0.0
    %3459 = vmatpush1.msra.mxu0 %v3307
    %3460 = vmatprep.subr.mxu0 0.0
    %3461 = vmatpush1.msra.mxu0 %v3308
    %3462 = vmatprep.subr.mxu0 0.0
    %3463 = vmatpush1.msra.mxu0 %v3309
    %3464 = vmatprep.subr.mxu0 0.0
    %3465 = vmatpush1.msra.mxu0 %v3310
    %3466 = vmatprep.subr.mxu0 0.0
    %3467 = vmatpush1.msra.mxu0 %v3311
    %3468 = vmatprep.subr.mxu0 0.0
    %3469 = vmatpush1.msra.mxu0 %v3312
    %3470 = vmatprep.subr.mxu0 0.0
    %3471 = vmatpush1.msra.mxu0 %v3313
    %3472 = vmatprep.subr.mxu0 0.0
    %3473 = vmatpush1.msra.mxu0 %v3314
    %3474 = vmatprep.subr.mxu0 0.0
    %3475 = vmatpush1.msra.mxu0 %v3315
    %3476 = vmatprep.subr.mxu0 0.0
    %3477 = vmatpush1.msra.mxu0 %v3316
    %3478 = vmatprep.subr.mxu0 0.0
    %3479 = vmatpush1.msra.mxu0 %v3317
    %3480 = vmatprep.subr.mxu0 0.0
    %3481 = vmatpush1.msra.mxu0 %v3318
    %3482 = vmatprep.subr.mxu0 0.0
    %3483 = vmatpush1.msra.mxu0 %v3319
    %3484 = vmatprep.subr.mxu0 0.0
    %3485 = vmatpush1.msra.mxu0 %v3320
    %3486 = vmatprep.subr.mxu0 0.0
    %3487 = vmatpush1.msra.mxu0 %v3321
    %3488 = vmatprep.subr.mxu0 0.0
    %3489 = vmatpush1.msra.mxu0 %v3322
    %3490 = vmatprep.mubr.f32.mxu0 %v3265
    %3491 = vmatmul.mubr.f32.gmra.mrb[0].mxu0 %v3262
    %v3492 = vpop.f32.mrb[0].mxu0
    %v3493 = vadd.f32 %v3424, %v3492
    %v3494 = vpop.f32.mrb[0].mxu0
    %3495 = vdwg.mxu0
    %3496 = vmatprep.subr.mxu0 0.0
    %3497 = vmatpush1.msra.mxu0 %v3323
    %3498 = vmatprep.subr.mxu0 0.0
    %3499 = vmatpush1.msra.mxu0 %v3324
    %3500 = vmatprep.subr.mxu0 0.0
    %3501 = vmatpush1.msra.mxu0 %v3325
    %3502 = vmatprep.subr.mxu0 0.0
    %3503 = vmatpush1.msra.mxu0 %v3326
    %3504 = vmatprep.subr.mxu0 0.0
    %3505 = vmatpush1.msra.mxu0 %v3327
    %3506 = vmatprep.subr.mxu0 0.0
    %3507 = vmatpush1.msra.mxu0 %v3328
    %3508 = vmatprep.subr.mxu0 0.0
    %3509 = vmatpush1.msra.mxu0 %v3329
    %3510 = vmatprep.subr.mxu0 0.0
    %3511 = vmatpush1.msra.mxu0 %v3330
    %3512 = vmatprep.subr.mxu0 0.0
    %3513 = vmatpush1.msra.mxu0 %v3331
    %3514 = vmatprep.subr.mxu0 0.0
    %3515 = vmatpush1.msra.mxu0 %v3332
    %3516 = vmatprep.subr.mxu0 0.0
    %3517 = vmatpush1.msra.mxu0 %v3333
    %3518 = vmatprep.subr.mxu0 0.0
    %3519 = vmatpush1.msra.mxu0 %v3334
    %3520 = vmatprep.subr.mxu0 0.0
    %3521 = vmatpush1.msra.mxu0 %v3335
    %3522 = vmatprep.subr.mxu0 0.0
    %3523 = vmatpush1.msra.mxu0 %v3336
    %3524 = vmatprep.subr.mxu0 0.0
    %3525 = vmatpush1.msra.mxu0 %v3337
    %3526 = vmatprep.subr.mxu0 0.0
    %3527 = vmatpush1.msra.mxu0 %v3338
    %3528 = vmatprep.subr.mxu0 0.0
    %3529 = vmatpush1.msra.mxu0 %v3339
    %3530 = vmatprep.subr.mxu0 0.0
    %3531 = vmatpush1.msra.mxu0 %v3340
    %3532 = vmatprep.subr.mxu0 0.0
    %3533 = vmatpush1.msra.mxu0 %v3341
    %3534 = vmatprep.subr.mxu0 0.0
    %3535 = vmatpush1.msra.mxu0 %v3342
    %3536 = vmatprep.subr.mxu0 0.0
    %3537 = vmatpush1.msra.mxu0 %v3343
    %3538 = vmatprep.subr.mxu0 0.0
    %3539 = vmatpush1.msra.mxu0 %v3344
    %3540 = vmatprep.subr.mxu0 0.0
    %3541 = vmatpush1.msra.mxu0 %v3345
    %3542 = vmatprep.subr.mxu0 0.0
    %3543 = vmatpush1.msra.mxu0 %v3346
    %3544 = vmatprep.subr.mxu0 0.0
    %3545 = vmatpush1.msra.mxu0 %v3347
    %3546 = vmatprep.subr.mxu0 0.0
    %3547 = vmatpush1.msra.mxu0 %v3348
    %3548 = vmatprep.subr.mxu0 0.0
    %3549 = vmatpush1.msra.mxu0 %v3349
    %3550 = vmatprep.subr.mxu0 0.0
    %3551 = vmatpush1.msra.mxu0 %v3350
    %3552 = vmatprep.subr.mxu0 0.0
    %3553 = vmatpush1.msra.mxu0 %v3351
    %3554 = vmatprep.subr.mxu0 0.0
    %3555 = vmatpush1.msra.mxu0 %v3352
    %3556 = vmatprep.subr.mxu0 0.0
    %3557 = vmatpush1.msra.mxu0 %v3353
    %3558 = vmatprep.subr.mxu0 0.0
    %3559 = vmatpush1.msra.mxu0 %v3354
    %3560 = vmatprep.mubr.f32.mxu0 %v3273
    %3561 = vmatmul.mubr.f32.gmra.mrb[0].mxu0 %v3269
    %v3562 = vpop.f32.mrb[0].mxu0
    %v3563 = vadd.f32 %v3493, %v3562
    %v3564 = vpop.f32.mrb[0].mxu0
    %3565 = vdwg.mxu0
    %3566 = vmatprep.subr.mxu0 0.0
    %3567 = vmatpush1.msra.mxu0 %v3355
    %3568 = vmatprep.subr.mxu0 0.0
    %3569 = vmatpush1.msra.mxu0 %v3356
    %3570 = vmatprep.subr.mxu0 0.0
    %3571 = vmatpush1.msra.mxu0 %v3357
    %3572 = vmatprep.subr.mxu0 0.0
    %3573 = vmatpush1.msra.mxu0 %v3358
    %3574 = vmatprep.subr.mxu0 0.0
    %3575 = vmatpush1.msra.mxu0 %v3359
    %3576 = vmatprep.subr.mxu0 0.0
    %3577 = vmatpush1.msra.mxu0 %v3360
    %3578 = vmatprep.subr.mxu0 0.0
    %3579 = vmatpush1.msra.mxu0 %v3361
    %3580 = vmatprep.subr.mxu0 0.0
    %3581 = vmatpush1.msra.mxu0 %v3362
    %3582 = vmatprep.subr.mxu0 0.0
    %3583 = vmatpush1.msra.mxu0 %v3363
    %3584 = vmatprep.subr.mxu0 0.0
    %3585 = vmatpush1.msra.mxu0 %v3364
    %3586 = vmatprep.subr.mxu0 0.0
    %3587 = vmatpush1.msra.mxu0 %v3365
    %3588 = vmatprep.subr.mxu0 0.0
    %3589 = vmatpush1.msra.mxu0 %v3366
    %3590 = vmatprep.subr.mxu0 0.0
    %3591 = vmatpush1.msra.mxu0 %v3367
    %3592 = vmatprep.subr.mxu0 0.0
    %3593 = vmatpush1.msra.mxu0 %v3368
    %3594 = vmatprep.subr.mxu0 0.0
    %3595 = vmatpush1.msra.mxu0 %v3369
    %3596 = vmatprep.subr.mxu0 0.0
    %3597 = vmatpush1.msra.mxu0 %v3370
    %3598 = vmatprep.subr.mxu0 0.0
    %3599 = vmatpush1.msra.mxu0 %v3371
    %3600 = vmatprep.subr.mxu0 0.0
    %3601 = vmatpush1.msra.mxu0 %v3372
    %3602 = vmatprep.subr.mxu0 0.0
    %3603 = vmatpush1.msra.mxu0 %v3373
    %3604 = vmatprep.subr.mxu0 0.0
    %3605 = vmatpush1.msra.mxu0 %v3374
    %3606 = vmatprep.subr.mxu0 0.0
    %3607 = vmatpush1.msra.mxu0 %v3375
    %3608 = vmatprep.subr.mxu0 0.0
    %3609 = vmatpush1.msra.mxu0 %v3376
    %3610 = vmatprep.subr.mxu0 0.0
    %3611 = vmatpush1.msra.mxu0 %v3377
    %3612 = vmatprep.subr.mxu0 0.0
    %3613 = vmatpush1.msra.mxu0 %v3378
    %3614 = vmatprep.subr.mxu0 0.0
    %3615 = vmatpush1.msra.mxu0 %v3379
    %3616 = vmatprep.subr.mxu0 0.0
    %3617 = vmatpush1.msra.mxu0 %v3380
    %3618 = vmatprep.subr.mxu0 0.0
    %3619 = vmatpush1.msra.mxu0 %v3381
    %3620 = vmatprep.subr.mxu0 0.0
    %3621 = vmatpush1.msra.mxu0 %v3382
    %3622 = vmatprep.subr.mxu0 0.0
    %3623 = vmatpush1.msra.mxu0 %v3383
    %3624 = vmatprep.subr.mxu0 0.0
    %3625 = vmatpush1.msra.mxu0 %v3384
    %3626 = vmatprep.subr.mxu0 0.0
    %3627 = vmatpush1.msra.mxu0 %v3385
    %3628 = vmatprep.subr.mxu0 0.0
    %3629 = vmatpush1.msra.mxu0 %v3386
    %3630 = vmatprep.mubr.f32.mxu0 %v3281
    %3631 = vmatmul.mubr.f32.gmra.mrb[0].mxu0 %v3277
    %v3632 = vpop.f32.mrb[0].mxu0
    %v3633 = vadd.f32 %v3563, %v3632
    %v3634 = vpop.f32.mrb[0].mxu0
    %3635 = vdwg.mxu0
    %3636 = vmatprep.subr.mxu0 0.0
    %3637 = vmatpush1.msra.mxu0 %v3387
    %3638 = vmatprep.subr.mxu0 0.0
    %3639 = vmatpush1.msra.mxu0 %v3388
    %3640 = vmatprep.subr.mxu0 0.0
    %3641 = vmatpush1.msra.mxu0 %v3389
    %3642 = vmatprep.subr.mxu0 0.0
    %3643 = vmatpush1.msra.mxu0 %v3390
    %3644 = vmatprep.subr.mxu0 0.0
    %3645 = vmatpush1.msra.mxu0 %v3391
    %3646 = vmatprep.subr.mxu0 0.0
    %3647 = vmatpush1.msra.mxu0 %v3392
    %3648 = vmatprep.subr.mxu0 0.0
    %3649 = vmatpush1.msra.mxu0 %v3393
    %3650 = vmatprep.subr.mxu0 0.0
    %3651 = vmatpush1.msra.mxu0 %v3394
    %3652 = vmatprep.subr.mxu0 0.0
    %3653 = vmatpush1.msra.mxu0 %v3395
    %3654 = vmatprep.subr.mxu0 0.0
    %3655 = vmatpush1.msra.mxu0 %v3396
    %3656 = vmatprep.subr.mxu0 0.0
    %3657 = vmatpush1.msra.mxu0 %v3397
    %3658 = vmatprep.subr.mxu0 0.0
    %3659 = vmatpush1.msra.mxu0 %v3398
    %3660 = vmatprep.subr.mxu0 0.0
    %3661 = vmatpush1.msra.mxu0 %v3399
    %3662 = vmatprep.subr.mxu0 0.0
    %3663 = vmatpush1.msra.mxu0 %v3400
    %3664 = vmatprep.subr.mxu0 0.0
    %3665 = vmatpush1.msra.mxu0 %v3401
    %3666 = vmatprep.subr.mxu0 0.0
    %3667 = vmatpush1.msra.mxu0 %v3402
    %3668 = vmatprep.subr.mxu0 0.0
    %3669 = vmatpush1.msra.mxu0 %v3403
    %3670 = vmatprep.subr.mxu0 0.0
    %3671 = vmatpush1.msra.mxu0 %v3404
    %3672 = vmatprep.subr.mxu0 0.0
    %3673 = vmatpush1.msra.mxu0 %v3405
    %3674 = vmatprep.subr.mxu0 0.0
    %3675 = vmatpush1.msra.mxu0 %v3406
    %3676 = vmatprep.subr.mxu0 0.0
    %3677 = vmatpush1.msra.mxu0 %v3407
    %3678 = vmatprep.subr.mxu0 0.0
    %3679 = vmatpush1.msra.mxu0 %v3408
    %3680 = vmatprep.subr.mxu0 0.0
    %3681 = vmatpush1.msra.mxu0 %v3409
    %3682 = vmatprep.subr.mxu0 0.0
    %3683 = vmatpush1.msra.mxu0 %v3410
    %3684 = vmatprep.subr.mxu0 0.0
    %3685 = vmatpush1.msra.mxu0 %v3411
    %3686 = vmatprep.subr.mxu0 0.0
    %3687 = vmatpush1.msra.mxu0 %v3412
    %3688 = vmatprep.subr.mxu0 0.0
    %3689 = vmatpush1.msra.mxu0 %v3413
    %3690 = vmatprep.subr.mxu0 0.0
    %3691 = vmatpush1.msra.mxu0 %v3414
    %3692 = vmatprep.subr.mxu0 0.0
    %3693 = vmatpush1.msra.mxu0 %v3415
    %3694 = vmatprep.subr.mxu0 0.0
    %3695 = vmatpush1.msra.mxu0 %v3416
    %3696 = vmatprep.subr.mxu0 0.0
    %3697 = vmatpush1.msra.mxu0 %v3417
    %3698 = vmatprep.subr.mxu0 0.0
    %3699 = vmatpush1.msra.mxu0 %v3418
    %3700 = vmatprep.mubr.f32.mxu0 %v3289
    %3701 = vmatmul.mubr.f32.gmra.mrb[0].mxu0 %v3285
    %v3702 = vpop.f32.mrb[0].mxu0
    %v3703 = vadd.f32 %v3633, %v3702
    %v3704 = vpop.f32.mrb[0].mxu0
    %3705 = vdwg.mxu0
    %v3706 = vmax.f32 %v3703, 0.0
    %v3707 = vld [vmem:[%s10] sm:$0xff]
    %v3708 = vld [vmem:[%s10 + $0x8] sm:$0xff]
    %v3709 = vld [vmem:[%s10 + $0x10] sm:$0xff]
    %v3710 = vld [vmem:[%s10 + $0x18] sm:$0xff]
    %v3711 = vld [vmem:[%s10 + $0x20] sm:$0xff]
    %v3712 = vld [vmem:[%s10 + $0x28] sm:$0xff]
    %v3713 = vld [vmem:[%s10 + $0x30] sm:$0xff]
    %v3714 = vld [vmem:[%s10 + $0x38] sm:$0xff]
    %v3715 = vld [vmem:[%s10 + $0x40] sm:$0xff]
    %v3716 = vld [vmem:[%s10 + $0x48] sm:$0xff]
    %v3717 = vld [vmem:[%s10 + $0x50] sm:$0xff]
    %v3718 = vld [vmem:[%s10 + $0x58] sm:$0xff]
    %v3719 = vld [vmem:[%s10 + $0x60] sm:$0xff]
    %v3720 = vld [vmem:[%s10 + $0x68] sm:$0xff]
    %v3721 = vld [vmem:[%s10 + $0x70] sm:$0xff]
    %v3722 = vld [vmem:[%s10 + $0x78] sm:$0xff]
    %v3723 = vld [vmem:[%s11] sm:$0x1]
    %v3725 = vlaneseq
    %v3726 = vshrl.u32 %v3725, 7
    %v3727 = vsub.s32 0, %v3726
    %v3728 = vrot.slane %v3723, %v3727
    %3730 = vmatprep.subr.mxu0 0.0
    %3731 = vmatpush1.msra.mxu0 %v3707
    %3732 = vmatprep.subr.mxu0 0.0
    %3733 = vmatpush1.msra.mxu0 %v3708
    %3734 = vmatprep.subr.mxu0 0.0
    %3735 = vmatpush1.msra.mxu0 %v3709
    %3736 = vmatprep.subr.mxu0 0.0
    %3737 = vmatpush1.msra.mxu0 %v3710
    %3738 = vmatprep.subr.mxu0 0.0
    %3739 = vmatpush1.msra.mxu0 %v3711
    %3740 = vmatprep.subr.mxu0 0.0
    %3741 = vmatpush1.msra.mxu0 %v3712
    %3742 = vmatprep.subr.mxu0 0.0
    %3743 = vmatpush1.msra.mxu0 %v3713
    %3744 = vmatprep.subr.mxu0 0.0
    %3745 = vmatpush1.msra.mxu0 %v3714
    %3746 = vmatprep.subr.mxu0 0.0
    %3747 = vmatpush1.msra.mxu0 %v3715
    %3748 = vmatprep.subr.mxu0 0.0
    %3749 = vmatpush1.msra.mxu0 %v3716
    %3750 = vmatprep.subr.mxu0 0.0
    %3751 = vmatpush1.msra.mxu0 %v3717
    %3752 = vmatprep.subr.mxu0 0.0
    %3753 = vmatpush1.msra.mxu0 %v3718
    %3754 = vmatprep.subr.mxu0 0.0
    %3755 = vmatpush1.msra.mxu0 %v3719
    %3756 = vmatprep.subr.mxu0 0.0
    %3757 = vmatpush1.msra.mxu0 %v3720
    %3758 = vmatprep.subr.mxu0 0.0
    %3759 = vmatpush1.msra.mxu0 %v3721
    %3760 = vmatprep.subr.mxu0 0.0
    %3761 = vmatpush1.msra.mxu0 %v3722
    %3762 = vmatprep.subr.mxu0 0.0
    %3763 = vmatpush1.msra.mxu0 0.0
    %3764 = vmatprep.subr.mxu0 0.0
    %3765 = vmatpush1.msra.mxu0 0.0
    %3766 = vmatprep.subr.mxu0 0.0
    %3767 = vmatpush1.msra.mxu0 0.0
    %3768 = vmatprep.subr.mxu0 0.0
    %3769 = vmatpush1.msra.mxu0 0.0
    %3770 = vmatprep.subr.mxu0 0.0
    %3771 = vmatpush1.msra.mxu0 0.0
    %3772 = vmatprep.subr.mxu0 0.0
    %3773 = vmatpush1.msra.mxu0 0.0
    %3774 = vmatprep.subr.mxu0 0.0
    %3775 = vmatpush1.msra.mxu0 0.0
    %3776 = vmatprep.subr.mxu0 0.0
    %3777 = vmatpush1.msra.mxu0 0.0
    %3778 = vmatprep.subr.mxu0 0.0
    %3779 = vmatpush1.msra.mxu0 0.0
    %3780 = vmatprep.subr.mxu0 0.0
    %3781 = vmatpush1.msra.mxu0 0.0
    %3782 = vmatprep.subr.mxu0 0.0
    %3783 = vmatpush1.msra.mxu0 0.0
    %3784 = vmatprep.subr.mxu0 0.0
    %3785 = vmatpush1.msra.mxu0 0.0
    %3786 = vmatprep.subr.mxu0 0.0
    %3787 = vmatpush1.msra.mxu0 0.0
    %3788 = vmatprep.subr.mxu0 0.0
    %3789 = vmatpush1.msra.mxu0 0.0
    %3790 = vmatprep.subr.mxu0 0.0
    %3791 = vmatpush1.msra.mxu0 0.0
    %3792 = vmatprep.subr.mxu0 0.0
    %3793 = vmatpush1.msra.mxu0 0.0
    %3794 = vmatprep.mubr.f32.mxu0 0.0
    %3795 = vmatmul.mubr.f32.gmra.mrb[0].mxu0 %v3706
    %v3796 = vpop.f32.mrb[0].mxu0
    %v3797 = vadd.f32 %v3728, %v3796
    %v3798 = vpop.f32.mrb[0].mxu0
    %3799 = vdwg.mxu0
    %v3800 = vmax.f32 %v3797, 0.0
    %v3801 = vld [vmem:[%s12] sm:$0xff]
    %v3802 = vld [vmem:[%s12 + $0x8] sm:$0xff]
    %v3803 = vld [vmem:[%s12 + $0x10] sm:$0xff]
    %v3804 = vld [vmem:[%s12 + $0x18] sm:$0xff]
    %v3805 = vld [vmem:[%s12 + $0x20] sm:$0xff]
    %v3806 = vld [vmem:[%s12 + $0x28] sm:$0xff]
    %v3807 = vld [vmem:[%s12 + $0x30] sm:$0xff]
    %v3808 = vld [vmem:[%s12 + $0x38] sm:$0xff]
    %v3809 = vld [vmem:[%s12 + $0x40] sm:$0xff]
    %v3810 = vld [vmem:[%s12 + $0x48] sm:$0xff]
    %v3811 = vld [vmem:[%s12 + $0x50] sm:$0xff]
    %v3812 = vld [vmem:[%s12 + $0x58] sm:$0xff]
    %v3813 = vld [vmem:[%s12 + $0x60] sm:$0xff]
    %v3814 = vld [vmem:[%s12 + $0x68] sm:$0xff]
    %v3815 = vld [vmem:[%s12 + $0x70] sm:$0xff]
    %v3816 = vld [vmem:[%s12 + $0x78] sm:$0xff]
    %v3817 = vld [vmem:[%s13] sm:$0x1]
    %v3819 = vlaneseq
    %v3820 = vshrl.u32 %v3819, 7
    %v3821 = vsub.s32 0, %v3820
    %v3822 = vrot.slane %v3817, %v3821
    %3824 = vmatprep.subr.mxu0 0.0
    %3825 = vmatpush1.msra.mxu0 %v3801
    %3826 = vmatprep.subr.mxu0 0.0
    %3827 = vmatpush1.msra.mxu0 %v3802
    %3828 = vmatprep.subr.mxu0 0.0
    %3829 = vmatpush1.msra.mxu0 %v3803
    %3830 = vmatprep.subr.mxu0 0.0
    %3831 = vmatpush1.msra.mxu0 %v3804
    %3832 = vmatprep.subr.mxu0 0.0
    %3833 = vmatpush1.msra.mxu0 %v3805
    %3834 = vmatprep.subr.mxu0 0.0
    %3835 = vmatpush1.msra.mxu0 %v3806
    %3836 = vmatprep.subr.mxu0 0.0
    %3837 = vmatpush1.msra.mxu0 %v3807
    %3838 = vmatprep.subr.mxu0 0.0
    %3839 = vmatpush1.msra.mxu0 %v3808
    %3840 = vmatprep.subr.mxu0 0.0
    %3841 = vmatpush1.msra.mxu0 %v3809
    %3842 = vmatprep.subr.mxu0 0.0
    %3843 = vmatpush1.msra.mxu0 %v3810
    %3844 = vmatprep.subr.mxu0 0.0
    %3845 = vmatpush1.msra.mxu0 %v3811
    %3846 = vmatprep.subr.mxu0 0.0
    %3847 = vmatpush1.msra.mxu0 %v3812
    %3848 = vmatprep.subr.mxu0 0.0
    %3849 = vmatpush1.msra.mxu0 %v3813
    %3850 = vmatprep.subr.mxu0 0.0
    %3851 = vmatpush1.msra.mxu0 %v3814
    %3852 = vmatprep.subr.mxu0 0.0
    %3853 = vmatpush1.msra.mxu0 %v3815
    %3854 = vmatprep.subr.mxu0 0.0
    %3855 = vmatpush1.msra.mxu0 %v3816
    %3856 = vmatprep.subr.mxu0 0.0
    %3857 = vmatpush1.msra.mxu0 0.0
    %3858 = vmatprep.subr.mxu0 0.0
    %3859 = vmatpush1.msra.mxu0 0.0
    %3860 = vmatprep.subr.mxu0 0.0
    %3861 = vmatpush1.msra.mxu0 0.0
    %3862 = vmatprep.subr.mxu0 0.0
    %3863 = vmatpush1.msra.mxu0 0.0
    %3864 = vmatprep.subr.mxu0 0.0
    %3865 = vmatpush1.msra.mxu0 0.0
    %3866 = vmatprep.subr.mxu0 0.0
    %3867 = vmatpush1.msra.mxu0 0.0
    %3868 = vmatprep.subr.mxu0 0.0
    %3869 = vmatpush1.msra.mxu0 0.0
    %3870 = vmatprep.subr.mxu0 0.0
    %3871 = vmatpush1.msra.mxu0 0.0
    %3872 = vmatprep.subr.mxu0 0.0
    %3873 = vmatpush1.msra.mxu0 0.0
    %3874 = vmatprep.subr.mxu0 0.0
    %3875 = vmatpush1.msra.mxu0 0.0
    %3876 = vmatprep.subr.mxu0 0.0
    %3877 = vmatpush1.msra.mxu0 0.0
    %3878 = vmatprep.subr.mxu0 0.0
    %3879 = vmatpush1.msra.mxu0 0.0
    %3880 = vmatprep.subr.mxu0 0.0
    %3881 = vmatpush1.msra.mxu0 0.0
    %3882 = vmatprep.subr.mxu0 0.0
    %3883 = vmatpush1.msra.mxu0 0.0
    %3884 = vmatprep.subr.mxu0 0.0
    %3885 = vmatpush1.msra.mxu0 0.0
    %3886 = vmatprep.subr.mxu0 0.0
    %3887 = vmatpush1.msra.mxu0 0.0
    %3888 = vmatprep.mubr.f32.mxu0 0.0
    %3889 = vmatmul.mubr.f32.gmra.mrb[0].mxu0 %v3800
    %v3890 = vpop.f32.mrb[0].mxu0
    %v3891 = vadd.f32 %v3822, %v3890
    %v3892 = vpop.f32.mrb[0].mxu0
    %3893 = vdwg.mxu0
    %3894 = vst [vmem:[#allocation2] sm:$0x3] %v3891
    // Predicated region
    $region58: #{_lambda_.1} parent=1 // pred_check
      _
    $region59: #{_lambda_.1} parent=1 // pred_check_branch
      %3896 = sbr.rel (0) target = $region61
    $region60: #{_lambda_.1} parent=1 // pred_region
      %s3898 = ssub.s32 32, 32
      %3899 = vsyncadd [#allocation3], %s3898
      %s3901 = sshll.u32 [#allocation2], 4
      %s3902 = int_to_ptr.vmem [resolvable:$true] %s3901
      %3904 = dma.vmem_to_hbm [thread:$0]  %s3902, 32, %s14, [#allocation3]
    $region61: #{_lambda_.1} parent=1 // pred_fallthru
      _
    // Predicated region
    $region62: #{_lambda_.1} parent=1 // pred_check
      _
    $region63: #{_lambda_.1} parent=1 // pred_check_branch
      %3906 = sbr.rel (0) target = $region65
    $region64: #{_lambda_.1} parent=1 // pred_region
      %s3908 = ssub.s32 256, 256
      %3909 = vsyncadd [#allocation5], %s3908
      %s3910 = sshll.u32 [#allocation4], 4
      %s3911 = int_to_ptr.vmem [resolvable:$true] %s3910
      %3916 = dma.vmem_to_hbm [thread:$0]  %s3911, 256, %s15, [#allocation5], 128, 128, 8
    $region65: #{_lambda_.1} parent=1 // pred_fallthru
      _
    // Predicated region
    $region66: #{_lambda_.1} parent=1 // pred_check
      _
    $region67: #{_lambda_.1} parent=1 // pred_check_branch
      %3918 = sbr.rel (0) target = $region69
    $region68: #{_lambda_.1} parent=1 // pred_region
      %3919 = dma.done [#allocation3], 32
    $region69: #{_lambda_.1} parent=1 // pred_fallthru
      _
    // Predicated region
    $region70: #{_lambda_.1} parent=1 // pred_check
      _
    $region71: #{_lambda_.1} parent=1 // pred_check_branch
      %3921 = sbr.rel (0) target = $region73
    $region72: #{_lambda_.1} parent=1 // pred_region
      %3922 = dma.done [#allocation5], 256
    $region73: #{_lambda_.1} parent=1 // pred_fallthru
      _
    %3923 = vsyncpa [#allocation3], 1
    %3924 = vsyncpa [#allocation5], 1

</llo_original>
